<compile_context>
chip_gen: v7x
topology: tpu7x:2x2x1
jax: 0.10.0
libtpu: 0.0.40
codegen_flags: <defaults>
</compile_context>

<pallas_src>
import math
import numpy as np
import jax
import jax.numpy as jnp
from jax.experimental import pallas as pl
from jax.experimental.pallas import tpu as pltpu

# ---- small, forward-consistent shapes ----
N, S, E = 2, 8, 32          # batch, seq, embed_size
HEADS = 4
HEAD_DIM = E // HEADS
FE = 4                      # forward_expansion
HID = FE * E                # 128
NUM_LAYERS = 2
MAX_LEN = 16                # max_length for positional encoding
LN_EPS = 1e-5

# ---- packed weight-slab layout (per layer: SLAB_ROWS x 128 lanes, f32) ----
QKV_ROW0 = 0                # rows [0,E): [Wq_s^T | Wk^T | Wv^T | Wo^T] in lane blocks of 32
W1_ROW0 = E                 # rows [E,2E):        W1^T  (E, HID) = (32, 128)
W2_ROW0 = 2 * E             # rows [2E,2E+HID):   W2^T  (HID, E) in lanes [0,E)  (lanes E:128 zero-pad)
VEC_ROW0 = 2 * E + HID      # bias / layernorm rows (one row each, data in low lanes)
R_BO, R_LN1W, R_LN1B, R_B1, R_B2, R_LN2W, R_LN2B = range(7)
SLAB_ROWS = VEC_ROW0 + 8    # 200 rows (multiple of 8 sublanes)


# ----------------------------- kernel -----------------------------

def _layernorm(x, w, b):
    mu = jnp.mean(x, axis=-1, keepdims=True)
    var = jnp.mean((x - mu) ** 2, axis=-1, keepdims=True)
    return (x - mu) * jax.lax.rsqrt(var + LN_EPS) * w + b


def encoder_kernel(x_ref, pe_ref, w_ref, o_ref):
    """Fused Encoder forward.

    x_ref, pe_ref, o_ref : (N*S, E) f32, whole arrays resident in VMEM.
    w_ref                : (NUM_LAYERS, SLAB_ROWS, 128) packed, pre-transposed weights.
    Single invocation (no grid) -- the whole problem is ~0.2 MB and fits in VMEM.
    """
    # Positional encoding add (pe already broadcast to rows on the host side,
    # reproducing the pe[:batch]-broadcasts-over-seq quirk).
    x = x_ref[...] + pe_ref[...]                                        # (N*S, E)

    for l in range(NUM_LAYERS):                                         # static unroll
        # ---- packed, pre-transposed weights: static ref slices, no in-kernel .T ----
        w_qkvo = w_ref[l, QKV_ROW0:QKV_ROW0 + E, :]                     # (E, 128)
        w1_t = w_ref[l, W1_ROW0:W1_ROW0 + E, :]                         # (E, HID)
        w2_t = w_ref[l, W2_ROW0:W2_ROW0 + HID, 0:E]                     # (HID, E)
        wo_t = w_qkvo[:, 3 * E:4 * E]                                   # (E, E)

        def vrow(r, width, _l=l):
            return w_ref[_l, VEC_ROW0 + r:VEC_ROW0 + r + 1, 0:width]    # (1, width)

        bo = vrow(R_BO, E)
        ln1w, ln1b = vrow(R_LN1W, E), vrow(R_LN1B, E)
        b1, b2 = vrow(R_B1, HID), vrow(R_B2, E)
        ln2w, ln2b = vrow(R_LN2W, E), vrow(R_LN2B, E)

        # ---- fused Q/K/V projection: one (N*S,E)@(E,128) matmul.
        # lanes [0:E)=Q (1/sqrt(E) softmax scale folded into Wq), [E:2E)=K,
        # [2E:3E)=V.  Lanes [3E:4E) hold x@Wo^T (free by-product of packing
        # Wo^T in the same slab rows) and are simply ignored.
        qkv = jnp.dot(x, w_qkvo, preferred_element_type=jnp.float32)    # (N*S, 128)

        # ---- attention core, per (batch, head) on tiny (S,S) tiles ----
        # TODO(synk): masked_fill path (mask != None) not implemented; Encoder runs with mask=None.
        batch_rows = []
        for n in range(N):
            r0 = n * S
            head_outs = []
            for h in range(HEADS):
                c = h * HEAD_DIM
                qh = qkv[r0:r0 + S, c:c + HEAD_DIM]                     # (S, Dh), pre-scaled
                kh = qkv[r0:r0 + S, E + c:E + c + HEAD_DIM]
                vh = qkv[r0:r0 + S, 2 * E + c:2 * E + c + HEAD_DIM]
                energy = jnp.dot(qh, kh.T, preferred_element_type=jnp.float32)   # (S, S)
                m = jnp.max(energy, axis=-1, keepdims=True)
                p = jnp.exp(energy - m)
                att = p * pl.reciprocal(jnp.sum(p, axis=-1, keepdims=True), approx=False)
                head_outs.append(jnp.dot(att, vh, preferred_element_type=jnp.float32))
            batch_rows.append(jnp.concatenate(head_outs, axis=1))       # (S, E)
        attn = jnp.concatenate(batch_rows, axis=0)                      # (N*S, E)

        # ---- fc_out projection: single matmul with pre-transposed Wo ----
        att_proj = jnp.dot(attn, wo_t, preferred_element_type=jnp.float32) + bo

        # ---- block body (original code multiplies attention with the query) ----
        x1 = _layernorm(att_proj * x, ln1w, ln1b)
        h1 = jnp.maximum(jnp.dot(x1, w1_t, preferred_element_type=jnp.float32) + b1, 0.0)
        ff = jnp.dot(h1, w2_t, preferred_element_type=jnp.float32) + b2
        x = _layernorm(ff + x1, ln2w, ln2b)

    o_ref[...] = x


# ----------------------------- wrapper -----------------------------

@jax.jit
def encoder_forward(x, pe, w_slab):
    n, s, e = x.shape
    ns = n * s
    # quirk: pe[:batch] has shape (n, 1, e) and broadcasts along the SEQ axis.
    pe_rows = jnp.broadcast_to(pe[:n], (n, s, e)).reshape(ns, e)
    vmem = lambda: pl.BlockSpec(memory_space=pltpu.MemorySpace.VMEM)
    out = pl.pallas_call(
        encoder_kernel,
        out_shape=jax.ShapeDtypeStruct((ns, e), jnp.float32),
        in_specs=[vmem(), vmem(), vmem()],
        out_specs=vmem(),
    )(x.reshape(ns, e), pe_rows, w_slab)
    return out.reshape(n, s, e)


# ----------------------------- host-side weight packing -----------------------------

def pack_params(layer_params):
    """Pre-transpose / block-diagonalize / concatenate all per-layer params into
    one (NUM_LAYERS, SLAB_ROWS, 128) f32 slab (single DMA, zero in-kernel transposes)."""
    eye = np.eye(HEADS, dtype=np.float32)
    slabs = []
    for p in layer_params:
        wq, wk, wv, wo, bo, ln1w, ln1b, w1, b1, w2, b2, ln2w, ln2b = [np.asarray(a) for a in p]
        slab = np.zeros((SLAB_ROWS, 128), np.float32)
        # block-diagonal per-head projections; softmax 1/sqrt(E) folded into Wq
        slab[QKV_ROW0:QKV_ROW0 + E, 0:E] = np.kron(eye, wq.T) / math.sqrt(E)
        slab[QKV_ROW0:QKV_ROW0 + E, E:2 * E] = np.kron(eye, wk.T)
        slab[QKV_ROW0:QKV_ROW0 + E, 2 * E:3 * E] = np.kron(eye, wv.T)
        slab[QKV_ROW0:QKV_ROW0 + E, 3 * E:4 * E] = wo.T
        slab[W1_ROW0:W1_ROW0 + E, :] = w1.T                       # (32, 128)
        slab[W2_ROW0:W2_ROW0 + HID, 0:E] = w2.T                   # (128, 32), lane-padded
        slab[VEC_ROW0 + R_BO, 0:E] = bo[0]
        slab[VEC_ROW0 + R_LN1W, 0:E] = ln1w[0]
        slab[VEC_ROW0 + R_LN1B, 0:E] = ln1b[0]
        slab[VEC_ROW0 + R_B1, 0:HID] = b1[0]
        slab[VEC_ROW0 + R_B2, 0:E] = b2[0]
        slab[VEC_ROW0 + R_LN2W, 0:E] = ln2w[0]
        slab[VEC_ROW0 + R_LN2B, 0:E] = ln2b[0]
        slabs.append(slab)
    return jnp.asarray(np.stack(slabs))


# ----------------------------- params / reference -----------------------------

def make_pe(max_len, d_model):
    pe = np.zeros((max_len, d_model), np.float32)
    position = np.arange(0, max_len, dtype=np.float32)[:, None]
    div_term = np.exp(np.arange(0, d_model, 2, dtype=np.float32) *
                      (-math.log(10000.0) / d_model))
    pe[:, 0::2] = np.sin(position * div_term)
    pe[:, 1::2] = np.cos(position * div_term)
    return jnp.asarray(pe)[:, None, :]          # (max_len, 1, d_model)


def init_layer_params(key):
    ks = jax.random.split(key, 8)

    def lin(k, out_dim, in_dim):
        bound = 1.0 / math.sqrt(in_dim)
        return jax.random.uniform(k, (out_dim, in_dim), jnp.float32, -bound, bound)

    wq = lin(ks[0], HEAD_DIM, HEAD_DIM)
    wk = lin(ks[1], HEAD_DIM, HEAD_DIM)
    wv = lin(ks[2], HEAD_DIM, HEAD_DIM)
    wo = lin(ks[3], E, E)
    bo = lin(ks[4], 1, E) * 0.1                              # (1, E)
    ln1w = jnp.ones((1, E), jnp.float32); ln1b = jnp.zeros((1, E), jnp.float32)
    w1 = lin(ks[5], HID, E); b1 = lin(ks[6], 1, HID) * 0.1
    w2 = lin(ks[7], E, HID); b2 = jnp.zeros((1, E), jnp.float32)
    ln2w = jnp.ones((1, E), jnp.float32); ln2b = jnp.zeros((1, E), jnp.float32)
    return [wq, wk, wv, wo, bo, ln1w, ln1b, w1, b1, w2, b2, ln2w, ln2b]


def ref_block(x, params):
    wq, wk, wv, wo, bo, ln1w, ln1b, w1, b1, w2, b2, ln2w, ln2b = params
    n, s, e = x.shape
    xh = x.reshape(n, s, HEADS, HEAD_DIM)
    q = jnp.einsum('nshd,od->nsho', xh, wq)
    k = jnp.einsum('nshd,od->nsho', xh, wk)
    v = jnp.einsum('nshd,od->nsho', xh, wv)
    energy = jnp.einsum('nqhd,nkhd->nhqk', q, k) / (e ** 0.5)
    att = jax.nn.softmax(energy, axis=3)
    out = jnp.einsum('nhql,nlhd->nqhd', att, v).reshape(n, s, e)
    out = out @ wo.T + bo
    x1 = _layernorm(out * x, ln1w, ln1b)
    ff = jnp.maximum(x1 @ w1.T + b1, 0.0) @ w2.T + b2
    return _layernorm(ff + x1, ln2w, ln2b)


def ref_encoder(x, pe, layer_params):
    out = x + pe[:x.shape[0]]
    for p in layer_params:
        out = ref_block(out, p)
    return out


# ----------------------------- main -----------------------------

if __name__ == "__main__":
    key = jax.random.PRNGKey(0)
    kx, *kl = jax.random.split(key, NUM_LAYERS + 1)

    x = jax.random.normal(kx, (N, S, E), jnp.float32)
    pe = make_pe(MAX_LEN, E)
    layer_params = [init_layer_params(k) for k in kl]
    w_slab = pack_params(layer_params)

    out = encoder_forward(x, pe, w_slab)
    out = jax.block_until_ready(out)

    out_ref = ref_encoder(x, pe, layer_params)
    np.testing.assert_allclose(np.asarray(out), np.asarray(out_ref),
                               rtol=2e-4, atol=2e-4)
    print("KERNEL_OK")
</pallas_src>

<mosaic_0001>
module attributes {stable_mosaic.version = 11 : i64} {
  func.func @encoder_kernel(%arg0: memref<16x32xf32, #tpu.memory_space<vmem>>, %arg1: memref<16x32xf32, #tpu.memory_space<vmem>>, %arg2: memref<2x200x128xf32, #tpu.memory_space<vmem>>, %arg3: memref<16x32xf32, #tpu.memory_space<vmem>>) attributes {dimension_semantics = [], scalar_prefetch = 0 : i64, scratch_operands = 0 : i64, tpu.core_type = #tpu.core_type<tc>} {
    %c0 = arith.constant 0 : index
    %c0_0 = arith.constant 0 : index
    %0 = vector.load %arg0[%c0, %c0_0] : memref<16x32xf32, #tpu.memory_space<vmem>>, vector<16x32xf32>
    %c0_1 = arith.constant 0 : index
    %c0_2 = arith.constant 0 : index
    %1 = vector.load %arg1[%c0_1, %c0_2] : memref<16x32xf32, #tpu.memory_space<vmem>>, vector<16x32xf32>
    %2 = arith.addf %0, %1 : vector<16x32xf32>
    %c0_3 = arith.constant 0 : index
    %c0_4 = arith.constant 0 : index
    %c0_5 = arith.constant 0 : index
    %3 = vector.load %arg2[%c0_3, %c0_4, %c0_5] : memref<2x200x128xf32, #tpu.memory_space<vmem>>, vector<1x32x128xf32>
    %4 = vector.shape_cast %3 : vector<1x32x128xf32> to vector<32x128xf32>
    %c0_6 = arith.constant 0 : index
    %c32 = arith.constant 32 : index
    %c0_7 = arith.constant 0 : index
    %5 = vector.load %arg2[%c0_6, %c32, %c0_7] : memref<2x200x128xf32, #tpu.memory_space<vmem>>, vector<1x32x128xf32>
    %6 = vector.shape_cast %5 : vector<1x32x128xf32> to vector<32x128xf32>
    %c0_8 = arith.constant 0 : index
    %c64 = arith.constant 64 : index
    %c0_9 = arith.constant 0 : index
    %7 = vector.load %arg2[%c0_8, %c64, %c0_9] : memref<2x200x128xf32, #tpu.memory_space<vmem>>, vector<1x128x32xf32>
    %8 = vector.shape_cast %7 : vector<1x128x32xf32> to vector<128x32xf32>
    %9 = vector.extract_strided_slice %4 {offsets = [0, 96], sizes = [32, 32], strides = [1, 1]} : vector<32x128xf32> to vector<32x32xf32>
    %c0_10 = arith.constant 0 : index
    %c192 = arith.constant 192 : index
    %c0_11 = arith.constant 0 : index
    %10 = vector.load %arg2[%c0_10, %c192, %c0_11] : memref<2x200x128xf32, #tpu.memory_space<vmem>>, vector<1x1x32xf32>
    %11 = vector.shape_cast %10 : vector<1x1x32xf32> to vector<1x32xf32>
    %c0_12 = arith.constant 0 : index
    %c193 = arith.constant 193 : index
    %c0_13 = arith.constant 0 : index
    %12 = vector.load %arg2[%c0_12, %c193, %c0_13] : memref<2x200x128xf32, #tpu.memory_space<vmem>>, vector<1x1x32xf32>
    %13 = vector.shape_cast %12 : vector<1x1x32xf32> to vector<1x32xf32>
    %c0_14 = arith.constant 0 : index
    %c194 = arith.constant 194 : index
    %c0_15 = arith.constant 0 : index
    %14 = vector.load %arg2[%c0_14, %c194, %c0_15] : memref<2x200x128xf32, #tpu.memory_space<vmem>>, vector<1x1x32xf32>
    %15 = vector.shape_cast %14 : vector<1x1x32xf32> to vector<1x32xf32>
    %c0_16 = arith.constant 0 : index
    %c195 = arith.constant 195 : index
    %c0_17 = arith.constant 0 : index
    %16 = vector.load %arg2[%c0_16, %c195, %c0_17] : memref<2x200x128xf32, #tpu.memory_space<vmem>>, vector<1x1x128xf32>
    %17 = vector.shape_cast %16 : vector<1x1x128xf32> to vector<1x128xf32>
    %c0_18 = arith.constant 0 : index
    %c196 = arith.constant 196 : index
    %c0_19 = arith.constant 0 : index
    %18 = vector.load %arg2[%c0_18, %c196, %c0_19] : memref<2x200x128xf32, #tpu.memory_space<vmem>>, vector<1x1x32xf32>
    %19 = vector.shape_cast %18 : vector<1x1x32xf32> to vector<1x32xf32>
    %c0_20 = arith.constant 0 : index
    %c197 = arith.constant 197 : index
    %c0_21 = arith.constant 0 : index
    %20 = vector.load %arg2[%c0_20, %c197, %c0_21] : memref<2x200x128xf32, #tpu.memory_space<vmem>>, vector<1x1x32xf32>
    %21 = vector.shape_cast %20 : vector<1x1x32xf32> to vector<1x32xf32>
    %c0_22 = arith.constant 0 : index
    %c198 = arith.constant 198 : index
    %c0_23 = arith.constant 0 : index
    %22 = vector.load %arg2[%c0_22, %c198, %c0_23] : memref<2x200x128xf32, #tpu.memory_space<vmem>>, vector<1x1x32xf32>
    %23 = vector.shape_cast %22 : vector<1x1x32xf32> to vector<1x32xf32>
    %cst = arith.constant dense<0.000000e+00> : vector<16x128xf32>
    %24 = tpu.matmul %2, %4, %cst {dimension_numbers = #tpu.dot_dimension_numbers<[1], [0], [0], [1], [0, 0, 1, 1], [], []>} : vector<16x32xf32>, vector<32x128xf32>, vector<16x128xf32> -> vector<16x128xf32>
    %25 = vector.extract_strided_slice %24 {offsets = [0, 0], sizes = [8, 8], strides = [1, 1]} : vector<16x128xf32> to vector<8x8xf32>
    %26 = vector.extract_strided_slice %24 {offsets = [0, 32], sizes = [8, 8], strides = [1, 1]} : vector<16x128xf32> to vector<8x8xf32>
    %27 = vector.extract_strided_slice %24 {offsets = [0, 64], sizes = [8, 8], strides = [1, 1]} : vector<16x128xf32> to vector<8x8xf32>
    %28 = tpu.transpose %26, [1, 0] : vector<8x8xf32> -> vector<8x8xf32>
    %cst_24 = arith.constant dense<0.000000e+00> : vector<8x8xf32>
    %29 = tpu.matmul %25, %28, %cst_24 {dimension_numbers = #tpu.dot_dimension_numbers<[1], [0], [0], [1], [0, 0, 1, 1], [], []>} : vector<8x8xf32>, vector<8x8xf32>, vector<8x8xf32> -> vector<8x8xf32>
    %cst_25 = arith.constant dense<0xFF800000> : vector<8xf32>
    %30 = vector.multi_reduction <maximumf>, %29, %cst_25 [1] : vector<8x8xf32> to vector<8xf32>
    %31 = vector.shape_cast %30 : vector<8xf32> to vector<8x1xf32>
    %32 = vector.broadcast %31 : vector<8x1xf32> to vector<8x8xf32>
    %33 = arith.subf %29, %32 : vector<8x8xf32>
    %34 = math.exp %33 : vector<8x8xf32>
    %cst_26 = arith.constant dense<0.000000e+00> : vector<8xf32>
    %35 = vector.multi_reduction <add>, %34, %cst_26 [1] : vector<8x8xf32> to vector<8xf32>
    %36 = vector.shape_cast %35 : vector<8xf32> to vector<8x1xf32>
    %37 = tpu.reciprocal %36 : vector<8x1xf32> -> vector<8x1xf32>
    %38 = vector.broadcast %37 : vector<8x1xf32> to vector<8x8xf32>
    %39 = arith.mulf %34, %38 : vector<8x8xf32>
    %cst_27 = arith.constant dense<0.000000e+00> : vector<8x8xf32>
    %40 = tpu.matmul %39, %27, %cst_27 {dimension_numbers = #tpu.dot_dimension_numbers<[1], [0], [0], [1], [0, 0, 1, 1], [], []>} : vector<8x8xf32>, vector<8x8xf32>, vector<8x8xf32> -> vector<8x8xf32>
    %41 = vector.extract_strided_slice %24 {offsets = [0, 8], sizes = [8, 8], strides = [1, 1]} : vector<16x128xf32> to vector<8x8xf32>
    %42 = vector.extract_strided_slice %24 {offsets = [0, 40], sizes = [8, 8], strides = [1, 1]} : vector<16x128xf32> to vector<8x8xf32>
    %43 = vector.extract_strided_slice %24 {offsets = [0, 72], sizes = [8, 8], strides = [1, 1]} : vector<16x128xf32> to vector<8x8xf32>
    %44 = tpu.transpose %42, [1, 0] : vector<8x8xf32> -> vector<8x8xf32>
    %cst_28 = arith.constant dense<0.000000e+00> : vector<8x8xf32>
    %45 = tpu.matmul %41, %44, %cst_28 {dimension_numbers = #tpu.dot_dimension_numbers<[1], [0], [0], [1], [0, 0, 1, 1], [], []>} : vector<8x8xf32>, vector<8x8xf32>, vector<8x8xf32> -> vector<8x8xf32>
    %cst_29 = arith.constant dense<0xFF800000> : vector<8xf32>
    %46 = vector.multi_reduction <maximumf>, %45, %cst_29 [1] : vector<8x8xf32> to vector<8xf32>
    %47 = vector.shape_cast %46 : vector<8xf32> to vector<8x1xf32>
    %48 = vector.broadcast %47 : vector<8x1xf32> to vector<8x8xf32>
    %49 = arith.subf %45, %48 : vector<8x8xf32>
    %50 = math.exp %49 : vector<8x8xf32>
    %cst_30 = arith.constant dense<0.000000e+00> : vector<8xf32>
    %51 = vector.multi_reduction <add>, %50, %cst_30 [1] : vector<8x8xf32> to vector<8xf32>
    %52 = vector.shape_cast %51 : vector<8xf32> to vector<8x1xf32>
    %53 = tpu.reciprocal %52 : vector<8x1xf32> -> vector<8x1xf32>
    %54 = vector.broadcast %53 : vector<8x1xf32> to vector<8x8xf32>
    %55 = arith.mulf %50, %54 : vector<8x8xf32>
    %cst_31 = arith.constant dense<0.000000e+00> : vector<8x8xf32>
    %56 = tpu.matmul %55, %43, %cst_31 {dimension_numbers = #tpu.dot_dimension_numbers<[1], [0], [0], [1], [0, 0, 1, 1], [], []>} : vector<8x8xf32>, vector<8x8xf32>, vector<8x8xf32> -> vector<8x8xf32>
    %57 = vector.extract_strided_slice %24 {offsets = [0, 16], sizes = [8, 8], strides = [1, 1]} : vector<16x128xf32> to vector<8x8xf32>
    %58 = vector.extract_strided_slice %24 {offsets = [0, 48], sizes = [8, 8], strides = [1, 1]} : vector<16x128xf32> to vector<8x8xf32>
    %59 = vector.extract_strided_slice %24 {offsets = [0, 80], sizes = [8, 8], strides = [1, 1]} : vector<16x128xf32> to vector<8x8xf32>
    %60 = tpu.transpose %58, [1, 0] : vector<8x8xf32> -> vector<8x8xf32>
    %cst_32 = arith.constant dense<0.000000e+00> : vector<8x8xf32>
    %61 = tpu.matmul %57, %60, %cst_32 {dimension_numbers = #tpu.dot_dimension_numbers<[1], [0], [0], [1], [0, 0, 1, 1], [], []>} : vector<8x8xf32>, vector<8x8xf32>, vector<8x8xf32> -> vector<8x8xf32>
    %cst_33 = arith.constant dense<0xFF800000> : vector<8xf32>
    %62 = vector.multi_reduction <maximumf>, %61, %cst_33 [1] : vector<8x8xf32> to vector<8xf32>
    %63 = vector.shape_cast %62 : vector<8xf32> to vector<8x1xf32>
    %64 = vector.broadcast %63 : vector<8x1xf32> to vector<8x8xf32>
    %65 = arith.subf %61, %64 : vector<8x8xf32>
    %66 = math.exp %65 : vector<8x8xf32>
    %cst_34 = arith.constant dense<0.000000e+00> : vector<8xf32>
    %67 = vector.multi_reduction <add>, %66, %cst_34 [1] : vector<8x8xf32> to vector<8xf32>
    %68 = vector.shape_cast %67 : vector<8xf32> to vector<8x1xf32>
    %69 = tpu.reciprocal %68 : vector<8x1xf32> -> vector<8x1xf32>
    %70 = vector.broadcast %69 : vector<8x1xf32> to vector<8x8xf32>
    %71 = arith.mulf %66, %70 : vector<8x8xf32>
    %cst_35 = arith.constant dense<0.000000e+00> : vector<8x8xf32>
    %72 = tpu.matmul %71, %59, %cst_35 {dimension_numbers = #tpu.dot_dimension_numbers<[1], [0], [0], [1], [0, 0, 1, 1], [], []>} : vector<8x8xf32>, vector<8x8xf32>, vector<8x8xf32> -> vector<8x8xf32>
    %73 = vector.extract_strided_slice %24 {offsets = [0, 24], sizes = [8, 8], strides = [1, 1]} : vector<16x128xf32> to vector<8x8xf32>
    %74 = vector.extract_strided_slice %24 {offsets = [0, 56], sizes = [8, 8], strides = [1, 1]} : vector<16x128xf32> to vector<8x8xf32>
    %75 = vector.extract_strided_slice %24 {offsets = [0, 88], sizes = [8, 8], strides = [1, 1]} : vector<16x128xf32> to vector<8x8xf32>
    %76 = tpu.transpose %74, [1, 0] : vector<8x8xf32> -> vector<8x8xf32>
    %cst_36 = arith.constant dense<0.000000e+00> : vector<8x8xf32>
    %77 = tpu.matmul %73, %76, %cst_36 {dimension_numbers = #tpu.dot_dimension_numbers<[1], [0], [0], [1], [0, 0, 1, 1], [], []>} : vector<8x8xf32>, vector<8x8xf32>, vector<8x8xf32> -> vector<8x8xf32>
    %cst_37 = arith.constant dense<0xFF800000> : vector<8xf32>
    %78 = vector.multi_reduction <maximumf>, %77, %cst_37 [1] : vector<8x8xf32> to vector<8xf32>
    %79 = vector.shape_cast %78 : vector<8xf32> to vector<8x1xf32>
    %80 = vector.broadcast %79 : vector<8x1xf32> to vector<8x8xf32>
    %81 = arith.subf %77, %80 : vector<8x8xf32>
    %82 = math.exp %81 : vector<8x8xf32>
    %cst_38 = arith.constant dense<0.000000e+00> : vector<8xf32>
    %83 = vector.multi_reduction <add>, %82, %cst_38 [1] : vector<8x8xf32> to vector<8xf32>
    %84 = vector.shape_cast %83 : vector<8xf32> to vector<8x1xf32>
    %85 = tpu.reciprocal %84 : vector<8x1xf32> -> vector<8x1xf32>
    %86 = vector.broadcast %85 : vector<8x1xf32> to vector<8x8xf32>
    %87 = arith.mulf %82, %86 : vector<8x8xf32>
    %cst_39 = arith.constant dense<0.000000e+00> : vector<8x8xf32>
    %88 = tpu.matmul %87, %75, %cst_39 {dimension_numbers = #tpu.dot_dimension_numbers<[1], [0], [0], [1], [0, 0, 1, 1], [], []>} : vector<8x8xf32>, vector<8x8xf32>, vector<8x8xf32> -> vector<8x8xf32>
    %89 = tpu.concatenate %40, %56, %72, %88 in 1 : vector<8x8xf32>, vector<8x8xf32>, vector<8x8xf32>, vector<8x8xf32> -> vector<8x32xf32>
    %90 = vector.extract_strided_slice %24 {offsets = [8, 0], sizes = [8, 8], strides = [1, 1]} : vector<16x128xf32> to vector<8x8xf32>
    %91 = vector.extract_strided_slice %24 {offsets = [8, 32], sizes = [8, 8], strides = [1, 1]} : vector<16x128xf32> to vector<8x8xf32>
    %92 = vector.extract_strided_slice %24 {offsets = [8, 64], sizes = [8, 8], strides = [1, 1]} : vector<16x128xf32> to vector<8x8xf32>
    %93 = tpu.transpose %91, [1, 0] : vector<8x8xf32> -> vector<8x8xf32>
    %cst_40 = arith.constant dense<0.000000e+00> : vector<8x8xf32>
    %94 = tpu.matmul %90, %93, %cst_40 {dimension_numbers = #tpu.dot_dimension_numbers<[1], [0], [0], [1], [0, 0, 1, 1], [], []>} : vector<8x8xf32>, vector<8x8xf32>, vector<8x8xf32> -> vector<8x8xf32>
    %cst_41 = arith.constant dense<0xFF800000> : vector<8xf32>
    %95 = vector.multi_reduction <maximumf>, %94, %cst_41 [1] : vector<8x8xf32> to vector<8xf32>
    %96 = vector.shape_cast %95 : vector<8xf32> to vector<8x1xf32>
    %97 = vector.broadcast %96 : vector<8x1xf32> to vector<8x8xf32>
    %98 = arith.subf %94, %97 : vector<8x8xf32>
    %99 = math.exp %98 : vector<8x8xf32>
    %cst_42 = arith.constant dense<0.000000e+00> : vector<8xf32>
    %100 = vector.multi_reduction <add>, %99, %cst_42 [1] : vector<8x8xf32> to vector<8xf32>
    %101 = vector.shape_cast %100 : vector<8xf32> to vector<8x1xf32>
    %102 = tpu.reciprocal %101 : vector<8x1xf32> -> vector<8x1xf32>
    %103 = vector.broadcast %102 : vector<8x1xf32> to vector<8x8xf32>
    %104 = arith.mulf %99, %103 : vector<8x8xf32>
    %cst_43 = arith.constant dense<0.000000e+00> : vector<8x8xf32>
    %105 = tpu.matmul %104, %92, %cst_43 {dimension_numbers = #tpu.dot_dimension_numbers<[1], [0], [0], [1], [0, 0, 1, 1], [], []>} : vector<8x8xf32>, vector<8x8xf32>, vector<8x8xf32> -> vector<8x8xf32>
    %106 = vector.extract_strided_slice %24 {offsets = [8, 8], sizes = [8, 8], strides = [1, 1]} : vector<16x128xf32> to vector<8x8xf32>
    %107 = vector.extract_strided_slice %24 {offsets = [8, 40], sizes = [8, 8], strides = [1, 1]} : vector<16x128xf32> to vector<8x8xf32>
    %108 = vector.extract_strided_slice %24 {offsets = [8, 72], sizes = [8, 8], strides = [1, 1]} : vector<16x128xf32> to vector<8x8xf32>
    %109 = tpu.transpose %107, [1, 0] : vector<8x8xf32> -> vector<8x8xf32>
    %cst_44 = arith.constant dense<0.000000e+00> : vector<8x8xf32>
    %110 = tpu.matmul %106, %109, %cst_44 {dimension_numbers = #tpu.dot_dimension_numbers<[1], [0], [0], [1], [0, 0, 1, 1], [], []>} : vector<8x8xf32>, vector<8x8xf32>, vector<8x8xf32> -> vector<8x8xf32>
    %cst_45 = arith.constant dense<0xFF800000> : vector<8xf32>
    %111 = vector.multi_reduction <maximumf>, %110, %cst_45 [1] : vector<8x8xf32> to vector<8xf32>
    %112 = vector.shape_cast %111 : vector<8xf32> to vector<8x1xf32>
    %113 = vector.broadcast %112 : vector<8x1xf32> to vector<8x8xf32>
    %114 = arith.subf %110, %113 : vector<8x8xf32>
    %115 = math.exp %114 : vector<8x8xf32>
    %cst_46 = arith.constant dense<0.000000e+00> : vector<8xf32>
    %116 = vector.multi_reduction <add>, %115, %cst_46 [1] : vector<8x8xf32> to vector<8xf32>
    %117 = vector.shape_cast %116 : vector<8xf32> to vector<8x1xf32>
    %118 = tpu.reciprocal %117 : vector<8x1xf32> -> vector<8x1xf32>
    %119 = vector.broadcast %118 : vector<8x1xf32> to vector<8x8xf32>
    %120 = arith.mulf %115, %119 : vector<8x8xf32>
    %cst_47 = arith.constant dense<0.000000e+00> : vector<8x8xf32>
    %121 = tpu.matmul %120, %108, %cst_47 {dimension_numbers = #tpu.dot_dimension_numbers<[1], [0], [0], [1], [0, 0, 1, 1], [], []>} : vector<8x8xf32>, vector<8x8xf32>, vector<8x8xf32> -> vector<8x8xf32>
    %122 = vector.extract_strided_slice %24 {offsets = [8, 16], sizes = [8, 8], strides = [1, 1]} : vector<16x128xf32> to vector<8x8xf32>
    %123 = vector.extract_strided_slice %24 {offsets = [8, 48], sizes = [8, 8], strides = [1, 1]} : vector<16x128xf32> to vector<8x8xf32>
    %124 = vector.extract_strided_slice %24 {offsets = [8, 80], sizes = [8, 8], strides = [1, 1]} : vector<16x128xf32> to vector<8x8xf32>
    %125 = tpu.transpose %123, [1, 0] : vector<8x8xf32> -> vector<8x8xf32>
    %cst_48 = arith.constant dense<0.000000e+00> : vector<8x8xf32>
    %126 = tpu.matmul %122, %125, %cst_48 {dimension_numbers = #tpu.dot_dimension_numbers<[1], [0], [0], [1], [0, 0, 1, 1], [], []>} : vector<8x8xf32>, vector<8x8xf32>, vector<8x8xf32> -> vector<8x8xf32>
    %cst_49 = arith.constant dense<0xFF800000> : vector<8xf32>
    %127 = vector.multi_reduction <maximumf>, %126, %cst_49 [1] : vector<8x8xf32> to vector<8xf32>
    %128 = vector.shape_cast %127 : vector<8xf32> to vector<8x1xf32>
    %129 = vector.broadcast %128 : vector<8x1xf32> to vector<8x8xf32>
    %130 = arith.subf %126, %129 : vector<8x8xf32>
    %131 = math.exp %130 : vector<8x8xf32>
    %cst_50 = arith.constant dense<0.000000e+00> : vector<8xf32>
    %132 = vector.multi_reduction <add>, %131, %cst_50 [1] : vector<8x8xf32> to vector<8xf32>
    %133 = vector.shape_cast %132 : vector<8xf32> to vector<8x1xf32>
    %134 = tpu.reciprocal %133 : vector<8x1xf32> -> vector<8x1xf32>
    %135 = vector.broadcast %134 : vector<8x1xf32> to vector<8x8xf32>
    %136 = arith.mulf %131, %135 : vector<8x8xf32>
    %cst_51 = arith.constant dense<0.000000e+00> : vector<8x8xf32>
    %137 = tpu.matmul %136, %124, %cst_51 {dimension_numbers = #tpu.dot_dimension_numbers<[1], [0], [0], [1], [0, 0, 1, 1], [], []>} : vector<8x8xf32>, vector<8x8xf32>, vector<8x8xf32> -> vector<8x8xf32>
    %138 = vector.extract_strided_slice %24 {offsets = [8, 24], sizes = [8, 8], strides = [1, 1]} : vector<16x128xf32> to vector<8x8xf32>
    %139 = vector.extract_strided_slice %24 {offsets = [8, 56], sizes = [8, 8], strides = [1, 1]} : vector<16x128xf32> to vector<8x8xf32>
    %140 = vector.extract_strided_slice %24 {offsets = [8, 88], sizes = [8, 8], strides = [1, 1]} : vector<16x128xf32> to vector<8x8xf32>
    %141 = tpu.transpose %139, [1, 0] : vector<8x8xf32> -> vector<8x8xf32>
    %cst_52 = arith.constant dense<0.000000e+00> : vector<8x8xf32>
    %142 = tpu.matmul %138, %141, %cst_52 {dimension_numbers = #tpu.dot_dimension_numbers<[1], [0], [0], [1], [0, 0, 1, 1], [], []>} : vector<8x8xf32>, vector<8x8xf32>, vector<8x8xf32> -> vector<8x8xf32>
    %cst_53 = arith.constant dense<0xFF800000> : vector<8xf32>
    %143 = vector.multi_reduction <maximumf>, %142, %cst_53 [1] : vector<8x8xf32> to vector<8xf32>
    %144 = vector.shape_cast %143 : vector<8xf32> to vector<8x1xf32>
    %145 = vector.broadcast %144 : vector<8x1xf32> to vector<8x8xf32>
    %146 = arith.subf %142, %145 : vector<8x8xf32>
    %147 = math.exp %146 : vector<8x8xf32>
    %cst_54 = arith.constant dense<0.000000e+00> : vector<8xf32>
    %148 = vector.multi_reduction <add>, %147, %cst_54 [1] : vector<8x8xf32> to vector<8xf32>
    %149 = vector.shape_cast %148 : vector<8xf32> to vector<8x1xf32>
    %150 = tpu.reciprocal %149 : vector<8x1xf32> -> vector<8x1xf32>
    %151 = vector.broadcast %150 : vector<8x1xf32> to vector<8x8xf32>
    %152 = arith.mulf %147, %151 : vector<8x8xf32>
    %cst_55 = arith.constant dense<0.000000e+00> : vector<8x8xf32>
    %153 = tpu.matmul %152, %140, %cst_55 {dimension_numbers = #tpu.dot_dimension_numbers<[1], [0], [0], [1], [0, 0, 1, 1], [], []>} : vector<8x8xf32>, vector<8x8xf32>, vector<8x8xf32> -> vector<8x8xf32>
    %154 = tpu.concatenate %105, %121, %137, %153 in 1 : vector<8x8xf32>, vector<8x8xf32>, vector<8x8xf32>, vector<8x8xf32> -> vector<8x32xf32>
    %155 = tpu.concatenate %89, %154 in 0 : vector<8x32xf32>, vector<8x32xf32> -> vector<16x32xf32>
    %cst_56 = arith.constant dense<0.000000e+00> : vector<16x32xf32>
    %156 = tpu.matmul %155, %9, %cst_56 {dimension_numbers = #tpu.dot_dimension_numbers<[1], [0], [0], [1], [0, 0, 1, 1], [], []>} : vector<16x32xf32>, vector<32x32xf32>, vector<16x32xf32> -> vector<16x32xf32>
    %157 = vector.broadcast %11 : vector<1x32xf32> to vector<16x32xf32>
    %158 = arith.addf %156, %157 : vector<16x32xf32>
    %159 = arith.mulf %158, %2 : vector<16x32xf32>
    %cst_57 = arith.constant dense<0.000000e+00> : vector<16xf32>
    %160 = vector.multi_reduction <add>, %159, %cst_57 [1] : vector<16x32xf32> to vector<16xf32>
    %161 = vector.shape_cast %160 : vector<16xf32> to vector<16x1xf32>
    %cst_58 = arith.constant 3.200000e+01 : f32
    %162 = vector.broadcast %cst_58 : f32 to vector<16x1xf32>
    %163 = arith.divf %161, %162 : vector<16x1xf32>
    %164 = vector.broadcast %163 : vector<16x1xf32> to vector<16x32xf32>
    %165 = arith.subf %159, %164 : vector<16x32xf32>
    %166 = arith.mulf %165, %165 : vector<16x32xf32>
    %cst_59 = arith.constant dense<0.000000e+00> : vector<16xf32>
    %167 = vector.multi_reduction <add>, %166, %cst_59 [1] : vector<16x32xf32> to vector<16xf32>
    %168 = vector.shape_cast %167 : vector<16xf32> to vector<16x1xf32>
    %cst_60 = arith.constant 3.200000e+01 : f32
    %169 = vector.broadcast %cst_60 : f32 to vector<16x1xf32>
    %170 = arith.divf %168, %169 : vector<16x1xf32>
    %171 = vector.broadcast %163 : vector<16x1xf32> to vector<16x32xf32>
    %172 = arith.subf %159, %171 : vector<16x32xf32>
    %cst_61 = arith.constant 9.99999974E-6 : f32
    %173 = vector.broadcast %cst_61 : f32 to vector<16x1xf32>
    %174 = arith.addf %170, %173 : vector<16x1xf32>
    %175 = math.rsqrt %174 : vector<16x1xf32>
    %176 = vector.broadcast %175 : vector<16x1xf32> to vector<16x32xf32>
    %177 = arith.mulf %172, %176 : vector<16x32xf32>
    %178 = vector.broadcast %13 : vector<1x32xf32> to vector<16x32xf32>
    %179 = arith.mulf %177, %178 : vector<16x32xf32>
    %180 = vector.broadcast %15 : vector<1x32xf32> to vector<16x32xf32>
    %181 = arith.addf %179, %180 : vector<16x32xf32>
    %cst_62 = arith.constant dense<0.000000e+00> : vector<16x128xf32>
    %182 = tpu.matmul %181, %6, %cst_62 {dimension_numbers = #tpu.dot_dimension_numbers<[1], [0], [0], [1], [0, 0, 1, 1], [], []>} : vector<16x32xf32>, vector<32x128xf32>, vector<16x128xf32> -> vector<16x128xf32>
    %183 = vector.broadcast %17 : vector<1x128xf32> to vector<16x128xf32>
    %184 = arith.addf %182, %183 : vector<16x128xf32>
    %cst_63 = arith.constant 0.000000e+00 : f32
    %185 = vector.broadcast %cst_63 : f32 to vector<16x128xf32>
    %186 = arith.maximumf %184, %185 : vector<16x128xf32>
    %cst_64 = arith.constant dense<0.000000e+00> : vector<16x32xf32>
    %187 = tpu.matmul %186, %8, %cst_64 {dimension_numbers = #tpu.dot_dimension_numbers<[1], [0], [0], [1], [0, 0, 1, 1], [], []>} : vector<16x128xf32>, vector<128x32xf32>, vector<16x32xf32> -> vector<16x32xf32>
    %188 = vector.broadcast %19 : vector<1x32xf32> to vector<16x32xf32>
    %189 = arith.addf %187, %188 : vector<16x32xf32>
    %190 = arith.addf %189, %181 : vector<16x32xf32>
    %cst_65 = arith.constant dense<0.000000e+00> : vector<16xf32>
    %191 = vector.multi_reduction <add>, %190, %cst_65 [1] : vector<16x32xf32> to vector<16xf32>
    %192 = vector.shape_cast %191 : vector<16xf32> to vector<16x1xf32>
    %cst_66 = arith.constant 3.200000e+01 : f32
    %193 = vector.broadcast %cst_66 : f32 to vector<16x1xf32>
    %194 = arith.divf %192, %193 : vector<16x1xf32>
    %195 = vector.broadcast %194 : vector<16x1xf32> to vector<16x32xf32>
    %196 = arith.subf %190, %195 : vector<16x32xf32>
    %197 = arith.mulf %196, %196 : vector<16x32xf32>
    %cst_67 = arith.constant dense<0.000000e+00> : vector<16xf32>
    %198 = vector.multi_reduction <add>, %197, %cst_67 [1] : vector<16x32xf32> to vector<16xf32>
    %199 = vector.shape_cast %198 : vector<16xf32> to vector<16x1xf32>
    %cst_68 = arith.constant 3.200000e+01 : f32
    %200 = vector.broadcast %cst_68 : f32 to vector<16x1xf32>
    %201 = arith.divf %199, %200 : vector<16x1xf32>
    %202 = vector.broadcast %194 : vector<16x1xf32> to vector<16x32xf32>
    %203 = arith.subf %190, %202 : vector<16x32xf32>
    %cst_69 = arith.constant 9.99999974E-6 : f32
    %204 = vector.broadcast %cst_69 : f32 to vector<16x1xf32>
    %205 = arith.addf %201, %204 : vector<16x1xf32>
    %206 = math.rsqrt %205 : vector<16x1xf32>
    %207 = vector.broadcast %206 : vector<16x1xf32> to vector<16x32xf32>
    %208 = arith.mulf %203, %207 : vector<16x32xf32>
    %209 = vector.broadcast %21 : vector<1x32xf32> to vector<16x32xf32>
    %210 = arith.mulf %208, %209 : vector<16x32xf32>
    %211 = vector.broadcast %23 : vector<1x32xf32> to vector<16x32xf32>
    %212 = arith.addf %210, %211 : vector<16x32xf32>
    %c1 = arith.constant 1 : index
    %c0_70 = arith.constant 0 : index
    %c0_71 = arith.constant 0 : index
    %213 = vector.load %arg2[%c1, %c0_70, %c0_71] : memref<2x200x128xf32, #tpu.memory_space<vmem>>, vector<1x32x128xf32>
    %214 = vector.shape_cast %213 : vector<1x32x128xf32> to vector<32x128xf32>
    %c1_72 = arith.constant 1 : index
    %c32_73 = arith.constant 32 : index
    %c0_74 = arith.constant 0 : index
    %215 = vector.load %arg2[%c1_72, %c32_73, %c0_74] : memref<2x200x128xf32, #tpu.memory_space<vmem>>, vector<1x32x128xf32>
    %216 = vector.shape_cast %215 : vector<1x32x128xf32> to vector<32x128xf32>
    %c1_75 = arith.constant 1 : index
    %c64_76 = arith.constant 64 : index
    %c0_77 = arith.constant 0 : index
    %217 = vector.load %arg2[%c1_75, %c64_76, %c0_77] : memref<2x200x128xf32, #tpu.memory_space<vmem>>, vector<1x128x32xf32>
    %218 = vector.shape_cast %217 : vector<1x128x32xf32> to vector<128x32xf32>
    %219 = vector.extract_strided_slice %214 {offsets = [0, 96], sizes = [32, 32], strides = [1, 1]} : vector<32x128xf32> to vector<32x32xf32>
    %c1_78 = arith.constant 1 : index
    %c192_79 = arith.constant 192 : index
    %c0_80 = arith.constant 0 : index
    %220 = vector.load %arg2[%c1_78, %c192_79, %c0_80] : memref<2x200x128xf32, #tpu.memory_space<vmem>>, vector<1x1x32xf32>
    %221 = vector.shape_cast %220 : vector<1x1x32xf32> to vector<1x32xf32>
    %c1_81 = arith.constant 1 : index
    %c193_82 = arith.constant 193 : index
    %c0_83 = arith.constant 0 : index
    %222 = vector.load %arg2[%c1_81, %c193_82, %c0_83] : memref<2x200x128xf32, #tpu.memory_space<vmem>>, vector<1x1x32xf32>
    %223 = vector.shape_cast %222 : vector<1x1x32xf32> to vector<1x32xf32>
    %c1_84 = arith.constant 1 : index
    %c194_85 = arith.constant 194 : index
    %c0_86 = arith.constant 0 : index
    %224 = vector.load %arg2[%c1_84, %c194_85, %c0_86] : memref<2x200x128xf32, #tpu.memory_space<vmem>>, vector<1x1x32xf32>
    %225 = vector.shape_cast %224 : vector<1x1x32xf32> to vector<1x32xf32>
    %c1_87 = arith.constant 1 : index
    %c195_88 = arith.constant 195 : index
    %c0_89 = arith.constant 0 : index
    %226 = vector.load %arg2[%c1_87, %c195_88, %c0_89] : memref<2x200x128xf32, #tpu.memory_space<vmem>>, vector<1x1x128xf32>
    %227 = vector.shape_cast %226 : vector<1x1x128xf32> to vector<1x128xf32>
    %c1_90 = arith.constant 1 : index
    %c196_91 = arith.constant 196 : index
    %c0_92 = arith.constant 0 : index
    %228 = vector.load %arg2[%c1_90, %c196_91, %c0_92] : memref<2x200x128xf32, #tpu.memory_space<vmem>>, vector<1x1x32xf32>
    %229 = vector.shape_cast %228 : vector<1x1x32xf32> to vector<1x32xf32>
    %c1_93 = arith.constant 1 : index
    %c197_94 = arith.constant 197 : index
    %c0_95 = arith.constant 0 : index
    %230 = vector.load %arg2[%c1_93, %c197_94, %c0_95] : memref<2x200x128xf32, #tpu.memory_space<vmem>>, vector<1x1x32xf32>
    %231 = vector.shape_cast %230 : vector<1x1x32xf32> to vector<1x32xf32>
    %c1_96 = arith.constant 1 : index
    %c198_97 = arith.constant 198 : index
    %c0_98 = arith.constant 0 : index
    %232 = vector.load %arg2[%c1_96, %c198_97, %c0_98] : memref<2x200x128xf32, #tpu.memory_space<vmem>>, vector<1x1x32xf32>
    %233 = vector.shape_cast %232 : vector<1x1x32xf32> to vector<1x32xf32>
    %cst_99 = arith.constant dense<0.000000e+00> : vector<16x128xf32>
    %234 = tpu.matmul %212, %214, %cst_99 {dimension_numbers = #tpu.dot_dimension_numbers<[1], [0], [0], [1], [0, 0, 1, 1], [], []>} : vector<16x32xf32>, vector<32x128xf32>, vector<16x128xf32> -> vector<16x128xf32>
    %235 = vector.extract_strided_slice %234 {offsets = [0, 0], sizes = [8, 8], strides = [1, 1]} : vector<16x128xf32> to vector<8x8xf32>
    %236 = vector.extract_strided_slice %234 {offsets = [0, 32], sizes = [8, 8], strides = [1, 1]} : vector<16x128xf32> to vector<8x8xf32>
    %237 = vector.extract_strided_slice %234 {offsets = [0, 64], sizes = [8, 8], strides = [1, 1]} : vector<16x128xf32> to vector<8x8xf32>
    %238 = tpu.transpose %236, [1, 0] : vector<8x8xf32> -> vector<8x8xf32>
    %cst_100 = arith.constant dense<0.000000e+00> : vector<8x8xf32>
    %239 = tpu.matmul %235, %238, %cst_100 {dimension_numbers = #tpu.dot_dimension_numbers<[1], [0], [0], [1], [0, 0, 1, 1], [], []>} : vector<8x8xf32>, vector<8x8xf32>, vector<8x8xf32> -> vector<8x8xf32>
    %cst_101 = arith.constant dense<0xFF800000> : vector<8xf32>
    %240 = vector.multi_reduction <maximumf>, %239, %cst_101 [1] : vector<8x8xf32> to vector<8xf32>
    %241 = vector.shape_cast %240 : vector<8xf32> to vector<8x1xf32>
    %242 = vector.broadcast %241 : vector<8x1xf32> to vector<8x8xf32>
    %243 = arith.subf %239, %242 : vector<8x8xf32>
    %244 = math.exp %243 : vector<8x8xf32>
    %cst_102 = arith.constant dense<0.000000e+00> : vector<8xf32>
    %245 = vector.multi_reduction <add>, %244, %cst_102 [1] : vector<8x8xf32> to vector<8xf32>
    %246 = vector.shape_cast %245 : vector<8xf32> to vector<8x1xf32>
    %247 = tpu.reciprocal %246 : vector<8x1xf32> -> vector<8x1xf32>
    %248 = vector.broadcast %247 : vector<8x1xf32> to vector<8x8xf32>
    %249 = arith.mulf %244, %248 : vector<8x8xf32>
    %cst_103 = arith.constant dense<0.000000e+00> : vector<8x8xf32>
    %250 = tpu.matmul %249, %237, %cst_103 {dimension_numbers = #tpu.dot_dimension_numbers<[1], [0], [0], [1], [0, 0, 1, 1], [], []>} : vector<8x8xf32>, vector<8x8xf32>, vector<8x8xf32> -> vector<8x8xf32>
    %251 = vector.extract_strided_slice %234 {offsets = [0, 8], sizes = [8, 8], strides = [1, 1]} : vector<16x128xf32> to vector<8x8xf32>
    %252 = vector.extract_strided_slice %234 {offsets = [0, 40], sizes = [8, 8], strides = [1, 1]} : vector<16x128xf32> to vector<8x8xf32>
    %253 = vector.extract_strided_slice %234 {offsets = [0, 72], sizes = [8, 8], strides = [1, 1]} : vector<16x128xf32> to vector<8x8xf32>
    %254 = tpu.transpose %252, [1, 0] : vector<8x8xf32> -> vector<8x8xf32>
    %cst_104 = arith.constant dense<0.000000e+00> : vector<8x8xf32>
    %255 = tpu.matmul %251, %254, %cst_104 {dimension_numbers = #tpu.dot_dimension_numbers<[1], [0], [0], [1], [0, 0, 1, 1], [], []>} : vector<8x8xf32>, vector<8x8xf32>, vector<8x8xf32> -> vector<8x8xf32>
    %cst_105 = arith.constant dense<0xFF800000> : vector<8xf32>
    %256 = vector.multi_reduction <maximumf>, %255, %cst_105 [1] : vector<8x8xf32> to vector<8xf32>
    %257 = vector.shape_cast %256 : vector<8xf32> to vector<8x1xf32>
    %258 = vector.broadcast %257 : vector<8x1xf32> to vector<8x8xf32>
    %259 = arith.subf %255, %258 : vector<8x8xf32>
    %260 = math.exp %259 : vector<8x8xf32>
    %cst_106 = arith.constant dense<0.000000e+00> : vector<8xf32>
    %261 = vector.multi_reduction <add>, %260, %cst_106 [1] : vector<8x8xf32> to vector<8xf32>
    %262 = vector.shape_cast %261 : vector<8xf32> to vector<8x1xf32>
    %263 = tpu.reciprocal %262 : vector<8x1xf32> -> vector<8x1xf32>
    %264 = vector.broadcast %263 : vector<8x1xf32> to vector<8x8xf32>
    %265 = arith.mulf %260, %264 : vector<8x8xf32>
    %cst_107 = arith.constant dense<0.000000e+00> : vector<8x8xf32>
    %266 = tpu.matmul %265, %253, %cst_107 {dimension_numbers = #tpu.dot_dimension_numbers<[1], [0], [0], [1], [0, 0, 1, 1], [], []>} : vector<8x8xf32>, vector<8x8xf32>, vector<8x8xf32> -> vector<8x8xf32>
    %267 = vector.extract_strided_slice %234 {offsets = [0, 16], sizes = [8, 8], strides = [1, 1]} : vector<16x128xf32> to vector<8x8xf32>
    %268 = vector.extract_strided_slice %234 {offsets = [0, 48], sizes = [8, 8], strides = [1, 1]} : vector<16x128xf32> to vector<8x8xf32>
    %269 = vector.extract_strided_slice %234 {offsets = [0, 80], sizes = [8, 8], strides = [1, 1]} : vector<16x128xf32> to vector<8x8xf32>
    %270 = tpu.transpose %268, [1, 0] : vector<8x8xf32> -> vector<8x8xf32>
    %cst_108 = arith.constant dense<0.000000e+00> : vector<8x8xf32>
    %271 = tpu.matmul %267, %270, %cst_108 {dimension_numbers = #tpu.dot_dimension_numbers<[1], [0], [0], [1], [0, 0, 1, 1], [], []>} : vector<8x8xf32>, vector<8x8xf32>, vector<8x8xf32> -> vector<8x8xf32>
    %cst_109 = arith.constant dense<0xFF800000> : vector<8xf32>
    %272 = vector.multi_reduction <maximumf>, %271, %cst_109 [1] : vector<8x8xf32> to vector<8xf32>
    %273 = vector.shape_cast %272 : vector<8xf32> to vector<8x1xf32>
    %274 = vector.broadcast %273 : vector<8x1xf32> to vector<8x8xf32>
    %275 = arith.subf %271, %274 : vector<8x8xf32>
    %276 = math.exp %275 : vector<8x8xf32>
    %cst_110 = arith.constant dense<0.000000e+00> : vector<8xf32>
    %277 = vector.multi_reduction <add>, %276, %cst_110 [1] : vector<8x8xf32> to vector<8xf32>
    %278 = vector.shape_cast %277 : vector<8xf32> to vector<8x1xf32>
    %279 = tpu.reciprocal %278 : vector<8x1xf32> -> vector<8x1xf32>
    %280 = vector.broadcast %279 : vector<8x1xf32> to vector<8x8xf32>
    %281 = arith.mulf %276, %280 : vector<8x8xf32>
    %cst_111 = arith.constant dense<0.000000e+00> : vector<8x8xf32>
    %282 = tpu.matmul %281, %269, %cst_111 {dimension_numbers = #tpu.dot_dimension_numbers<[1], [0], [0], [1], [0, 0, 1, 1], [], []>} : vector<8x8xf32>, vector<8x8xf32>, vector<8x8xf32> -> vector<8x8xf32>
    %283 = vector.extract_strided_slice %234 {offsets = [0, 24], sizes = [8, 8], strides = [1, 1]} : vector<16x128xf32> to vector<8x8xf32>
    %284 = vector.extract_strided_slice %234 {offsets = [0, 56], sizes = [8, 8], strides = [1, 1]} : vector<16x128xf32> to vector<8x8xf32>
    %285 = vector.extract_strided_slice %234 {offsets = [0, 88], sizes = [8, 8], strides = [1, 1]} : vector<16x128xf32> to vector<8x8xf32>
    %286 = tpu.transpose %284, [1, 0] : vector<8x8xf32> -> vector<8x8xf32>
    %cst_112 = arith.constant dense<0.000000e+00> : vector<8x8xf32>
    %287 = tpu.matmul %283, %286, %cst_112 {dimension_numbers = #tpu.dot_dimension_numbers<[1], [0], [0], [1], [0, 0, 1, 1], [], []>} : vector<8x8xf32>, vector<8x8xf32>, vector<8x8xf32> -> vector<8x8xf32>
    %cst_113 = arith.constant dense<0xFF800000> : vector<8xf32>
    %288 = vector.multi_reduction <maximumf>, %287, %cst_113 [1] : vector<8x8xf32> to vector<8xf32>
    %289 = vector.shape_cast %288 : vector<8xf32> to vector<8x1xf32>
    %290 = vector.broadcast %289 : vector<8x1xf32> to vector<8x8xf32>
    %291 = arith.subf %287, %290 : vector<8x8xf32>
    %292 = math.exp %291 : vector<8x8xf32>
    %cst_114 = arith.constant dense<0.000000e+00> : vector<8xf32>
    %293 = vector.multi_reduction <add>, %292, %cst_114 [1] : vector<8x8xf32> to vector<8xf32>
    %294 = vector.shape_cast %293 : vector<8xf32> to vector<8x1xf32>
    %295 = tpu.reciprocal %294 : vector<8x1xf32> -> vector<8x1xf32>
    %296 = vector.broadcast %295 : vector<8x1xf32> to vector<8x8xf32>
    %297 = arith.mulf %292, %296 : vector<8x8xf32>
    %cst_115 = arith.constant dense<0.000000e+00> : vector<8x8xf32>
    %298 = tpu.matmul %297, %285, %cst_115 {dimension_numbers = #tpu.dot_dimension_numbers<[1], [0], [0], [1], [0, 0, 1, 1], [], []>} : vector<8x8xf32>, vector<8x8xf32>, vector<8x8xf32> -> vector<8x8xf32>
    %299 = tpu.concatenate %250, %266, %282, %298 in 1 : vector<8x8xf32>, vector<8x8xf32>, vector<8x8xf32>, vector<8x8xf32> -> vector<8x32xf32>
    %300 = vector.extract_strided_slice %234 {offsets = [8, 0], sizes = [8, 8], strides = [1, 1]} : vector<16x128xf32> to vector<8x8xf32>
    %301 = vector.extract_strided_slice %234 {offsets = [8, 32], sizes = [8, 8], strides = [1, 1]} : vector<16x128xf32> to vector<8x8xf32>
    %302 = vector.extract_strided_slice %234 {offsets = [8, 64], sizes = [8, 8], strides = [1, 1]} : vector<16x128xf32> to vector<8x8xf32>
    %303 = tpu.transpose %301, [1, 0] : vector<8x8xf32> -> vector<8x8xf32>
    %cst_116 = arith.constant dense<0.000000e+00> : vector<8x8xf32>
    %304 = tpu.matmul %300, %303, %cst_116 {dimension_numbers = #tpu.dot_dimension_numbers<[1], [0], [0], [1], [0, 0, 1, 1], [], []>} : vector<8x8xf32>, vector<8x8xf32>, vector<8x8xf32> -> vector<8x8xf32>
    %cst_117 = arith.constant dense<0xFF800000> : vector<8xf32>
    %305 = vector.multi_reduction <maximumf>, %304, %cst_117 [1] : vector<8x8xf32> to vector<8xf32>
    %306 = vector.shape_cast %305 : vector<8xf32> to vector<8x1xf32>
    %307 = vector.broadcast %306 : vector<8x1xf32> to vector<8x8xf32>
    %308 = arith.subf %304, %307 : vector<8x8xf32>
    %309 = math.exp %308 : vector<8x8xf32>
    %cst_118 = arith.constant dense<0.000000e+00> : vector<8xf32>
    %310 = vector.multi_reduction <add>, %309, %cst_118 [1] : vector<8x8xf32> to vector<8xf32>
    %311 = vector.shape_cast %310 : vector<8xf32> to vector<8x1xf32>
    %312 = tpu.reciprocal %311 : vector<8x1xf32> -> vector<8x1xf32>
    %313 = vector.broadcast %312 : vector<8x1xf32> to vector<8x8xf32>
    %314 = arith.mulf %309, %313 : vector<8x8xf32>
    %cst_119 = arith.constant dense<0.000000e+00> : vector<8x8xf32>
    %315 = tpu.matmul %314, %302, %cst_119 {dimension_numbers = #tpu.dot_dimension_numbers<[1], [0], [0], [1], [0, 0, 1, 1], [], []>} : vector<8x8xf32>, vector<8x8xf32>, vector<8x8xf32> -> vector<8x8xf32>
    %316 = vector.extract_strided_slice %234 {offsets = [8, 8], sizes = [8, 8], strides = [1, 1]} : vector<16x128xf32> to vector<8x8xf32>
    %317 = vector.extract_strided_slice %234 {offsets = [8, 40], sizes = [8, 8], strides = [1, 1]} : vector<16x128xf32> to vector<8x8xf32>
    %318 = vector.extract_strided_slice %234 {offsets = [8, 72], sizes = [8, 8], strides = [1, 1]} : vector<16x128xf32> to vector<8x8xf32>
    %319 = tpu.transpose %317, [1, 0] : vector<8x8xf32> -> vector<8x8xf32>
    %cst_120 = arith.constant dense<0.000000e+00> : vector<8x8xf32>
    %320 = tpu.matmul %316, %319, %cst_120 {dimension_numbers = #tpu.dot_dimension_numbers<[1], [0], [0], [1], [0, 0, 1, 1], [], []>} : vector<8x8xf32>, vector<8x8xf32>, vector<8x8xf32> -> vector<8x8xf32>
    %cst_121 = arith.constant dense<0xFF800000> : vector<8xf32>
    %321 = vector.multi_reduction <maximumf>, %320, %cst_121 [1] : vector<8x8xf32> to vector<8xf32>
    %322 = vector.shape_cast %321 : vector<8xf32> to vector<8x1xf32>
    %323 = vector.broadcast %322 : vector<8x1xf32> to vector<8x8xf32>
    %324 = arith.subf %320, %323 : vector<8x8xf32>
    %325 = math.exp %324 : vector<8x8xf32>
    %cst_122 = arith.constant dense<0.000000e+00> : vector<8xf32>
    %326 = vector.multi_reduction <add>, %325, %cst_122 [1] : vector<8x8xf32> to vector<8xf32>
    %327 = vector.shape_cast %326 : vector<8xf32> to vector<8x1xf32>
    %328 = tpu.reciprocal %327 : vector<8x1xf32> -> vector<8x1xf32>
    %329 = vector.broadcast %328 : vector<8x1xf32> to vector<8x8xf32>
    %330 = arith.mulf %325, %329 : vector<8x8xf32>
    %cst_123 = arith.constant dense<0.000000e+00> : vector<8x8xf32>
    %331 = tpu.matmul %330, %318, %cst_123 {dimension_numbers = #tpu.dot_dimension_numbers<[1], [0], [0], [1], [0, 0, 1, 1], [], []>} : vector<8x8xf32>, vector<8x8xf32>, vector<8x8xf32> -> vector<8x8xf32>
    %332 = vector.extract_strided_slice %234 {offsets = [8, 16], sizes = [8, 8], strides = [1, 1]} : vector<16x128xf32> to vector<8x8xf32>
    %333 = vector.extract_strided_slice %234 {offsets = [8, 48], sizes = [8, 8], strides = [1, 1]} : vector<16x128xf32> to vector<8x8xf32>
    %334 = vector.extract_strided_slice %234 {offsets = [8, 80], sizes = [8, 8], strides = [1, 1]} : vector<16x128xf32> to vector<8x8xf32>
    %335 = tpu.transpose %333, [1, 0] : vector<8x8xf32> -> vector<8x8xf32>
    %cst_124 = arith.constant dense<0.000000e+00> : vector<8x8xf32>
    %336 = tpu.matmul %332, %335, %cst_124 {dimension_numbers = #tpu.dot_dimension_numbers<[1], [0], [0], [1], [0, 0, 1, 1], [], []>} : vector<8x8xf32>, vector<8x8xf32>, vector<8x8xf32> -> vector<8x8xf32>
    %cst_125 = arith.constant dense<0xFF800000> : vector<8xf32>
    %337 = vector.multi_reduction <maximumf>, %336, %cst_125 [1] : vector<8x8xf32> to vector<8xf32>
    %338 = vector.shape_cast %337 : vector<8xf32> to vector<8x1xf32>
    %339 = vector.broadcast %338 : vector<8x1xf32> to vector<8x8xf32>
    %340 = arith.subf %336, %339 : vector<8x8xf32>
    %341 = math.exp %340 : vector<8x8xf32>
    %cst_126 = arith.constant dense<0.000000e+00> : vector<8xf32>
    %342 = vector.multi_reduction <add>, %341, %cst_126 [1] : vector<8x8xf32> to vector<8xf32>
    %343 = vector.shape_cast %342 : vector<8xf32> to vector<8x1xf32>
    %344 = tpu.reciprocal %343 : vector<8x1xf32> -> vector<8x1xf32>
    %345 = vector.broadcast %344 : vector<8x1xf32> to vector<8x8xf32>
    %346 = arith.mulf %341, %345 : vector<8x8xf32>
    %cst_127 = arith.constant dense<0.000000e+00> : vector<8x8xf32>
    %347 = tpu.matmul %346, %334, %cst_127 {dimension_numbers = #tpu.dot_dimension_numbers<[1], [0], [0], [1], [0, 0, 1, 1], [], []>} : vector<8x8xf32>, vector<8x8xf32>, vector<8x8xf32> -> vector<8x8xf32>
    %348 = vector.extract_strided_slice %234 {offsets = [8, 24], sizes = [8, 8], strides = [1, 1]} : vector<16x128xf32> to vector<8x8xf32>
    %349 = vector.extract_strided_slice %234 {offsets = [8, 56], sizes = [8, 8], strides = [1, 1]} : vector<16x128xf32> to vector<8x8xf32>
    %350 = vector.extract_strided_slice %234 {offsets = [8, 88], sizes = [8, 8], strides = [1, 1]} : vector<16x128xf32> to vector<8x8xf32>
    %351 = tpu.transpose %349, [1, 0] : vector<8x8xf32> -> vector<8x8xf32>
    %cst_128 = arith.constant dense<0.000000e+00> : vector<8x8xf32>
    %352 = tpu.matmul %348, %351, %cst_128 {dimension_numbers = #tpu.dot_dimension_numbers<[1], [0], [0], [1], [0, 0, 1, 1], [], []>} : vector<8x8xf32>, vector<8x8xf32>, vector<8x8xf32> -> vector<8x8xf32>
    %cst_129 = arith.constant dense<0xFF800000> : vector<8xf32>
    %353 = vector.multi_reduction <maximumf>, %352, %cst_129 [1] : vector<8x8xf32> to vector<8xf32>
    %354 = vector.shape_cast %353 : vector<8xf32> to vector<8x1xf32>
    %355 = vector.broadcast %354 : vector<8x1xf32> to vector<8x8xf32>
    %356 = arith.subf %352, %355 : vector<8x8xf32>
    %357 = math.exp %356 : vector<8x8xf32>
    %cst_130 = arith.constant dense<0.000000e+00> : vector<8xf32>
    %358 = vector.multi_reduction <add>, %357, %cst_130 [1] : vector<8x8xf32> to vector<8xf32>
    %359 = vector.shape_cast %358 : vector<8xf32> to vector<8x1xf32>
    %360 = tpu.reciprocal %359 : vector<8x1xf32> -> vector<8x1xf32>
    %361 = vector.broadcast %360 : vector<8x1xf32> to vector<8x8xf32>
    %362 = arith.mulf %357, %361 : vector<8x8xf32>
    %cst_131 = arith.constant dense<0.000000e+00> : vector<8x8xf32>
    %363 = tpu.matmul %362, %350, %cst_131 {dimension_numbers = #tpu.dot_dimension_numbers<[1], [0], [0], [1], [0, 0, 1, 1], [], []>} : vector<8x8xf32>, vector<8x8xf32>, vector<8x8xf32> -> vector<8x8xf32>
    %364 = tpu.concatenate %315, %331, %347, %363 in 1 : vector<8x8xf32>, vector<8x8xf32>, vector<8x8xf32>, vector<8x8xf32> -> vector<8x32xf32>
    %365 = tpu.concatenate %299, %364 in 0 : vector<8x32xf32>, vector<8x32xf32> -> vector<16x32xf32>
    %cst_132 = arith.constant dense<0.000000e+00> : vector<16x32xf32>
    %366 = tpu.matmul %365, %219, %cst_132 {dimension_numbers = #tpu.dot_dimension_numbers<[1], [0], [0], [1], [0, 0, 1, 1], [], []>} : vector<16x32xf32>, vector<32x32xf32>, vector<16x32xf32> -> vector<16x32xf32>
    %367 = vector.broadcast %221 : vector<1x32xf32> to vector<16x32xf32>
    %368 = arith.addf %366, %367 : vector<16x32xf32>
    %369 = arith.mulf %368, %212 : vector<16x32xf32>
    %cst_133 = arith.constant dense<0.000000e+00> : vector<16xf32>
    %370 = vector.multi_reduction <add>, %369, %cst_133 [1] : vector<16x32xf32> to vector<16xf32>
    %371 = vector.shape_cast %370 : vector<16xf32> to vector<16x1xf32>
    %cst_134 = arith.constant 3.200000e+01 : f32
    %372 = vector.broadcast %cst_134 : f32 to vector<16x1xf32>
    %373 = arith.divf %371, %372 : vector<16x1xf32>
    %374 = vector.broadcast %373 : vector<16x1xf32> to vector<16x32xf32>
    %375 = arith.subf %369, %374 : vector<16x32xf32>
    %376 = arith.mulf %375, %375 : vector<16x32xf32>
    %cst_135 = arith.constant dense<0.000000e+00> : vector<16xf32>
    %377 = vector.multi_reduction <add>, %376, %cst_135 [1] : vector<16x32xf32> to vector<16xf32>
    %378 = vector.shape_cast %377 : vector<16xf32> to vector<16x1xf32>
    %cst_136 = arith.constant 3.200000e+01 : f32
    %379 = vector.broadcast %cst_136 : f32 to vector<16x1xf32>
    %380 = arith.divf %378, %379 : vector<16x1xf32>
    %381 = vector.broadcast %373 : vector<16x1xf32> to vector<16x32xf32>
    %382 = arith.subf %369, %381 : vector<16x32xf32>
    %cst_137 = arith.constant 9.99999974E-6 : f32
    %383 = vector.broadcast %cst_137 : f32 to vector<16x1xf32>
    %384 = arith.addf %380, %383 : vector<16x1xf32>
    %385 = math.rsqrt %384 : vector<16x1xf32>
    %386 = vector.broadcast %385 : vector<16x1xf32> to vector<16x32xf32>
    %387 = arith.mulf %382, %386 : vector<16x32xf32>
    %388 = vector.broadcast %223 : vector<1x32xf32> to vector<16x32xf32>
    %389 = arith.mulf %387, %388 : vector<16x32xf32>
    %390 = vector.broadcast %225 : vector<1x32xf32> to vector<16x32xf32>
    %391 = arith.addf %389, %390 : vector<16x32xf32>
    %cst_138 = arith.constant dense<0.000000e+00> : vector<16x128xf32>
    %392 = tpu.matmul %391, %216, %cst_138 {dimension_numbers = #tpu.dot_dimension_numbers<[1], [0], [0], [1], [0, 0, 1, 1], [], []>} : vector<16x32xf32>, vector<32x128xf32>, vector<16x128xf32> -> vector<16x128xf32>
    %393 = vector.broadcast %227 : vector<1x128xf32> to vector<16x128xf32>
    %394 = arith.addf %392, %393 : vector<16x128xf32>
    %cst_139 = arith.constant 0.000000e+00 : f32
    %395 = vector.broadcast %cst_139 : f32 to vector<16x128xf32>
    %396 = arith.maximumf %394, %395 : vector<16x128xf32>
    %cst_140 = arith.constant dense<0.000000e+00> : vector<16x32xf32>
    %397 = tpu.matmul %396, %218, %cst_140 {dimension_numbers = #tpu.dot_dimension_numbers<[1], [0], [0], [1], [0, 0, 1, 1], [], []>} : vector<16x128xf32>, vector<128x32xf32>, vector<16x32xf32> -> vector<16x32xf32>
    %398 = vector.broadcast %229 : vector<1x32xf32> to vector<16x32xf32>
    %399 = arith.addf %397, %398 : vector<16x32xf32>
    %400 = arith.addf %399, %391 : vector<16x32xf32>
    %cst_141 = arith.constant dense<0.000000e+00> : vector<16xf32>
    %401 = vector.multi_reduction <add>, %400, %cst_141 [1] : vector<16x32xf32> to vector<16xf32>
    %402 = vector.shape_cast %401 : vector<16xf32> to vector<16x1xf32>
    %cst_142 = arith.constant 3.200000e+01 : f32
    %403 = vector.broadcast %cst_142 : f32 to vector<16x1xf32>
    %404 = arith.divf %402, %403 : vector<16x1xf32>
    %405 = vector.broadcast %404 : vector<16x1xf32> to vector<16x32xf32>
    %406 = arith.subf %400, %405 : vector<16x32xf32>
    %407 = arith.mulf %406, %406 : vector<16x32xf32>
    %cst_143 = arith.constant dense<0.000000e+00> : vector<16xf32>
    %408 = vector.multi_reduction <add>, %407, %cst_143 [1] : vector<16x32xf32> to vector<16xf32>
    %409 = vector.shape_cast %408 : vector<16xf32> to vector<16x1xf32>
    %cst_144 = arith.constant 3.200000e+01 : f32
    %410 = vector.broadcast %cst_144 : f32 to vector<16x1xf32>
    %411 = arith.divf %409, %410 : vector<16x1xf32>
    %412 = vector.broadcast %404 : vector<16x1xf32> to vector<16x32xf32>
    %413 = arith.subf %400, %412 : vector<16x32xf32>
    %cst_145 = arith.constant 9.99999974E-6 : f32
    %414 = vector.broadcast %cst_145 : f32 to vector<16x1xf32>
    %415 = arith.addf %411, %414 : vector<16x1xf32>
    %416 = math.rsqrt %415 : vector<16x1xf32>
    %417 = vector.broadcast %416 : vector<16x1xf32> to vector<16x32xf32>
    %418 = arith.mulf %413, %417 : vector<16x32xf32>
    %419 = vector.broadcast %231 : vector<1x32xf32> to vector<16x32xf32>
    %420 = arith.mulf %418, %419 : vector<16x32xf32>
    %421 = vector.broadcast %233 : vector<1x32xf32> to vector<16x32xf32>
    %422 = arith.addf %420, %421 : vector<16x32xf32>
    %c0_146 = arith.constant 0 : index
    %c0_147 = arith.constant 0 : index
    %423 = vector.load %arg3[%c0_146, %c0_147] : memref<16x32xf32, #tpu.memory_space<vmem>>, vector<16x32xf32>
    tpu.vector_store %arg3[%c0_146, %c0_147], %422 {strides = array<i32>} : memref<16x32xf32, #tpu.memory_space<vmem>>, vector<16x32xf32>,
    return
  }
}

</mosaic_0001>

<llo_original>
// kernel: encoder_forward.1
$region0: #{encoder_forward.1}
  #allocation0 [shape = 'u32[]', space=smem, size = 0x4, offset = 0x4, fixed_abs, tag = 'smem constant byte address 0x4 - core index']
  #allocation1 [shape = 'u32[144,128]{1,0:T(1,128)}', space=vmem, size = 0x12000, scoped, tag = 'internal scratch']
  %s0 = inlined_call_operand.vmem [shape: f32[16,32], index: 0, kind: input, shape index: {}]
  %s1 = inlined_call_operand.vmem [shape: f32[16,32], index: 1, kind: input, shape index: {}]
  %s2 = inlined_call_operand.hbm [shape: f32[2,200,128], index: 2, kind: input, shape index: {}]
  %s3 = inlined_call_operand.hbm [shape: f32[16,32], index: 3, kind: output, shape index: {}]
  %s4 = sld [smem:[#allocation0]]
  $region26: #{encoder_forward.1} parent=0
    _
  %s6 = ssub.s32 1, %s4
  %s7 = scalar_select 0, %s6, %s4
  $region1: #{encoder_forward.1} parent=0
    #allocation2 [shape = 'u8[204800]{0}', space=vmem, size = 0x32000, scoped, tag = 'input window, operand 2, single buffered']
    #allocation3 [shape = 's32[1]{0}', space=sflag, size = 0x4, scoped, tag = 'scoped memory for encoder_forward.1']
    #allocation4 [shape = 's32[1]{0}', space=sflag, size = 0x4, scoped, tag = 'scoped memory for encoder_forward.1']
    #allocation5 [shape = 'u8[8192]{0}', space=vmem, size = 0x2000, scoped, tag = 'output window, operand 0, single buffered']
    %8 = vsyncpa [#allocation3], 0
    %9 = vsyncpa [#allocation4], 0
    // Predicated region
    $region2: #{encoder_forward.1} parent=1 // pred_check
      _
    $region3: #{encoder_forward.1} parent=1 // pred_check_branch
      %11 = sbr.rel (0) target = $region5
    $region4: #{encoder_forward.1} parent=1 // pred_region
      _
    $region5: #{encoder_forward.1} parent=1 // pred_fallthru
      _
    // Predicated region
    $region6: #{encoder_forward.1} parent=1 // pred_check
      _
    $region7: #{encoder_forward.1} parent=1 // pred_check_branch
      %13 = sbr.rel (0) target = $region9
    $region8: #{encoder_forward.1} parent=1 // pred_region
      _
    $region9: #{encoder_forward.1} parent=1 // pred_fallthru
      _
    // Predicated region
    $region10: #{encoder_forward.1} parent=1 // pred_check
      _
    $region11: #{encoder_forward.1} parent=1 // pred_check_branch
      %15 = sbr.rel (0) target = $region13
    $region12: #{encoder_forward.1} parent=1 // pred_region
      %s17 = ssub.s32 6400, 6400
      %18 = vsyncadd [#allocation3], %s17
      %s19 = sshll.u32 [#allocation2], 4
      %s20 = int_to_ptr.vmem [resolvable:$true] %s19
      %25 = dma.hbm_to_vmem [thread:$0]  %s2, 6400, %s20, [#allocation3], 128, 128, 8
    $region13: #{encoder_forward.1} parent=1 // pred_fallthru
      _
    // Predicated region
    $region14: #{encoder_forward.1} parent=1 // pred_check
      _
    $region15: #{encoder_forward.1} parent=1 // pred_check_branch
      %27 = sbr.rel (0) target = $region17
    $region16: #{encoder_forward.1} parent=1 // pred_region
      %28 = dma.done [#allocation3], 6400
    $region17: #{encoder_forward.1} parent=1 // pred_fallthru
      _
    %v29 = vld [vmem:[%s0] sm:$0xff]
    %v30 = vld [vmem:[%s0 + $0x8] sm:$0xff]
    %v31 = vld [vmem:[%s1] sm:$0xff]
    %v32 = vld [vmem:[%s1 + $0x8] sm:$0xff]
    %v33 = vadd.f32 %v29, %v31
    %v34 = vadd.f32 %v30, %v32
    %v35 = vld [vmem:[#allocation2] sm:$0xff]
    %v36 = vld [vmem:[#allocation2 + $0x8] sm:$0xff]
    %v37 = vld [vmem:[#allocation2 + $0x10] sm:$0xff]
    %v38 = vld [vmem:[#allocation2 + $0x18] sm:$0xff]
    %v39 = vld [vmem:[#allocation2 + $0x20] sm:$0xff]
    %v40 = vld [vmem:[#allocation2 + $0x28] sm:$0xff]
    %v41 = vld [vmem:[#allocation2 + $0x30] sm:$0xff]
    %v42 = vld [vmem:[#allocation2 + $0x38] sm:$0xff]
    %v43 = vld [vmem:[#allocation2 + $0x40] sm:$0xff]
    %v44 = vld [vmem:[#allocation2 + $0x48] sm:$0xff]
    %v45 = vld [vmem:[#allocation2 + $0x50] sm:$0xff]
    %v46 = vld [vmem:[#allocation2 + $0x58] sm:$0xff]
    %v47 = vld [vmem:[#allocation2 + $0x60] sm:$0xff]
    %v48 = vld [vmem:[#allocation2 + $0x68] sm:$0xff]
    %v49 = vld [vmem:[#allocation2 + $0x70] sm:$0xff]
    %v50 = vld [vmem:[#allocation2 + $0x78] sm:$0xff]
    %v51 = vld [vmem:[#allocation2 + $0x80] sm:$0xff]
    %v52 = vld [vmem:[#allocation2 + $0x88] sm:$0xff]
    %v53 = vld [vmem:[#allocation2 + $0x90] sm:$0xff]
    %v54 = vld [vmem:[#allocation2 + $0x98] sm:$0xff]
    %v55 = vld [vmem:[#allocation2 + $0xa0] sm:$0xff]
    %v56 = vld [vmem:[#allocation2 + $0xa8] sm:$0xff]
    %v57 = vld [vmem:[#allocation2 + $0xb0] sm:$0xff]
    %v58 = vld [vmem:[#allocation2 + $0xb8] sm:$0xff]
    %v59 = vld [vmem:[#allocation2 + $0xc0] sm:$0x1]
    %v60 = vld [vmem:[#allocation2 + $0xc1] sm:$0x1]
    %v61 = vld [vmem:[#allocation2 + $0xc2] sm:$0x1]
    %v62 = vld [vmem:[#allocation2 + $0xc3] sm:$0x1]
    %v63 = vld [vmem:[#allocation2 + $0xc4] sm:$0x1]
    %v64 = vld [vmem:[#allocation2 + $0xc5] sm:$0x1]
    %v65 = vld [vmem:[#allocation2 + $0xc6] sm:$0x1]
    %vm66 = vcmask 261120
    %v68 = vsel %vm66, %v33, 0
    %v71 = vsel %vm66, %v34, 0
    %73 = vmatprep.subr.mxu0 0.0
    %74 = vmatpush1.msra.mxu0 %v35
    %75 = vmatprep.subr.mxu0 0.0
    %76 = vmatpush1.msra.mxu0 %v36
    %77 = vmatprep.subr.mxu0 0.0
    %78 = vmatpush1.msra.mxu0 %v37
    %79 = vmatprep.subr.mxu0 0.0
    %80 = vmatpush1.msra.mxu0 %v38
    %81 = vmatprep.subr.mxu0 0.0
    %82 = vmatpush1.msra.mxu0 0.0
    %83 = vmatprep.subr.mxu0 0.0
    %84 = vmatpush1.msra.mxu0 0.0
    %85 = vmatprep.subr.mxu0 0.0
    %86 = vmatpush1.msra.mxu0 0.0
    %87 = vmatprep.subr.mxu0 0.0
    %88 = vmatpush1.msra.mxu0 0.0
    %89 = vmatprep.subr.mxu0 0.0
    %90 = vmatpush1.msra.mxu0 0.0
    %91 = vmatprep.subr.mxu0 0.0
    %92 = vmatpush1.msra.mxu0 0.0
    %93 = vmatprep.subr.mxu0 0.0
    %94 = vmatpush1.msra.mxu0 0.0
    %95 = vmatprep.subr.mxu0 0.0
    %96 = vmatpush1.msra.mxu0 0.0
    %97 = vmatprep.subr.mxu0 0.0
    %98 = vmatpush1.msra.mxu0 0.0
    %99 = vmatprep.subr.mxu0 0.0
    %100 = vmatpush1.msra.mxu0 0.0
    %101 = vmatprep.subr.mxu0 0.0
    %102 = vmatpush1.msra.mxu0 0.0
    %103 = vmatprep.subr.mxu0 0.0
    %104 = vmatpush1.msra.mxu0 0.0
    %105 = vmatprep.subr.mxu0 0.0
    %106 = vmatpush1.msra.mxu0 0.0
    %107 = vmatprep.subr.mxu0 0.0
    %108 = vmatpush1.msra.mxu0 0.0
    %109 = vmatprep.subr.mxu0 0.0
    %110 = vmatpush1.msra.mxu0 0.0
    %111 = vmatprep.subr.mxu0 0.0
    %112 = vmatpush1.msra.mxu0 0.0
    %113 = vmatprep.subr.mxu0 0.0
    %114 = vmatpush1.msra.mxu0 0.0
    %115 = vmatprep.subr.mxu0 0.0
    %116 = vmatpush1.msra.mxu0 0.0
    %117 = vmatprep.subr.mxu0 0.0
    %118 = vmatpush1.msra.mxu0 0.0
    %119 = vmatprep.subr.mxu0 0.0
    %120 = vmatpush1.msra.mxu0 0.0
    %121 = vmatprep.subr.mxu0 0.0
    %122 = vmatpush1.msra.mxu0 0.0
    %123 = vmatprep.subr.mxu0 0.0
    %124 = vmatpush1.msra.mxu0 0.0
    %125 = vmatprep.subr.mxu0 0.0
    %126 = vmatpush1.msra.mxu0 0.0
    %127 = vmatprep.subr.mxu0 0.0
    %128 = vmatpush1.msra.mxu0 0.0
    %129 = vmatprep.subr.mxu0 0.0
    %130 = vmatpush1.msra.mxu0 0.0
    %131 = vmatprep.subr.mxu0 0.0
    %132 = vmatpush1.msra.mxu0 0.0
    %133 = vmatprep.subr.mxu0 0.0
    %134 = vmatpush1.msra.mxu0 0.0
    %135 = vmatprep.subr.mxu0 0.0
    %136 = vmatpush1.msra.mxu0 0.0
    %137 = vmatprep.mubr.f32.mxu0 0.0
    %138 = vmatmul.mubr.f32.gmra.mrb[0].mxu0 %v68
    %v139 = vpop.f32.mrb[0].mxu0
    %v140 = vadd.f32 0.0, %v139
    %v141 = vpop.f32.mrb[0].mxu0
    %142 = vmatprep.mubr.f32.mxu0 0.0
    %143 = vmatmul.mubr.f32.gmra.mrb[0].mxu0 %v71
    %v144 = vpop.f32.mrb[0].mxu0
    %v145 = vadd.f32 0.0, %v144
    %v146 = vpop.f32.mrb[0].mxu0
    %147 = vdwg.mxu0
    %149 = vrot.lane.b32.xlu0 %v140, 96
    %v150 = vpop.permute.xlu0 %149
    %vm151 = vcmask 64512
    %v152 = vsel %vm151, %v140, 0
    %v154 = vsel %vm151, %v150, 0
    %156 = vmatprep.subr.mxu0 0.0
    %157 = vmatpush1.xpose.msra.mxu0 %v154
    %158 = vmatprep.subr.mxu0 0.0
    %159 = vmatpush1.xpose.msra.mxu0 0.0
    %160 = vmatprep.subr.mxu0 0.0
    %161 = vmatpush1.xpose.msra.mxu0 0.0
    %162 = vmatprep.subr.mxu0 0.0
    %163 = vmatpush1.xpose.msra.mxu0 0.0
    %164 = vmatprep.subr.mxu0 0.0
    %165 = vmatpush1.xpose.msra.mxu0 0.0
    %166 = vmatprep.subr.mxu0 0.0
    %167 = vmatpush1.xpose.msra.mxu0 0.0
    %168 = vmatprep.subr.mxu0 0.0
    %169 = vmatpush1.xpose.msra.mxu0 0.0
    %170 = vmatprep.subr.mxu0 0.0
    %171 = vmatpush1.xpose.msra.mxu0 0.0
    %172 = vmatprep.subr.mxu0 0.0
    %173 = vmatpush1.xpose.msra.mxu0 0.0
    %174 = vmatprep.subr.mxu0 0.0
    %175 = vmatpush1.xpose.msra.mxu0 0.0
    %176 = vmatprep.subr.mxu0 0.0
    %177 = vmatpush1.xpose.msra.mxu0 0.0
    %178 = vmatprep.subr.mxu0 0.0
    %179 = vmatpush1.xpose.msra.mxu0 0.0
    %180 = vmatprep.subr.mxu0 0.0
    %181 = vmatpush1.xpose.msra.mxu0 0.0
    %182 = vmatprep.subr.mxu0 0.0
    %183 = vmatpush1.xpose.msra.mxu0 0.0
    %184 = vmatprep.subr.mxu0 0.0
    %185 = vmatpush1.xpose.msra.mxu0 0.0
    %186 = vmatprep.subr.mxu0 0.0
    %187 = vmatpush1.xpose.msra.mxu0 0.0
    %188 = vmatprep.subr.mxu0 0.0
    %189 = vmatpush1.xpose.msra.mxu0 0.0
    %190 = vmatprep.subr.mxu0 0.0
    %191 = vmatpush1.xpose.msra.mxu0 0.0
    %192 = vmatprep.subr.mxu0 0.0
    %193 = vmatpush1.xpose.msra.mxu0 0.0
    %194 = vmatprep.subr.mxu0 0.0
    %195 = vmatpush1.xpose.msra.mxu0 0.0
    %196 = vmatprep.subr.mxu0 0.0
    %197 = vmatpush1.xpose.msra.mxu0 0.0
    %198 = vmatprep.subr.mxu0 0.0
    %199 = vmatpush1.xpose.msra.mxu0 0.0
    %200 = vmatprep.subr.mxu0 0.0
    %201 = vmatpush1.xpose.msra.mxu0 0.0
    %202 = vmatprep.subr.mxu0 0.0
    %203 = vmatpush1.xpose.msra.mxu0 0.0
    %204 = vmatprep.subr.mxu0 0.0
    %205 = vmatpush1.xpose.msra.mxu0 0.0
    %206 = vmatprep.subr.mxu0 0.0
    %207 = vmatpush1.xpose.msra.mxu0 0.0
    %208 = vmatprep.subr.mxu0 0.0
    %209 = vmatpush1.xpose.msra.mxu0 0.0
    %210 = vmatprep.subr.mxu0 0.0
    %211 = vmatpush1.xpose.msra.mxu0 0.0
    %212 = vmatprep.subr.mxu0 0.0
    %213 = vmatpush1.xpose.msra.mxu0 0.0
    %214 = vmatprep.subr.mxu0 0.0
    %215 = vmatpush1.xpose.msra.mxu0 0.0
    %216 = vmatprep.subr.mxu0 0.0
    %217 = vmatpush1.xpose.msra.mxu0 0.0
    %218 = vmatprep.subr.mxu0 0.0
    %219 = vmatpush1.xpose.msra.mxu0 0.0
    %220 = vmatprep.mubr.f32.mxu0 0.0
    %221 = vmatmul.mubr.f32.gmra.mrb[0].mxu0 %v152
    %v222 = vpop.f32.mrb[0].mxu0
    %v223 = vadd.f32 0.0, %v222
    %v224 = vpop.f32.mrb[0].mxu0
    %225 = vdwg.mxu0
    %v226 = vsel %vm151, %v223, -inf
    %227 = vmax.xlane.f32.xlu0 %v226
    %v228 = vpop.xlane.xlu0 %227
    %v229 = vsub.f32 %v223, %v228
    %v230 = vmul.f32 %v229, 1.442695
    %v231 = vpow.pop %v230
    %v232 = vsel %vm151, %v231, 0.0
    %233 = vadd.xlane.f32.xlu0 %v232
    %v234 = vpop.xlane.xlu0 %233
    %v235 = vrcp.pop %v234
    %v236 = vmul.f32 %v231, %v235
    %237 = vrot.lane.b32.xlu0 %v140, 64
    %v238 = vpop.permute.xlu0 %237
    %v241 = vsel %vm151, %v236, 0
    %243 = vmatprep.subr.mxu0 0.0
    %244 = vmatpush1.msra.mxu0 %v238
    %245 = vmatprep.subr.mxu0 0.0
    %246 = vmatpush1.msra.mxu0 0.0
    %247 = vmatprep.subr.mxu0 0.0
    %248 = vmatpush1.msra.mxu0 0.0
    %249 = vmatprep.subr.mxu0 0.0
    %250 = vmatpush1.msra.mxu0 0.0
    %251 = vmatprep.subr.mxu0 0.0
    %252 = vmatpush1.msra.mxu0 0.0
    %253 = vmatprep.subr.mxu0 0.0
    %254 = vmatpush1.msra.mxu0 0.0
    %255 = vmatprep.subr.mxu0 0.0
    %256 = vmatpush1.msra.mxu0 0.0
    %257 = vmatprep.subr.mxu0 0.0
    %258 = vmatpush1.msra.mxu0 0.0
    %259 = vmatprep.subr.mxu0 0.0
    %260 = vmatpush1.msra.mxu0 0.0
    %261 = vmatprep.subr.mxu0 0.0
    %262 = vmatpush1.msra.mxu0 0.0
    %263 = vmatprep.subr.mxu0 0.0
    %264 = vmatpush1.msra.mxu0 0.0
    %265 = vmatprep.subr.mxu0 0.0
    %266 = vmatpush1.msra.mxu0 0.0
    %267 = vmatprep.subr.mxu0 0.0
    %268 = vmatpush1.msra.mxu0 0.0
    %269 = vmatprep.subr.mxu0 0.0
    %270 = vmatpush1.msra.mxu0 0.0
    %271 = vmatprep.subr.mxu0 0.0
    %272 = vmatpush1.msra.mxu0 0.0
    %273 = vmatprep.subr.mxu0 0.0
    %274 = vmatpush1.msra.mxu0 0.0
    %275 = vmatprep.subr.mxu0 0.0
    %276 = vmatpush1.msra.mxu0 0.0
    %277 = vmatprep.subr.mxu0 0.0
    %278 = vmatpush1.msra.mxu0 0.0
    %279 = vmatprep.subr.mxu0 0.0
    %280 = vmatpush1.msra.mxu0 0.0
    %281 = vmatprep.subr.mxu0 0.0
    %282 = vmatpush1.msra.mxu0 0.0
    %283 = vmatprep.subr.mxu0 0.0
    %284 = vmatpush1.msra.mxu0 0.0
    %285 = vmatprep.subr.mxu0 0.0
    %286 = vmatpush1.msra.mxu0 0.0
    %287 = vmatprep.subr.mxu0 0.0
    %288 = vmatpush1.msra.mxu0 0.0
    %289 = vmatprep.subr.mxu0 0.0
    %290 = vmatpush1.msra.mxu0 0.0
    %291 = vmatprep.subr.mxu0 0.0
    %292 = vmatpush1.msra.mxu0 0.0
    %293 = vmatprep.subr.mxu0 0.0
    %294 = vmatpush1.msra.mxu0 0.0
    %295 = vmatprep.subr.mxu0 0.0
    %296 = vmatpush1.msra.mxu0 0.0
    %297 = vmatprep.subr.mxu0 0.0
    %298 = vmatpush1.msra.mxu0 0.0
    %299 = vmatprep.subr.mxu0 0.0
    %300 = vmatpush1.msra.mxu0 0.0
    %301 = vmatprep.subr.mxu0 0.0
    %302 = vmatpush1.msra.mxu0 0.0
    %303 = vmatprep.subr.mxu0 0.0
    %304 = vmatpush1.msra.mxu0 0.0
    %305 = vmatprep.subr.mxu0 0.0
    %306 = vmatpush1.msra.mxu0 0.0
    %307 = vmatprep.mubr.f32.mxu0 0.0
    %308 = vmatmul.mubr.f32.gmra.mrb[0].mxu0 %v241
    %v309 = vpop.f32.mrb[0].mxu0
    %v310 = vadd.f32 0.0, %v309
    %v311 = vpop.f32.mrb[0].mxu0
    %312 = vdwg.mxu0
    %313 = vrot.lane.b32.xlu0 %v140, 120
    %v314 = vpop.permute.xlu0 %313
    %315 = vrot.lane.b32.xlu0 %v140, 88
    %v316 = vpop.permute.xlu0 %315
    %v317 = vsel %vm151, %v314, 0
    %v319 = vsel %vm151, %v316, 0
    %321 = vmatprep.subr.mxu0 0.0
    %322 = vmatpush1.xpose.msra.mxu0 %v319
    %323 = vmatprep.subr.mxu0 0.0
    %324 = vmatpush1.xpose.msra.mxu0 0.0
    %325 = vmatprep.subr.mxu0 0.0
    %326 = vmatpush1.xpose.msra.mxu0 0.0
    %327 = vmatprep.subr.mxu0 0.0
    %328 = vmatpush1.xpose.msra.mxu0 0.0
    %329 = vmatprep.subr.mxu0 0.0
    %330 = vmatpush1.xpose.msra.mxu0 0.0
    %331 = vmatprep.subr.mxu0 0.0
    %332 = vmatpush1.xpose.msra.mxu0 0.0
    %333 = vmatprep.subr.mxu0 0.0
    %334 = vmatpush1.xpose.msra.mxu0 0.0
    %335 = vmatprep.subr.mxu0 0.0
    %336 = vmatpush1.xpose.msra.mxu0 0.0
    %337 = vmatprep.subr.mxu0 0.0
    %338 = vmatpush1.xpose.msra.mxu0 0.0
    %339 = vmatprep.subr.mxu0 0.0
    %340 = vmatpush1.xpose.msra.mxu0 0.0
    %341 = vmatprep.subr.mxu0 0.0
    %342 = vmatpush1.xpose.msra.mxu0 0.0
    %343 = vmatprep.subr.mxu0 0.0
    %344 = vmatpush1.xpose.msra.mxu0 0.0
    %345 = vmatprep.subr.mxu0 0.0
    %346 = vmatpush1.xpose.msra.mxu0 0.0
    %347 = vmatprep.subr.mxu0 0.0
    %348 = vmatpush1.xpose.msra.mxu0 0.0
    %349 = vmatprep.subr.mxu0 0.0
    %350 = vmatpush1.xpose.msra.mxu0 0.0
    %351 = vmatprep.subr.mxu0 0.0
    %352 = vmatpush1.xpose.msra.mxu0 0.0
    %353 = vmatprep.subr.mxu0 0.0
    %354 = vmatpush1.xpose.msra.mxu0 0.0
    %355 = vmatprep.subr.mxu0 0.0
    %356 = vmatpush1.xpose.msra.mxu0 0.0
    %357 = vmatprep.subr.mxu0 0.0
    %358 = vmatpush1.xpose.msra.mxu0 0.0
    %359 = vmatprep.subr.mxu0 0.0
    %360 = vmatpush1.xpose.msra.mxu0 0.0
    %361 = vmatprep.subr.mxu0 0.0
    %362 = vmatpush1.xpose.msra.mxu0 0.0
    %363 = vmatprep.subr.mxu0 0.0
    %364 = vmatpush1.xpose.msra.mxu0 0.0
    %365 = vmatprep.subr.mxu0 0.0
    %366 = vmatpush1.xpose.msra.mxu0 0.0
    %367 = vmatprep.subr.mxu0 0.0
    %368 = vmatpush1.xpose.msra.mxu0 0.0
    %369 = vmatprep.subr.mxu0 0.0
    %370 = vmatpush1.xpose.msra.mxu0 0.0
    %371 = vmatprep.subr.mxu0 0.0
    %372 = vmatpush1.xpose.msra.mxu0 0.0
    %373 = vmatprep.subr.mxu0 0.0
    %374 = vmatpush1.xpose.msra.mxu0 0.0
    %375 = vmatprep.subr.mxu0 0.0
    %376 = vmatpush1.xpose.msra.mxu0 0.0
    %377 = vmatprep.subr.mxu0 0.0
    %378 = vmatpush1.xpose.msra.mxu0 0.0
    %379 = vmatprep.subr.mxu0 0.0
    %380 = vmatpush1.xpose.msra.mxu0 0.0
    %381 = vmatprep.subr.mxu0 0.0
    %382 = vmatpush1.xpose.msra.mxu0 0.0
    %383 = vmatprep.subr.mxu0 0.0
    %384 = vmatpush1.xpose.msra.mxu0 0.0
    %385 = vmatprep.mubr.f32.mxu0 0.0
    %386 = vmatmul.mubr.f32.gmra.mrb[0].mxu0 %v317
    %v387 = vpop.f32.mrb[0].mxu0
    %v388 = vadd.f32 0.0, %v387
    %v389 = vpop.f32.mrb[0].mxu0
    %390 = vdwg.mxu0
    %v391 = vsel %vm151, %v388, -inf
    %392 = vmax.xlane.f32.xlu0 %v391
    %v393 = vpop.xlane.xlu0 %392
    %v394 = vsub.f32 %v388, %v393
    %v395 = vmul.f32 %v394, 1.442695
    %v396 = vpow.pop %v395
    %v397 = vsel %vm151, %v396, 0.0
    %398 = vadd.xlane.f32.xlu0 %v397
    %v399 = vpop.xlane.xlu0 %398
    %v400 = vrcp.pop %v399
    %v401 = vmul.f32 %v396, %v400
    %402 = vrot.lane.b32.xlu0 %v140, 56
    %v403 = vpop.permute.xlu0 %402
    %v406 = vsel %vm151, %v401, 0
    %408 = vmatprep.subr.mxu0 0.0
    %409 = vmatpush1.msra.mxu0 %v403
    %410 = vmatprep.subr.mxu0 0.0
    %411 = vmatpush1.msra.mxu0 0.0
    %412 = vmatprep.subr.mxu0 0.0
    %413 = vmatpush1.msra.mxu0 0.0
    %414 = vmatprep.subr.mxu0 0.0
    %415 = vmatpush1.msra.mxu0 0.0
    %416 = vmatprep.subr.mxu0 0.0
    %417 = vmatpush1.msra.mxu0 0.0
    %418 = vmatprep.subr.mxu0 0.0
    %419 = vmatpush1.msra.mxu0 0.0
    %420 = vmatprep.subr.mxu0 0.0
    %421 = vmatpush1.msra.mxu0 0.0
    %422 = vmatprep.subr.mxu0 0.0
    %423 = vmatpush1.msra.mxu0 0.0
    %424 = vmatprep.subr.mxu0 0.0
    %425 = vmatpush1.msra.mxu0 0.0
    %426 = vmatprep.subr.mxu0 0.0
    %427 = vmatpush1.msra.mxu0 0.0
    %428 = vmatprep.subr.mxu0 0.0
    %429 = vmatpush1.msra.mxu0 0.0
    %430 = vmatprep.subr.mxu0 0.0
    %431 = vmatpush1.msra.mxu0 0.0
    %432 = vmatprep.subr.mxu0 0.0
    %433 = vmatpush1.msra.mxu0 0.0
    %434 = vmatprep.subr.mxu0 0.0
    %435 = vmatpush1.msra.mxu0 0.0
    %436 = vmatprep.subr.mxu0 0.0
    %437 = vmatpush1.msra.mxu0 0.0
    %438 = vmatprep.subr.mxu0 0.0
    %439 = vmatpush1.msra.mxu0 0.0
    %440 = vmatprep.subr.mxu0 0.0
    %441 = vmatpush1.msra.mxu0 0.0
    %442 = vmatprep.subr.mxu0 0.0
    %443 = vmatpush1.msra.mxu0 0.0
    %444 = vmatprep.subr.mxu0 0.0
    %445 = vmatpush1.msra.mxu0 0.0
    %446 = vmatprep.subr.mxu0 0.0
    %447 = vmatpush1.msra.mxu0 0.0
    %448 = vmatprep.subr.mxu0 0.0
    %449 = vmatpush1.msra.mxu0 0.0
    %450 = vmatprep.subr.mxu0 0.0
    %451 = vmatpush1.msra.mxu0 0.0
    %452 = vmatprep.subr.mxu0 0.0
    %453 = vmatpush1.msra.mxu0 0.0
    %454 = vmatprep.subr.mxu0 0.0
    %455 = vmatpush1.msra.mxu0 0.0
    %456 = vmatprep.subr.mxu0 0.0
    %457 = vmatpush1.msra.mxu0 0.0
    %458 = vmatprep.subr.mxu0 0.0
    %459 = vmatpush1.msra.mxu0 0.0
    %460 = vmatprep.subr.mxu0 0.0
    %461 = vmatpush1.msra.mxu0 0.0
    %462 = vmatprep.subr.mxu0 0.0
    %463 = vmatpush1.msra.mxu0 0.0
    %464 = vmatprep.subr.mxu0 0.0
    %465 = vmatpush1.msra.mxu0 0.0
    %466 = vmatprep.subr.mxu0 0.0
    %467 = vmatpush1.msra.mxu0 0.0
    %468 = vmatprep.subr.mxu0 0.0
    %469 = vmatpush1.msra.mxu0 0.0
    %470 = vmatprep.subr.mxu0 0.0
    %471 = vmatpush1.msra.mxu0 0.0
    %472 = vmatprep.mubr.f32.mxu0 0.0
    %473 = vmatmul.mubr.f32.gmra.mrb[0].mxu0 %v406
    %v474 = vpop.f32.mrb[0].mxu0
    %v475 = vadd.f32 0.0, %v474
    %v476 = vpop.f32.mrb[0].mxu0
    %477 = vdwg.mxu0
    %478 = vrot.lane.b32.xlu0 %v140, 112
    %v479 = vpop.permute.xlu0 %478
    %480 = vrot.lane.b32.xlu0 %v140, 80
    %v481 = vpop.permute.xlu0 %480
    %v482 = vsel %vm151, %v479, 0
    %v484 = vsel %vm151, %v481, 0
    %486 = vmatprep.subr.mxu0 0.0
    %487 = vmatpush1.xpose.msra.mxu0 %v484
    %488 = vmatprep.subr.mxu0 0.0
    %489 = vmatpush1.xpose.msra.mxu0 0.0
    %490 = vmatprep.subr.mxu0 0.0
    %491 = vmatpush1.xpose.msra.mxu0 0.0
    %492 = vmatprep.subr.mxu0 0.0
    %493 = vmatpush1.xpose.msra.mxu0 0.0
    %494 = vmatprep.subr.mxu0 0.0
    %495 = vmatpush1.xpose.msra.mxu0 0.0
    %496 = vmatprep.subr.mxu0 0.0
    %497 = vmatpush1.xpose.msra.mxu0 0.0
    %498 = vmatprep.subr.mxu0 0.0
    %499 = vmatpush1.xpose.msra.mxu0 0.0
    %500 = vmatprep.subr.mxu0 0.0
    %501 = vmatpush1.xpose.msra.mxu0 0.0
    %502 = vmatprep.subr.mxu0 0.0
    %503 = vmatpush1.xpose.msra.mxu0 0.0
    %504 = vmatprep.subr.mxu0 0.0
    %505 = vmatpush1.xpose.msra.mxu0 0.0
    %506 = vmatprep.subr.mxu0 0.0
    %507 = vmatpush1.xpose.msra.mxu0 0.0
    %508 = vmatprep.subr.mxu0 0.0
    %509 = vmatpush1.xpose.msra.mxu0 0.0
    %510 = vmatprep.subr.mxu0 0.0
    %511 = vmatpush1.xpose.msra.mxu0 0.0
    %512 = vmatprep.subr.mxu0 0.0
    %513 = vmatpush1.xpose.msra.mxu0 0.0
    %514 = vmatprep.subr.mxu0 0.0
    %515 = vmatpush1.xpose.msra.mxu0 0.0
    %516 = vmatprep.subr.mxu0 0.0
    %517 = vmatpush1.xpose.msra.mxu0 0.0
    %518 = vmatprep.subr.mxu0 0.0
    %519 = vmatpush1.xpose.msra.mxu0 0.0
    %520 = vmatprep.subr.mxu0 0.0
    %521 = vmatpush1.xpose.msra.mxu0 0.0
    %522 = vmatprep.subr.mxu0 0.0
    %523 = vmatpush1.xpose.msra.mxu0 0.0
    %524 = vmatprep.subr.mxu0 0.0
    %525 = vmatpush1.xpose.msra.mxu0 0.0
    %526 = vmatprep.subr.mxu0 0.0
    %527 = vmatpush1.xpose.msra.mxu0 0.0
    %528 = vmatprep.subr.mxu0 0.0
    %529 = vmatpush1.xpose.msra.mxu0 0.0
    %530 = vmatprep.subr.mxu0 0.0
    %531 = vmatpush1.xpose.msra.mxu0 0.0
    %532 = vmatprep.subr.mxu0 0.0
    %533 = vmatpush1.xpose.msra.mxu0 0.0
    %534 = vmatprep.subr.mxu0 0.0
    %535 = vmatpush1.xpose.msra.mxu0 0.0
    %536 = vmatprep.subr.mxu0 0.0
    %537 = vmatpush1.xpose.msra.mxu0 0.0
    %538 = vmatprep.subr.mxu0 0.0
    %539 = vmatpush1.xpose.msra.mxu0 0.0
    %540 = vmatprep.subr.mxu0 0.0
    %541 = vmatpush1.xpose.msra.mxu0 0.0
    %542 = vmatprep.subr.mxu0 0.0
    %543 = vmatpush1.xpose.msra.mxu0 0.0
    %544 = vmatprep.subr.mxu0 0.0
    %545 = vmatpush1.xpose.msra.mxu0 0.0
    %546 = vmatprep.subr.mxu0 0.0
    %547 = vmatpush1.xpose.msra.mxu0 0.0
    %548 = vmatprep.subr.mxu0 0.0
    %549 = vmatpush1.xpose.msra.mxu0 0.0
    %550 = vmatprep.mubr.f32.mxu0 0.0
    %551 = vmatmul.mubr.f32.gmra.mrb[0].mxu0 %v482
    %v552 = vpop.f32.mrb[0].mxu0
    %v553 = vadd.f32 0.0, %v552
    %v554 = vpop.f32.mrb[0].mxu0
    %555 = vdwg.mxu0
    %v556 = vsel %vm151, %v553, -inf
    %557 = vmax.xlane.f32.xlu0 %v556
    %v558 = vpop.xlane.xlu0 %557
    %v559 = vsub.f32 %v553, %v558
    %v560 = vmul.f32 %v559, 1.442695
    %v561 = vpow.pop %v560
    %v562 = vsel %vm151, %v561, 0.0
    %563 = vadd.xlane.f32.xlu0 %v562
    %v564 = vpop.xlane.xlu0 %563
    %v565 = vrcp.pop %v564
    %v566 = vmul.f32 %v561, %v565
    %567 = vrot.lane.b32.xlu0 %v140, 48
    %v568 = vpop.permute.xlu0 %567
    %v571 = vsel %vm151, %v566, 0
    %573 = vmatprep.subr.mxu0 0.0
    %574 = vmatpush1.msra.mxu0 %v568
    %575 = vmatprep.subr.mxu0 0.0
    %576 = vmatpush1.msra.mxu0 0.0
    %577 = vmatprep.subr.mxu0 0.0
    %578 = vmatpush1.msra.mxu0 0.0
    %579 = vmatprep.subr.mxu0 0.0
    %580 = vmatpush1.msra.mxu0 0.0
    %581 = vmatprep.subr.mxu0 0.0
    %582 = vmatpush1.msra.mxu0 0.0
    %583 = vmatprep.subr.mxu0 0.0
    %584 = vmatpush1.msra.mxu0 0.0
    %585 = vmatprep.subr.mxu0 0.0
    %586 = vmatpush1.msra.mxu0 0.0
    %587 = vmatprep.subr.mxu0 0.0
    %588 = vmatpush1.msra.mxu0 0.0
    %589 = vmatprep.subr.mxu0 0.0
    %590 = vmatpush1.msra.mxu0 0.0
    %591 = vmatprep.subr.mxu0 0.0
    %592 = vmatpush1.msra.mxu0 0.0
    %593 = vmatprep.subr.mxu0 0.0
    %594 = vmatpush1.msra.mxu0 0.0
    %595 = vmatprep.subr.mxu0 0.0
    %596 = vmatpush1.msra.mxu0 0.0
    %597 = vmatprep.subr.mxu0 0.0
    %598 = vmatpush1.msra.mxu0 0.0
    %599 = vmatprep.subr.mxu0 0.0
    %600 = vmatpush1.msra.mxu0 0.0
    %601 = vmatprep.subr.mxu0 0.0
    %602 = vmatpush1.msra.mxu0 0.0
    %603 = vmatprep.subr.mxu0 0.0
    %604 = vmatpush1.msra.mxu0 0.0
    %605 = vmatprep.subr.mxu0 0.0
    %606 = vmatpush1.msra.mxu0 0.0
    %607 = vmatprep.subr.mxu0 0.0
    %608 = vmatpush1.msra.mxu0 0.0
    %609 = vmatprep.subr.mxu0 0.0
    %610 = vmatpush1.msra.mxu0 0.0
    %611 = vmatprep.subr.mxu0 0.0
    %612 = vmatpush1.msra.mxu0 0.0
    %613 = vmatprep.subr.mxu0 0.0
    %614 = vmatpush1.msra.mxu0 0.0
    %615 = vmatprep.subr.mxu0 0.0
    %616 = vmatpush1.msra.mxu0 0.0
    %617 = vmatprep.subr.mxu0 0.0
    %618 = vmatpush1.msra.mxu0 0.0
    %619 = vmatprep.subr.mxu0 0.0
    %620 = vmatpush1.msra.mxu0 0.0
    %621 = vmatprep.subr.mxu0 0.0
    %622 = vmatpush1.msra.mxu0 0.0
    %623 = vmatprep.subr.mxu0 0.0
    %624 = vmatpush1.msra.mxu0 0.0
    %625 = vmatprep.subr.mxu0 0.0
    %626 = vmatpush1.msra.mxu0 0.0
    %627 = vmatprep.subr.mxu0 0.0
    %628 = vmatpush1.msra.mxu0 0.0
    %629 = vmatprep.subr.mxu0 0.0
    %630 = vmatpush1.msra.mxu0 0.0
    %631 = vmatprep.subr.mxu0 0.0
    %632 = vmatpush1.msra.mxu0 0.0
    %633 = vmatprep.subr.mxu0 0.0
    %634 = vmatpush1.msra.mxu0 0.0
    %635 = vmatprep.subr.mxu0 0.0
    %636 = vmatpush1.msra.mxu0 0.0
    %637 = vmatprep.mubr.f32.mxu0 0.0
    %638 = vmatmul.mubr.f32.gmra.mrb[0].mxu0 %v571
    %v639 = vpop.f32.mrb[0].mxu0
    %v640 = vadd.f32 0.0, %v639
    %v641 = vpop.f32.mrb[0].mxu0
    %642 = vdwg.mxu0
    %643 = vrot.lane.b32.xlu0 %v140, 104
    %v644 = vpop.permute.xlu0 %643
    %645 = vrot.lane.b32.xlu0 %v140, 72
    %v646 = vpop.permute.xlu0 %645
    %v647 = vsel %vm151, %v644, 0
    %v649 = vsel %vm151, %v646, 0
    %651 = vmatprep.subr.mxu0 0.0
    %652 = vmatpush1.xpose.msra.mxu0 %v649
    %653 = vmatprep.subr.mxu0 0.0
    %654 = vmatpush1.xpose.msra.mxu0 0.0
    %655 = vmatprep.subr.mxu0 0.0
    %656 = vmatpush1.xpose.msra.mxu0 0.0
    %657 = vmatprep.subr.mxu0 0.0
    %658 = vmatpush1.xpose.msra.mxu0 0.0
    %659 = vmatprep.subr.mxu0 0.0
    %660 = vmatpush1.xpose.msra.mxu0 0.0
    %661 = vmatprep.subr.mxu0 0.0
    %662 = vmatpush1.xpose.msra.mxu0 0.0
    %663 = vmatprep.subr.mxu0 0.0
    %664 = vmatpush1.xpose.msra.mxu0 0.0
    %665 = vmatprep.subr.mxu0 0.0
    %666 = vmatpush1.xpose.msra.mxu0 0.0
    %667 = vmatprep.subr.mxu0 0.0
    %668 = vmatpush1.xpose.msra.mxu0 0.0
    %669 = vmatprep.subr.mxu0 0.0
    %670 = vmatpush1.xpose.msra.mxu0 0.0
    %671 = vmatprep.subr.mxu0 0.0
    %672 = vmatpush1.xpose.msra.mxu0 0.0
    %673 = vmatprep.subr.mxu0 0.0
    %674 = vmatpush1.xpose.msra.mxu0 0.0
    %675 = vmatprep.subr.mxu0 0.0
    %676 = vmatpush1.xpose.msra.mxu0 0.0
    %677 = vmatprep.subr.mxu0 0.0
    %678 = vmatpush1.xpose.msra.mxu0 0.0
    %679 = vmatprep.subr.mxu0 0.0
    %680 = vmatpush1.xpose.msra.mxu0 0.0
    %681 = vmatprep.subr.mxu0 0.0
    %682 = vmatpush1.xpose.msra.mxu0 0.0
    %683 = vmatprep.subr.mxu0 0.0
    %684 = vmatpush1.xpose.msra.mxu0 0.0
    %685 = vmatprep.subr.mxu0 0.0
    %686 = vmatpush1.xpose.msra.mxu0 0.0
    %687 = vmatprep.subr.mxu0 0.0
    %688 = vmatpush1.xpose.msra.mxu0 0.0
    %689 = vmatprep.subr.mxu0 0.0
    %690 = vmatpush1.xpose.msra.mxu0 0.0
    %691 = vmatprep.subr.mxu0 0.0
    %692 = vmatpush1.xpose.msra.mxu0 0.0
    %693 = vmatprep.subr.mxu0 0.0
    %694 = vmatpush1.xpose.msra.mxu0 0.0
    %695 = vmatprep.subr.mxu0 0.0
    %696 = vmatpush1.xpose.msra.mxu0 0.0
    %697 = vmatprep.subr.mxu0 0.0
    %698 = vmatpush1.xpose.msra.mxu0 0.0
    %699 = vmatprep.subr.mxu0 0.0
    %700 = vmatpush1.xpose.msra.mxu0 0.0
    %701 = vmatprep.subr.mxu0 0.0
    %702 = vmatpush1.xpose.msra.mxu0 0.0
    %703 = vmatprep.subr.mxu0 0.0
    %704 = vmatpush1.xpose.msra.mxu0 0.0
    %705 = vmatprep.subr.mxu0 0.0
    %706 = vmatpush1.xpose.msra.mxu0 0.0
    %707 = vmatprep.subr.mxu0 0.0
    %708 = vmatpush1.xpose.msra.mxu0 0.0
    %709 = vmatprep.subr.mxu0 0.0
    %710 = vmatpush1.xpose.msra.mxu0 0.0
    %711 = vmatprep.subr.mxu0 0.0
    %712 = vmatpush1.xpose.msra.mxu0 0.0
    %713 = vmatprep.subr.mxu0 0.0
    %714 = vmatpush1.xpose.msra.mxu0 0.0
    %715 = vmatprep.mubr.f32.mxu0 0.0
    %716 = vmatmul.mubr.f32.gmra.mrb[0].mxu0 %v647
    %v717 = vpop.f32.mrb[0].mxu0
    %v718 = vadd.f32 0.0, %v717
    %v719 = vpop.f32.mrb[0].mxu0
    %720 = vdwg.mxu0
    %v721 = vsel %vm151, %v718, -inf
    %722 = vmax.xlane.f32.xlu0 %v721
    %v723 = vpop.xlane.xlu0 %722
    %v724 = vsub.f32 %v718, %v723
    %v725 = vmul.f32 %v724, 1.442695
    %v726 = vpow.pop %v725
    %v727 = vsel %vm151, %v726, 0.0
    %728 = vadd.xlane.f32.xlu0 %v727
    %v729 = vpop.xlane.xlu0 %728
    %v730 = vrcp.pop %v729
    %v731 = vmul.f32 %v726, %v730
    %732 = vrot.lane.b32.xlu0 %v140, 40
    %v733 = vpop.permute.xlu0 %732
    %v736 = vsel %vm151, %v731, 0
    %738 = vmatprep.subr.mxu0 0.0
    %739 = vmatpush1.msra.mxu0 %v733
    %740 = vmatprep.subr.mxu0 0.0
    %741 = vmatpush1.msra.mxu0 0.0
    %742 = vmatprep.subr.mxu0 0.0
    %743 = vmatpush1.msra.mxu0 0.0
    %744 = vmatprep.subr.mxu0 0.0
    %745 = vmatpush1.msra.mxu0 0.0
    %746 = vmatprep.subr.mxu0 0.0
    %747 = vmatpush1.msra.mxu0 0.0
    %748 = vmatprep.subr.mxu0 0.0
    %749 = vmatpush1.msra.mxu0 0.0
    %750 = vmatprep.subr.mxu0 0.0
    %751 = vmatpush1.msra.mxu0 0.0
    %752 = vmatprep.subr.mxu0 0.0
    %753 = vmatpush1.msra.mxu0 0.0
    %754 = vmatprep.subr.mxu0 0.0
    %755 = vmatpush1.msra.mxu0 0.0
    %756 = vmatprep.subr.mxu0 0.0
    %757 = vmatpush1.msra.mxu0 0.0
    %758 = vmatprep.subr.mxu0 0.0
    %759 = vmatpush1.msra.mxu0 0.0
    %760 = vmatprep.subr.mxu0 0.0
    %761 = vmatpush1.msra.mxu0 0.0
    %762 = vmatprep.subr.mxu0 0.0
    %763 = vmatpush1.msra.mxu0 0.0
    %764 = vmatprep.subr.mxu0 0.0
    %765 = vmatpush1.msra.mxu0 0.0
    %766 = vmatprep.subr.mxu0 0.0
    %767 = vmatpush1.msra.mxu0 0.0
    %768 = vmatprep.subr.mxu0 0.0
    %769 = vmatpush1.msra.mxu0 0.0
    %770 = vmatprep.subr.mxu0 0.0
    %771 = vmatpush1.msra.mxu0 0.0
    %772 = vmatprep.subr.mxu0 0.0
    %773 = vmatpush1.msra.mxu0 0.0
    %774 = vmatprep.subr.mxu0 0.0
    %775 = vmatpush1.msra.mxu0 0.0
    %776 = vmatprep.subr.mxu0 0.0
    %777 = vmatpush1.msra.mxu0 0.0
    %778 = vmatprep.subr.mxu0 0.0
    %779 = vmatpush1.msra.mxu0 0.0
    %780 = vmatprep.subr.mxu0 0.0
    %781 = vmatpush1.msra.mxu0 0.0
    %782 = vmatprep.subr.mxu0 0.0
    %783 = vmatpush1.msra.mxu0 0.0
    %784 = vmatprep.subr.mxu0 0.0
    %785 = vmatpush1.msra.mxu0 0.0
    %786 = vmatprep.subr.mxu0 0.0
    %787 = vmatpush1.msra.mxu0 0.0
    %788 = vmatprep.subr.mxu0 0.0
    %789 = vmatpush1.msra.mxu0 0.0
    %790 = vmatprep.subr.mxu0 0.0
    %791 = vmatpush1.msra.mxu0 0.0
    %792 = vmatprep.subr.mxu0 0.0
    %793 = vmatpush1.msra.mxu0 0.0
    %794 = vmatprep.subr.mxu0 0.0
    %795 = vmatpush1.msra.mxu0 0.0
    %796 = vmatprep.subr.mxu0 0.0
    %797 = vmatpush1.msra.mxu0 0.0
    %798 = vmatprep.subr.mxu0 0.0
    %799 = vmatpush1.msra.mxu0 0.0
    %800 = vmatprep.subr.mxu0 0.0
    %801 = vmatpush1.msra.mxu0 0.0
    %802 = vmatprep.mubr.f32.mxu0 0.0
    %803 = vmatmul.mubr.f32.gmra.mrb[0].mxu0 %v736
    %v804 = vpop.f32.mrb[0].mxu0
    %v805 = vadd.f32 0.0, %v804
    %v806 = vpop.f32.mrb[0].mxu0
    %807 = vdwg.mxu0
    %809 = vrot.lane.b32.xlu0 %v475, 8
    %v810 = vpop.permute.xlu0 %809
    %813 = vrot.lane.b32.xlu0 %v640, 16
    %v814 = vpop.permute.xlu0 %813
    %817 = vrot.lane.b32.xlu0 %v805, 24
    %v818 = vpop.permute.xlu0 %817
    %v820 = vsel %vm151, %v310, %v810
    %vm821 = vcmask 130048
    %v822 = vsel %vm821, %v820, %v814
    %vm823 = vcmask 195584
    %v824 = vsel %vm823, %v822, %v818
    %826 = vrot.lane.b32.xlu0 %v145, 96
    %v827 = vpop.permute.xlu0 %826
    %v828 = vsel %vm151, %v145, 0
    %v830 = vsel %vm151, %v827, 0
    %832 = vmatprep.subr.mxu0 0.0
    %833 = vmatpush1.xpose.msra.mxu0 %v830
    %834 = vmatprep.subr.mxu0 0.0
    %835 = vmatpush1.xpose.msra.mxu0 0.0
    %836 = vmatprep.subr.mxu0 0.0
    %837 = vmatpush1.xpose.msra.mxu0 0.0
    %838 = vmatprep.subr.mxu0 0.0
    %839 = vmatpush1.xpose.msra.mxu0 0.0
    %840 = vmatprep.subr.mxu0 0.0
    %841 = vmatpush1.xpose.msra.mxu0 0.0
    %842 = vmatprep.subr.mxu0 0.0
    %843 = vmatpush1.xpose.msra.mxu0 0.0
    %844 = vmatprep.subr.mxu0 0.0
    %845 = vmatpush1.xpose.msra.mxu0 0.0
    %846 = vmatprep.subr.mxu0 0.0
    %847 = vmatpush1.xpose.msra.mxu0 0.0
    %848 = vmatprep.subr.mxu0 0.0
    %849 = vmatpush1.xpose.msra.mxu0 0.0
    %850 = vmatprep.subr.mxu0 0.0
    %851 = vmatpush1.xpose.msra.mxu0 0.0
    %852 = vmatprep.subr.mxu0 0.0
    %853 = vmatpush1.xpose.msra.mxu0 0.0
    %854 = vmatprep.subr.mxu0 0.0
    %855 = vmatpush1.xpose.msra.mxu0 0.0
    %856 = vmatprep.subr.mxu0 0.0
    %857 = vmatpush1.xpose.msra.mxu0 0.0
    %858 = vmatprep.subr.mxu0 0.0
    %859 = vmatpush1.xpose.msra.mxu0 0.0
    %860 = vmatprep.subr.mxu0 0.0
    %861 = vmatpush1.xpose.msra.mxu0 0.0
    %862 = vmatprep.subr.mxu0 0.0
    %863 = vmatpush1.xpose.msra.mxu0 0.0
    %864 = vmatprep.subr.mxu0 0.0
    %865 = vmatpush1.xpose.msra.mxu0 0.0
    %866 = vmatprep.subr.mxu0 0.0
    %867 = vmatpush1.xpose.msra.mxu0 0.0
    %868 = vmatprep.subr.mxu0 0.0
    %869 = vmatpush1.xpose.msra.mxu0 0.0
    %870 = vmatprep.subr.mxu0 0.0
    %871 = vmatpush1.xpose.msra.mxu0 0.0
    %872 = vmatprep.subr.mxu0 0.0
    %873 = vmatpush1.xpose.msra.mxu0 0.0
    %874 = vmatprep.subr.mxu0 0.0
    %875 = vmatpush1.xpose.msra.mxu0 0.0
    %876 = vmatprep.subr.mxu0 0.0
    %877 = vmatpush1.xpose.msra.mxu0 0.0
    %878 = vmatprep.subr.mxu0 0.0
    %879 = vmatpush1.xpose.msra.mxu0 0.0
    %880 = vmatprep.subr.mxu0 0.0
    %881 = vmatpush1.xpose.msra.mxu0 0.0
    %882 = vmatprep.subr.mxu0 0.0
    %883 = vmatpush1.xpose.msra.mxu0 0.0
    %884 = vmatprep.subr.mxu0 0.0
    %885 = vmatpush1.xpose.msra.mxu0 0.0
    %886 = vmatprep.subr.mxu0 0.0
    %887 = vmatpush1.xpose.msra.mxu0 0.0
    %888 = vmatprep.subr.mxu0 0.0
    %889 = vmatpush1.xpose.msra.mxu0 0.0
    %890 = vmatprep.subr.mxu0 0.0
    %891 = vmatpush1.xpose.msra.mxu0 0.0
    %892 = vmatprep.subr.mxu0 0.0
    %893 = vmatpush1.xpose.msra.mxu0 0.0
    %894 = vmatprep.subr.mxu0 0.0
    %895 = vmatpush1.xpose.msra.mxu0 0.0
    %896 = vmatprep.mubr.f32.mxu0 0.0
    %897 = vmatmul.mubr.f32.gmra.mrb[0].mxu0 %v828
    %v898 = vpop.f32.mrb[0].mxu0
    %v899 = vadd.f32 0.0, %v898
    %v900 = vpop.f32.mrb[0].mxu0
    %901 = vdwg.mxu0
    %v902 = vsel %vm151, %v899, -inf
    %903 = vmax.xlane.f32.xlu0 %v902
    %v904 = vpop.xlane.xlu0 %903
    %v905 = vsub.f32 %v899, %v904
    %v906 = vmul.f32 %v905, 1.442695
    %v907 = vpow.pop %v906
    %v908 = vsel %vm151, %v907, 0.0
    %909 = vadd.xlane.f32.xlu0 %v908
    %v910 = vpop.xlane.xlu0 %909
    %v911 = vrcp.pop %v910
    %v912 = vmul.f32 %v907, %v911
    %913 = vrot.lane.b32.xlu0 %v145, 64
    %v914 = vpop.permute.xlu0 %913
    %v917 = vsel %vm151, %v912, 0
    %919 = vmatprep.subr.mxu0 0.0
    %920 = vmatpush1.msra.mxu0 %v914
    %921 = vmatprep.subr.mxu0 0.0
    %922 = vmatpush1.msra.mxu0 0.0
    %923 = vmatprep.subr.mxu0 0.0
    %924 = vmatpush1.msra.mxu0 0.0
    %925 = vmatprep.subr.mxu0 0.0
    %926 = vmatpush1.msra.mxu0 0.0
    %927 = vmatprep.subr.mxu0 0.0
    %928 = vmatpush1.msra.mxu0 0.0
    %929 = vmatprep.subr.mxu0 0.0
    %930 = vmatpush1.msra.mxu0 0.0
    %931 = vmatprep.subr.mxu0 0.0
    %932 = vmatpush1.msra.mxu0 0.0
    %933 = vmatprep.subr.mxu0 0.0
    %934 = vmatpush1.msra.mxu0 0.0
    %935 = vmatprep.subr.mxu0 0.0
    %936 = vmatpush1.msra.mxu0 0.0
    %937 = vmatprep.subr.mxu0 0.0
    %938 = vmatpush1.msra.mxu0 0.0
    %939 = vmatprep.subr.mxu0 0.0
    %940 = vmatpush1.msra.mxu0 0.0
    %941 = vmatprep.subr.mxu0 0.0
    %942 = vmatpush1.msra.mxu0 0.0
    %943 = vmatprep.subr.mxu0 0.0
    %944 = vmatpush1.msra.mxu0 0.0
    %945 = vmatprep.subr.mxu0 0.0
    %946 = vmatpush1.msra.mxu0 0.0
    %947 = vmatprep.subr.mxu0 0.0
    %948 = vmatpush1.msra.mxu0 0.0
    %949 = vmatprep.subr.mxu0 0.0
    %950 = vmatpush1.msra.mxu0 0.0
    %951 = vmatprep.subr.mxu0 0.0
    %952 = vmatpush1.msra.mxu0 0.0
    %953 = vmatprep.subr.mxu0 0.0
    %954 = vmatpush1.msra.mxu0 0.0
    %955 = vmatprep.subr.mxu0 0.0
    %956 = vmatpush1.msra.mxu0 0.0
    %957 = vmatprep.subr.mxu0 0.0
    %958 = vmatpush1.msra.mxu0 0.0
    %959 = vmatprep.subr.mxu0 0.0
    %960 = vmatpush1.msra.mxu0 0.0
    %961 = vmatprep.subr.mxu0 0.0
    %962 = vmatpush1.msra.mxu0 0.0
    %963 = vmatprep.subr.mxu0 0.0
    %964 = vmatpush1.msra.mxu0 0.0
    %965 = vmatprep.subr.mxu0 0.0
    %966 = vmatpush1.msra.mxu0 0.0
    %967 = vmatprep.subr.mxu0 0.0
    %968 = vmatpush1.msra.mxu0 0.0
    %969 = vmatprep.subr.mxu0 0.0
    %970 = vmatpush1.msra.mxu0 0.0
    %971 = vmatprep.subr.mxu0 0.0
    %972 = vmatpush1.msra.mxu0 0.0
    %973 = vmatprep.subr.mxu0 0.0
    %974 = vmatpush1.msra.mxu0 0.0
    %975 = vmatprep.subr.mxu0 0.0
    %976 = vmatpush1.msra.mxu0 0.0
    %977 = vmatprep.subr.mxu0 0.0
    %978 = vmatpush1.msra.mxu0 0.0
    %979 = vmatprep.subr.mxu0 0.0
    %980 = vmatpush1.msra.mxu0 0.0
    %981 = vmatprep.subr.mxu0 0.0
    %982 = vmatpush1.msra.mxu0 0.0
    %983 = vmatprep.mubr.f32.mxu0 0.0
    %984 = vmatmul.mubr.f32.gmra.mrb[0].mxu0 %v917
    %v985 = vpop.f32.mrb[0].mxu0
    %v986 = vadd.f32 0.0, %v985
    %v987 = vpop.f32.mrb[0].mxu0
    %988 = vdwg.mxu0
    %989 = vrot.lane.b32.xlu0 %v145, 120
    %v990 = vpop.permute.xlu0 %989
    %991 = vrot.lane.b32.xlu0 %v145, 88
    %v992 = vpop.permute.xlu0 %991
    %v993 = vsel %vm151, %v990, 0
    %v995 = vsel %vm151, %v992, 0
    %997 = vmatprep.subr.mxu0 0.0
    %998 = vmatpush1.xpose.msra.mxu0 %v995
    %999 = vmatprep.subr.mxu0 0.0
    %1000 = vmatpush1.xpose.msra.mxu0 0.0
    %1001 = vmatprep.subr.mxu0 0.0
    %1002 = vmatpush1.xpose.msra.mxu0 0.0
    %1003 = vmatprep.subr.mxu0 0.0
    %1004 = vmatpush1.xpose.msra.mxu0 0.0
    %1005 = vmatprep.subr.mxu0 0.0
    %1006 = vmatpush1.xpose.msra.mxu0 0.0
    %1007 = vmatprep.subr.mxu0 0.0
    %1008 = vmatpush1.xpose.msra.mxu0 0.0
    %1009 = vmatprep.subr.mxu0 0.0
    %1010 = vmatpush1.xpose.msra.mxu0 0.0
    %1011 = vmatprep.subr.mxu0 0.0
    %1012 = vmatpush1.xpose.msra.mxu0 0.0
    %1013 = vmatprep.subr.mxu0 0.0
    %1014 = vmatpush1.xpose.msra.mxu0 0.0
    %1015 = vmatprep.subr.mxu0 0.0
    %1016 = vmatpush1.xpose.msra.mxu0 0.0
    %1017 = vmatprep.subr.mxu0 0.0
    %1018 = vmatpush1.xpose.msra.mxu0 0.0
    %1019 = vmatprep.subr.mxu0 0.0
    %1020 = vmatpush1.xpose.msra.mxu0 0.0
    %1021 = vmatprep.subr.mxu0 0.0
    %1022 = vmatpush1.xpose.msra.mxu0 0.0
    %1023 = vmatprep.subr.mxu0 0.0
    %1024 = vmatpush1.xpose.msra.mxu0 0.0
    %1025 = vmatprep.subr.mxu0 0.0
    %1026 = vmatpush1.xpose.msra.mxu0 0.0
    %1027 = vmatprep.subr.mxu0 0.0
    %1028 = vmatpush1.xpose.msra.mxu0 0.0
    %1029 = vmatprep.subr.mxu0 0.0
    %1030 = vmatpush1.xpose.msra.mxu0 0.0
    %1031 = vmatprep.subr.mxu0 0.0
    %1032 = vmatpush1.xpose.msra.mxu0 0.0
    %1033 = vmatprep.subr.mxu0 0.0
    %1034 = vmatpush1.xpose.msra.mxu0 0.0
    %1035 = vmatprep.subr.mxu0 0.0
    %1036 = vmatpush1.xpose.msra.mxu0 0.0
    %1037 = vmatprep.subr.mxu0 0.0
    %1038 = vmatpush1.xpose.msra.mxu0 0.0
    %1039 = vmatprep.subr.mxu0 0.0
    %1040 = vmatpush1.xpose.msra.mxu0 0.0
    %1041 = vmatprep.subr.mxu0 0.0
    %1042 = vmatpush1.xpose.msra.mxu0 0.0
    %1043 = vmatprep.subr.mxu0 0.0
    %1044 = vmatpush1.xpose.msra.mxu0 0.0
    %1045 = vmatprep.subr.mxu0 0.0
    %1046 = vmatpush1.xpose.msra.mxu0 0.0
    %1047 = vmatprep.subr.mxu0 0.0
    %1048 = vmatpush1.xpose.msra.mxu0 0.0
    %1049 = vmatprep.subr.mxu0 0.0
    %1050 = vmatpush1.xpose.msra.mxu0 0.0
    %1051 = vmatprep.subr.mxu0 0.0
    %1052 = vmatpush1.xpose.msra.mxu0 0.0
    %1053 = vmatprep.subr.mxu0 0.0
    %1054 = vmatpush1.xpose.msra.mxu0 0.0
    %1055 = vmatprep.subr.mxu0 0.0
    %1056 = vmatpush1.xpose.msra.mxu0 0.0
    %1057 = vmatprep.subr.mxu0 0.0
    %1058 = vmatpush1.xpose.msra.mxu0 0.0
    %1059 = vmatprep.subr.mxu0 0.0
    %1060 = vmatpush1.xpose.msra.mxu0 0.0
    %1061 = vmatprep.mubr.f32.mxu0 0.0
    %1062 = vmatmul.mubr.f32.gmra.mrb[0].mxu0 %v993
    %v1063 = vpop.f32.mrb[0].mxu0
    %v1064 = vadd.f32 0.0, %v1063
    %v1065 = vpop.f32.mrb[0].mxu0
    %1066 = vdwg.mxu0
    %v1067 = vsel %vm151, %v1064, -inf
    %1068 = vmax.xlane.f32.xlu0 %v1067
    %v1069 = vpop.xlane.xlu0 %1068
    %v1070 = vsub.f32 %v1064, %v1069
    %v1071 = vmul.f32 %v1070, 1.442695
    %v1072 = vpow.pop %v1071
    %v1073 = vsel %vm151, %v1072, 0.0
    %1074 = vadd.xlane.f32.xlu0 %v1073
    %v1075 = vpop.xlane.xlu0 %1074
    %v1076 = vrcp.pop %v1075
    %v1077 = vmul.f32 %v1072, %v1076
    %1078 = vrot.lane.b32.xlu0 %v145, 56
    %v1079 = vpop.permute.xlu0 %1078
    %v1082 = vsel %vm151, %v1077, 0
    %1084 = vmatprep.subr.mxu0 0.0
    %1085 = vmatpush1.msra.mxu0 %v1079
    %1086 = vmatprep.subr.mxu0 0.0
    %1087 = vmatpush1.msra.mxu0 0.0
    %1088 = vmatprep.subr.mxu0 0.0
    %1089 = vmatpush1.msra.mxu0 0.0
    %1090 = vmatprep.subr.mxu0 0.0
    %1091 = vmatpush1.msra.mxu0 0.0
    %1092 = vmatprep.subr.mxu0 0.0
    %1093 = vmatpush1.msra.mxu0 0.0
    %1094 = vmatprep.subr.mxu0 0.0
    %1095 = vmatpush1.msra.mxu0 0.0
    %1096 = vmatprep.subr.mxu0 0.0
    %1097 = vmatpush1.msra.mxu0 0.0
    %1098 = vmatprep.subr.mxu0 0.0
    %1099 = vmatpush1.msra.mxu0 0.0
    %1100 = vmatprep.subr.mxu0 0.0
    %1101 = vmatpush1.msra.mxu0 0.0
    %1102 = vmatprep.subr.mxu0 0.0
    %1103 = vmatpush1.msra.mxu0 0.0
    %1104 = vmatprep.subr.mxu0 0.0
    %1105 = vmatpush1.msra.mxu0 0.0
    %1106 = vmatprep.subr.mxu0 0.0
    %1107 = vmatpush1.msra.mxu0 0.0
    %1108 = vmatprep.subr.mxu0 0.0
    %1109 = vmatpush1.msra.mxu0 0.0
    %1110 = vmatprep.subr.mxu0 0.0
    %1111 = vmatpush1.msra.mxu0 0.0
    %1112 = vmatprep.subr.mxu0 0.0
    %1113 = vmatpush1.msra.mxu0 0.0
    %1114 = vmatprep.subr.mxu0 0.0
    %1115 = vmatpush1.msra.mxu0 0.0
    %1116 = vmatprep.subr.mxu0 0.0
    %1117 = vmatpush1.msra.mxu0 0.0
    %1118 = vmatprep.subr.mxu0 0.0
    %1119 = vmatpush1.msra.mxu0 0.0
    %1120 = vmatprep.subr.mxu0 0.0
    %1121 = vmatpush1.msra.mxu0 0.0
    %1122 = vmatprep.subr.mxu0 0.0
    %1123 = vmatpush1.msra.mxu0 0.0
    %1124 = vmatprep.subr.mxu0 0.0
    %1125 = vmatpush1.msra.mxu0 0.0
    %1126 = vmatprep.subr.mxu0 0.0
    %1127 = vmatpush1.msra.mxu0 0.0
    %1128 = vmatprep.subr.mxu0 0.0
    %1129 = vmatpush1.msra.mxu0 0.0
    %1130 = vmatprep.subr.mxu0 0.0
    %1131 = vmatpush1.msra.mxu0 0.0
    %1132 = vmatprep.subr.mxu0 0.0
    %1133 = vmatpush1.msra.mxu0 0.0
    %1134 = vmatprep.subr.mxu0 0.0
    %1135 = vmatpush1.msra.mxu0 0.0
    %1136 = vmatprep.subr.mxu0 0.0
    %1137 = vmatpush1.msra.mxu0 0.0
    %1138 = vmatprep.subr.mxu0 0.0
    %1139 = vmatpush1.msra.mxu0 0.0
    %1140 = vmatprep.subr.mxu0 0.0
    %1141 = vmatpush1.msra.mxu0 0.0
    %1142 = vmatprep.subr.mxu0 0.0
    %1143 = vmatpush1.msra.mxu0 0.0
    %1144 = vmatprep.subr.mxu0 0.0
    %1145 = vmatpush1.msra.mxu0 0.0
    %1146 = vmatprep.subr.mxu0 0.0
    %1147 = vmatpush1.msra.mxu0 0.0
    %1148 = vmatprep.mubr.f32.mxu0 0.0
    %1149 = vmatmul.mubr.f32.gmra.mrb[0].mxu0 %v1082
    %v1150 = vpop.f32.mrb[0].mxu0
    %v1151 = vadd.f32 0.0, %v1150
    %v1152 = vpop.f32.mrb[0].mxu0
    %1153 = vdwg.mxu0
    %1154 = vrot.lane.b32.xlu0 %v145, 112
    %v1155 = vpop.permute.xlu0 %1154
    %1156 = vrot.lane.b32.xlu0 %v145, 80
    %v1157 = vpop.permute.xlu0 %1156
    %v1158 = vsel %vm151, %v1155, 0
    %v1160 = vsel %vm151, %v1157, 0
    %1162 = vmatprep.subr.mxu0 0.0
    %1163 = vmatpush1.xpose.msra.mxu0 %v1160
    %1164 = vmatprep.subr.mxu0 0.0
    %1165 = vmatpush1.xpose.msra.mxu0 0.0
    %1166 = vmatprep.subr.mxu0 0.0
    %1167 = vmatpush1.xpose.msra.mxu0 0.0
    %1168 = vmatprep.subr.mxu0 0.0
    %1169 = vmatpush1.xpose.msra.mxu0 0.0
    %1170 = vmatprep.subr.mxu0 0.0
    %1171 = vmatpush1.xpose.msra.mxu0 0.0
    %1172 = vmatprep.subr.mxu0 0.0
    %1173 = vmatpush1.xpose.msra.mxu0 0.0
    %1174 = vmatprep.subr.mxu0 0.0
    %1175 = vmatpush1.xpose.msra.mxu0 0.0
    %1176 = vmatprep.subr.mxu0 0.0
    %1177 = vmatpush1.xpose.msra.mxu0 0.0
    %1178 = vmatprep.subr.mxu0 0.0
    %1179 = vmatpush1.xpose.msra.mxu0 0.0
    %1180 = vmatprep.subr.mxu0 0.0
    %1181 = vmatpush1.xpose.msra.mxu0 0.0
    %1182 = vmatprep.subr.mxu0 0.0
    %1183 = vmatpush1.xpose.msra.mxu0 0.0
    %1184 = vmatprep.subr.mxu0 0.0
    %1185 = vmatpush1.xpose.msra.mxu0 0.0
    %1186 = vmatprep.subr.mxu0 0.0
    %1187 = vmatpush1.xpose.msra.mxu0 0.0
    %1188 = vmatprep.subr.mxu0 0.0
    %1189 = vmatpush1.xpose.msra.mxu0 0.0
    %1190 = vmatprep.subr.mxu0 0.0
    %1191 = vmatpush1.xpose.msra.mxu0 0.0
    %1192 = vmatprep.subr.mxu0 0.0
    %1193 = vmatpush1.xpose.msra.mxu0 0.0
    %1194 = vmatprep.subr.mxu0 0.0
    %1195 = vmatpush1.xpose.msra.mxu0 0.0
    %1196 = vmatprep.subr.mxu0 0.0
    %1197 = vmatpush1.xpose.msra.mxu0 0.0
    %1198 = vmatprep.subr.mxu0 0.0
    %1199 = vmatpush1.xpose.msra.mxu0 0.0
    %1200 = vmatprep.subr.mxu0 0.0
    %1201 = vmatpush1.xpose.msra.mxu0 0.0
    %1202 = vmatprep.subr.mxu0 0.0
    %1203 = vmatpush1.xpose.msra.mxu0 0.0
    %1204 = vmatprep.subr.mxu0 0.0
    %1205 = vmatpush1.xpose.msra.mxu0 0.0
    %1206 = vmatprep.subr.mxu0 0.0
    %1207 = vmatpush1.xpose.msra.mxu0 0.0
    %1208 = vmatprep.subr.mxu0 0.0
    %1209 = vmatpush1.xpose.msra.mxu0 0.0
    %1210 = vmatprep.subr.mxu0 0.0
    %1211 = vmatpush1.xpose.msra.mxu0 0.0
    %1212 = vmatprep.subr.mxu0 0.0
    %1213 = vmatpush1.xpose.msra.mxu0 0.0
    %1214 = vmatprep.subr.mxu0 0.0
    %1215 = vmatpush1.xpose.msra.mxu0 0.0
    %1216 = vmatprep.subr.mxu0 0.0
    %1217 = vmatpush1.xpose.msra.mxu0 0.0
    %1218 = vmatprep.subr.mxu0 0.0
    %1219 = vmatpush1.xpose.msra.mxu0 0.0
    %1220 = vmatprep.subr.mxu0 0.0
    %1221 = vmatpush1.xpose.msra.mxu0 0.0
    %1222 = vmatprep.subr.mxu0 0.0
    %1223 = vmatpush1.xpose.msra.mxu0 0.0
    %1224 = vmatprep.subr.mxu0 0.0
    %1225 = vmatpush1.xpose.msra.mxu0 0.0
    %1226 = vmatprep.mubr.f32.mxu0 0.0
    %1227 = vmatmul.mubr.f32.gmra.mrb[0].mxu0 %v1158
    %v1228 = vpop.f32.mrb[0].mxu0
    %v1229 = vadd.f32 0.0, %v1228
    %v1230 = vpop.f32.mrb[0].mxu0
    %1231 = vdwg.mxu0
    %v1232 = vsel %vm151, %v1229, -inf
    %1233 = vmax.xlane.f32.xlu0 %v1232
    %v1234 = vpop.xlane.xlu0 %1233
    %v1235 = vsub.f32 %v1229, %v1234
    %v1236 = vmul.f32 %v1235, 1.442695
    %v1237 = vpow.pop %v1236
    %v1238 = vsel %vm151, %v1237, 0.0
    %1239 = vadd.xlane.f32.xlu0 %v1238
    %v1240 = vpop.xlane.xlu0 %1239
    %v1241 = vrcp.pop %v1240
    %v1242 = vmul.f32 %v1237, %v1241
    %1243 = vrot.lane.b32.xlu0 %v145, 48
    %v1244 = vpop.permute.xlu0 %1243
    %v1247 = vsel %vm151, %v1242, 0
    %1249 = vmatprep.subr.mxu0 0.0
    %1250 = vmatpush1.msra.mxu0 %v1244
    %1251 = vmatprep.subr.mxu0 0.0
    %1252 = vmatpush1.msra.mxu0 0.0
    %1253 = vmatprep.subr.mxu0 0.0
    %1254 = vmatpush1.msra.mxu0 0.0
    %1255 = vmatprep.subr.mxu0 0.0
    %1256 = vmatpush1.msra.mxu0 0.0
    %1257 = vmatprep.subr.mxu0 0.0
    %1258 = vmatpush1.msra.mxu0 0.0
    %1259 = vmatprep.subr.mxu0 0.0
    %1260 = vmatpush1.msra.mxu0 0.0
    %1261 = vmatprep.subr.mxu0 0.0
    %1262 = vmatpush1.msra.mxu0 0.0
    %1263 = vmatprep.subr.mxu0 0.0
    %1264 = vmatpush1.msra.mxu0 0.0
    %1265 = vmatprep.subr.mxu0 0.0
    %1266 = vmatpush1.msra.mxu0 0.0
    %1267 = vmatprep.subr.mxu0 0.0
    %1268 = vmatpush1.msra.mxu0 0.0
    %1269 = vmatprep.subr.mxu0 0.0
    %1270 = vmatpush1.msra.mxu0 0.0
    %1271 = vmatprep.subr.mxu0 0.0
    %1272 = vmatpush1.msra.mxu0 0.0
    %1273 = vmatprep.subr.mxu0 0.0
    %1274 = vmatpush1.msra.mxu0 0.0
    %1275 = vmatprep.subr.mxu0 0.0
    %1276 = vmatpush1.msra.mxu0 0.0
    %1277 = vmatprep.subr.mxu0 0.0
    %1278 = vmatpush1.msra.mxu0 0.0
    %1279 = vmatprep.subr.mxu0 0.0
    %1280 = vmatpush1.msra.mxu0 0.0
    %1281 = vmatprep.subr.mxu0 0.0
    %1282 = vmatpush1.msra.mxu0 0.0
    %1283 = vmatprep.subr.mxu0 0.0
    %1284 = vmatpush1.msra.mxu0 0.0
    %1285 = vmatprep.subr.mxu0 0.0
    %1286 = vmatpush1.msra.mxu0 0.0
    %1287 = vmatprep.subr.mxu0 0.0
    %1288 = vmatpush1.msra.mxu0 0.0
    %1289 = vmatprep.subr.mxu0 0.0
    %1290 = vmatpush1.msra.mxu0 0.0
    %1291 = vmatprep.subr.mxu0 0.0
    %1292 = vmatpush1.msra.mxu0 0.0
    %1293 = vmatprep.subr.mxu0 0.0
    %1294 = vmatpush1.msra.mxu0 0.0
    %1295 = vmatprep.subr.mxu0 0.0
    %1296 = vmatpush1.msra.mxu0 0.0
    %1297 = vmatprep.subr.mxu0 0.0
    %1298 = vmatpush1.msra.mxu0 0.0
    %1299 = vmatprep.subr.mxu0 0.0
    %1300 = vmatpush1.msra.mxu0 0.0
    %1301 = vmatprep.subr.mxu0 0.0
    %1302 = vmatpush1.msra.mxu0 0.0
    %1303 = vmatprep.subr.mxu0 0.0
    %1304 = vmatpush1.msra.mxu0 0.0
    %1305 = vmatprep.subr.mxu0 0.0
    %1306 = vmatpush1.msra.mxu0 0.0
    %1307 = vmatprep.subr.mxu0 0.0
    %1308 = vmatpush1.msra.mxu0 0.0
    %1309 = vmatprep.subr.mxu0 0.0
    %1310 = vmatpush1.msra.mxu0 0.0
    %1311 = vmatprep.subr.mxu0 0.0
    %1312 = vmatpush1.msra.mxu0 0.0
    %1313 = vmatprep.mubr.f32.mxu0 0.0
    %1314 = vmatmul.mubr.f32.gmra.mrb[0].mxu0 %v1247
    %v1315 = vpop.f32.mrb[0].mxu0
    %v1316 = vadd.f32 0.0, %v1315
    %v1317 = vpop.f32.mrb[0].mxu0
    %1318 = vdwg.mxu0
    %1319 = vrot.lane.b32.xlu0 %v145, 104
    %v1320 = vpop.permute.xlu0 %1319
    %1321 = vrot.lane.b32.xlu0 %v145, 72
    %v1322 = vpop.permute.xlu0 %1321
    %v1323 = vsel %vm151, %v1320, 0
    %v1325 = vsel %vm151, %v1322, 0
    %1327 = vmatprep.subr.mxu0 0.0
    %1328 = vmatpush1.xpose.msra.mxu0 %v1325
    %1329 = vmatprep.subr.mxu0 0.0
    %1330 = vmatpush1.xpose.msra.mxu0 0.0
    %1331 = vmatprep.subr.mxu0 0.0
    %1332 = vmatpush1.xpose.msra.mxu0 0.0
    %1333 = vmatprep.subr.mxu0 0.0
    %1334 = vmatpush1.xpose.msra.mxu0 0.0
    %1335 = vmatprep.subr.mxu0 0.0
    %1336 = vmatpush1.xpose.msra.mxu0 0.0
    %1337 = vmatprep.subr.mxu0 0.0
    %1338 = vmatpush1.xpose.msra.mxu0 0.0
    %1339 = vmatprep.subr.mxu0 0.0
    %1340 = vmatpush1.xpose.msra.mxu0 0.0
    %1341 = vmatprep.subr.mxu0 0.0
    %1342 = vmatpush1.xpose.msra.mxu0 0.0
    %1343 = vmatprep.subr.mxu0 0.0
    %1344 = vmatpush1.xpose.msra.mxu0 0.0
    %1345 = vmatprep.subr.mxu0 0.0
    %1346 = vmatpush1.xpose.msra.mxu0 0.0
    %1347 = vmatprep.subr.mxu0 0.0
    %1348 = vmatpush1.xpose.msra.mxu0 0.0
    %1349 = vmatprep.subr.mxu0 0.0
    %1350 = vmatpush1.xpose.msra.mxu0 0.0
    %1351 = vmatprep.subr.mxu0 0.0
    %1352 = vmatpush1.xpose.msra.mxu0 0.0
    %1353 = vmatprep.subr.mxu0 0.0
    %1354 = vmatpush1.xpose.msra.mxu0 0.0
    %1355 = vmatprep.subr.mxu0 0.0
    %1356 = vmatpush1.xpose.msra.mxu0 0.0
    %1357 = vmatprep.subr.mxu0 0.0
    %1358 = vmatpush1.xpose.msra.mxu0 0.0
    %1359 = vmatprep.subr.mxu0 0.0
    %1360 = vmatpush1.xpose.msra.mxu0 0.0
    %1361 = vmatprep.subr.mxu0 0.0
    %1362 = vmatpush1.xpose.msra.mxu0 0.0
    %1363 = vmatprep.subr.mxu0 0.0
    %1364 = vmatpush1.xpose.msra.mxu0 0.0
    %1365 = vmatprep.subr.mxu0 0.0
    %1366 = vmatpush1.xpose.msra.mxu0 0.0
    %1367 = vmatprep.subr.mxu0 0.0
    %1368 = vmatpush1.xpose.msra.mxu0 0.0
    %1369 = vmatprep.subr.mxu0 0.0
    %1370 = vmatpush1.xpose.msra.mxu0 0.0
    %1371 = vmatprep.subr.mxu0 0.0
    %1372 = vmatpush1.xpose.msra.mxu0 0.0
    %1373 = vmatprep.subr.mxu0 0.0
    %1374 = vmatpush1.xpose.msra.mxu0 0.0
    %1375 = vmatprep.subr.mxu0 0.0
    %1376 = vmatpush1.xpose.msra.mxu0 0.0
    %1377 = vmatprep.subr.mxu0 0.0
    %1378 = vmatpush1.xpose.msra.mxu0 0.0
    %1379 = vmatprep.subr.mxu0 0.0
    %1380 = vmatpush1.xpose.msra.mxu0 0.0
    %1381 = vmatprep.subr.mxu0 0.0
    %1382 = vmatpush1.xpose.msra.mxu0 0.0
    %1383 = vmatprep.subr.mxu0 0.0
    %1384 = vmatpush1.xpose.msra.mxu0 0.0
    %1385 = vmatprep.subr.mxu0 0.0
    %1386 = vmatpush1.xpose.msra.mxu0 0.0
    %1387 = vmatprep.subr.mxu0 0.0
    %1388 = vmatpush1.xpose.msra.mxu0 0.0
    %1389 = vmatprep.subr.mxu0 0.0
    %1390 = vmatpush1.xpose.msra.mxu0 0.0
    %1391 = vmatprep.mubr.f32.mxu0 0.0
    %1392 = vmatmul.mubr.f32.gmra.mrb[0].mxu0 %v1323
    %v1393 = vpop.f32.mrb[0].mxu0
    %v1394 = vadd.f32 0.0, %v1393
    %v1395 = vpop.f32.mrb[0].mxu0
    %1396 = vdwg.mxu0
    %v1397 = vsel %vm151, %v1394, -inf
    %1398 = vmax.xlane.f32.xlu0 %v1397
    %v1399 = vpop.xlane.xlu0 %1398
    %v1400 = vsub.f32 %v1394, %v1399
    %v1401 = vmul.f32 %v1400, 1.442695
    %v1402 = vpow.pop %v1401
    %v1403 = vsel %vm151, %v1402, 0.0
    %1404 = vadd.xlane.f32.xlu0 %v1403
    %v1405 = vpop.xlane.xlu0 %1404
    %v1406 = vrcp.pop %v1405
    %v1407 = vmul.f32 %v1402, %v1406
    %1408 = vrot.lane.b32.xlu0 %v145, 40
    %v1409 = vpop.permute.xlu0 %1408
    %v1412 = vsel %vm151, %v1407, 0
    %1414 = vmatprep.subr.mxu0 0.0
    %1415 = vmatpush1.msra.mxu0 %v1409
    %1416 = vmatprep.subr.mxu0 0.0
    %1417 = vmatpush1.msra.mxu0 0.0
    %1418 = vmatprep.subr.mxu0 0.0
    %1419 = vmatpush1.msra.mxu0 0.0
    %1420 = vmatprep.subr.mxu0 0.0
    %1421 = vmatpush1.msra.mxu0 0.0
    %1422 = vmatprep.subr.mxu0 0.0
    %1423 = vmatpush1.msra.mxu0 0.0
    %1424 = vmatprep.subr.mxu0 0.0
    %1425 = vmatpush1.msra.mxu0 0.0
    %1426 = vmatprep.subr.mxu0 0.0
    %1427 = vmatpush1.msra.mxu0 0.0
    %1428 = vmatprep.subr.mxu0 0.0
    %1429 = vmatpush1.msra.mxu0 0.0
    %1430 = vmatprep.subr.mxu0 0.0
    %1431 = vmatpush1.msra.mxu0 0.0
    %1432 = vmatprep.subr.mxu0 0.0
    %1433 = vmatpush1.msra.mxu0 0.0
    %1434 = vmatprep.subr.mxu0 0.0
    %1435 = vmatpush1.msra.mxu0 0.0
    %1436 = vmatprep.subr.mxu0 0.0
    %1437 = vmatpush1.msra.mxu0 0.0
    %1438 = vmatprep.subr.mxu0 0.0
    %1439 = vmatpush1.msra.mxu0 0.0
    %1440 = vmatprep.subr.mxu0 0.0
    %1441 = vmatpush1.msra.mxu0 0.0
    %1442 = vmatprep.subr.mxu0 0.0
    %1443 = vmatpush1.msra.mxu0 0.0
    %1444 = vmatprep.subr.mxu0 0.0
    %1445 = vmatpush1.msra.mxu0 0.0
    %1446 = vmatprep.subr.mxu0 0.0
    %1447 = vmatpush1.msra.mxu0 0.0
    %1448 = vmatprep.subr.mxu0 0.0
    %1449 = vmatpush1.msra.mxu0 0.0
    %1450 = vmatprep.subr.mxu0 0.0
    %1451 = vmatpush1.msra.mxu0 0.0
    %1452 = vmatprep.subr.mxu0 0.0
    %1453 = vmatpush1.msra.mxu0 0.0
    %1454 = vmatprep.subr.mxu0 0.0
    %1455 = vmatpush1.msra.mxu0 0.0
    %1456 = vmatprep.subr.mxu0 0.0
    %1457 = vmatpush1.msra.mxu0 0.0
    %1458 = vmatprep.subr.mxu0 0.0
    %1459 = vmatpush1.msra.mxu0 0.0
    %1460 = vmatprep.subr.mxu0 0.0
    %1461 = vmatpush1.msra.mxu0 0.0
    %1462 = vmatprep.subr.mxu0 0.0
    %1463 = vmatpush1.msra.mxu0 0.0
    %1464 = vmatprep.subr.mxu0 0.0
    %1465 = vmatpush1.msra.mxu0 0.0
    %1466 = vmatprep.subr.mxu0 0.0
    %1467 = vmatpush1.msra.mxu0 0.0
    %1468 = vmatprep.subr.mxu0 0.0
    %1469 = vmatpush1.msra.mxu0 0.0
    %1470 = vmatprep.subr.mxu0 0.0
    %1471 = vmatpush1.msra.mxu0 0.0
    %1472 = vmatprep.subr.mxu0 0.0
    %1473 = vmatpush1.msra.mxu0 0.0
    %1474 = vmatprep.subr.mxu0 0.0
    %1475 = vmatpush1.msra.mxu0 0.0
    %1476 = vmatprep.subr.mxu0 0.0
    %1477 = vmatpush1.msra.mxu0 0.0
    %1478 = vmatprep.mubr.f32.mxu0 0.0
    %1479 = vmatmul.mubr.f32.gmra.mrb[0].mxu0 %v1412
    %v1480 = vpop.f32.mrb[0].mxu0
    %v1481 = vadd.f32 0.0, %v1480
    %v1482 = vpop.f32.mrb[0].mxu0
    %1483 = vdwg.mxu0
    %1485 = vrot.lane.b32.xlu0 %v1151, 8
    %v1486 = vpop.permute.xlu0 %1485
    %1489 = vrot.lane.b32.xlu0 %v1316, 16
    %v1490 = vpop.permute.xlu0 %1489
    %1493 = vrot.lane.b32.xlu0 %v1481, 24
    %v1494 = vpop.permute.xlu0 %1493
    %v1496 = vsel %vm151, %v986, %v1486
    %v1497 = vsel %vm821, %v1496, %v1490
    %v1498 = vsel %vm823, %v1497, %v1494
    %v1499 = vlaneseq
    %v1500 = vshrl.u32 %v1499, 7
    %v1501 = vsub.s32 0, %v1500
    %v1502 = vrot.slane %v59, %v1501
    %1507 = vrot.lane.b32.xlu0 %v35, 32
    %v1508 = vpop.permute.xlu0 %1507
    %1509 = vrot.lane.b32.xlu0 %v36, 32
    %v1510 = vpop.permute.xlu0 %1509
    %1511 = vrot.lane.b32.xlu0 %v37, 32
    %v1512 = vpop.permute.xlu0 %1511
    %1513 = vrot.lane.b32.xlu0 %v38, 32
    %v1514 = vpop.permute.xlu0 %1513
    %v1520 = vsel %vm66, %v824, 0
    %v1523 = vsel %vm66, %v1498, 0
    %1525 = vmatprep.subr.mxu0 0.0
    %1526 = vmatpush1.msra.mxu0 %v1508
    %1527 = vmatprep.subr.mxu0 0.0
    %1528 = vmatpush1.msra.mxu0 %v1510
    %1529 = vmatprep.subr.mxu0 0.0
    %1530 = vmatpush1.msra.mxu0 %v1512
    %1531 = vmatprep.subr.mxu0 0.0
    %1532 = vmatpush1.msra.mxu0 %v1514
    %1533 = vmatprep.subr.mxu0 0.0
    %1534 = vmatpush1.msra.mxu0 0.0
    %1535 = vmatprep.subr.mxu0 0.0
    %1536 = vmatpush1.msra.mxu0 0.0
    %1537 = vmatprep.subr.mxu0 0.0
    %1538 = vmatpush1.msra.mxu0 0.0
    %1539 = vmatprep.subr.mxu0 0.0
    %1540 = vmatpush1.msra.mxu0 0.0
    %1541 = vmatprep.subr.mxu0 0.0
    %1542 = vmatpush1.msra.mxu0 0.0
    %1543 = vmatprep.subr.mxu0 0.0
    %1544 = vmatpush1.msra.mxu0 0.0
    %1545 = vmatprep.subr.mxu0 0.0
    %1546 = vmatpush1.msra.mxu0 0.0
    %1547 = vmatprep.subr.mxu0 0.0
    %1548 = vmatpush1.msra.mxu0 0.0
    %1549 = vmatprep.subr.mxu0 0.0
    %1550 = vmatpush1.msra.mxu0 0.0
    %1551 = vmatprep.subr.mxu0 0.0
    %1552 = vmatpush1.msra.mxu0 0.0
    %1553 = vmatprep.subr.mxu0 0.0
    %1554 = vmatpush1.msra.mxu0 0.0
    %1555 = vmatprep.subr.mxu0 0.0
    %1556 = vmatpush1.msra.mxu0 0.0
    %1557 = vmatprep.subr.mxu0 0.0
    %1558 = vmatpush1.msra.mxu0 0.0
    %1559 = vmatprep.subr.mxu0 0.0
    %1560 = vmatpush1.msra.mxu0 0.0
    %1561 = vmatprep.subr.mxu0 0.0
    %1562 = vmatpush1.msra.mxu0 0.0
    %1563 = vmatprep.subr.mxu0 0.0
    %1564 = vmatpush1.msra.mxu0 0.0
    %1565 = vmatprep.subr.mxu0 0.0
    %1566 = vmatpush1.msra.mxu0 0.0
    %1567 = vmatprep.subr.mxu0 0.0
    %1568 = vmatpush1.msra.mxu0 0.0
    %1569 = vmatprep.subr.mxu0 0.0
    %1570 = vmatpush1.msra.mxu0 0.0
    %1571 = vmatprep.subr.mxu0 0.0
    %1572 = vmatpush1.msra.mxu0 0.0
    %1573 = vmatprep.subr.mxu0 0.0
    %1574 = vmatpush1.msra.mxu0 0.0
    %1575 = vmatprep.subr.mxu0 0.0
    %1576 = vmatpush1.msra.mxu0 0.0
    %1577 = vmatprep.subr.mxu0 0.0
    %1578 = vmatpush1.msra.mxu0 0.0
    %1579 = vmatprep.subr.mxu0 0.0
    %1580 = vmatpush1.msra.mxu0 0.0
    %1581 = vmatprep.subr.mxu0 0.0
    %1582 = vmatpush1.msra.mxu0 0.0
    %1583 = vmatprep.subr.mxu0 0.0
    %1584 = vmatpush1.msra.mxu0 0.0
    %1585 = vmatprep.subr.mxu0 0.0
    %1586 = vmatpush1.msra.mxu0 0.0
    %1587 = vmatprep.subr.mxu0 0.0
    %1588 = vmatpush1.msra.mxu0 0.0
    %1589 = vmatprep.mubr.f32.mxu0 0.0
    %1590 = vmatmul.mubr.f32.gmra.mrb[0].mxu0 %v1520
    %v1591 = vpop.f32.mrb[0].mxu0
    %v1592 = vadd.f32 %v1502, %v1591
    %v1593 = vpop.f32.mrb[0].mxu0
    %1594 = vmatprep.mubr.f32.mxu0 0.0
    %1595 = vmatmul.mubr.f32.gmra.mrb[0].mxu0 %v1523
    %v1596 = vpop.f32.mrb[0].mxu0
    %v1597 = vadd.f32 %v1502, %v1596
    %v1598 = vpop.f32.mrb[0].mxu0
    %1599 = vdwg.mxu0
    %v1600 = vmul.f32 %v1592, %v33
    %v1601 = vmul.f32 %v1597, %v34
    %v1602 = vsel %vm66, %v1600, 0.0
    %1603 = vadd.xlane.f32.xlu0 %v1602
    %v1604 = vpop.xlane.xlu0 %1603
    %v1605 = vsel %vm66, %v1601, 0.0
    %1606 = vadd.xlane.f32.xlu0 %v1605
    %v1607 = vpop.xlane.xlu0 %1606
    %v1608 = vrcp.pop 32.0
    %v1609 = vmul.f32 %v1604, %v1608
    %v1610 = vmul.f32 %v1607, %v1608
    %v1611 = vsub.f32 %v1600, %v1609
    %v1612 = vsub.f32 %v1601, %v1610
    %v1613 = vmul.f32 %v1611, %v1611
    %v1614 = vmul.f32 %v1612, %v1612
    %v1615 = vsel %vm66, %v1613, 0.0
    %1616 = vadd.xlane.f32.xlu0 %v1615
    %v1617 = vpop.xlane.xlu0 %1616
    %v1618 = vsel %vm66, %v1614, 0.0
    %1619 = vadd.xlane.f32.xlu0 %v1618
    %v1620 = vpop.xlane.xlu0 %1619
    %v1621 = vmul.f32 %v1617, %v1608
    %v1622 = vmul.f32 %v1620, %v1608
    %v1623 = vadd.f32 %v1621, 1e-05
    %v1624 = vadd.f32 %v1622, 1e-05
    %v1625 = vrsqrt.pop %v1623
    %v1626 = vrsqrt.pop %v1624
    %v1627 = vmul.f32 %v1611, %v1625
    %v1628 = vmul.f32 %v1612, %v1626
    %v1629 = vlaneseq
    %v1630 = vshrl.u32 %v1629, 7
    %v1631 = vsub.s32 0, %v1630
    %v1632 = vrot.slane %v60, %v1631
    %v1633 = vmul.f32 %v1627, %v1632
    %v1634 = vmul.f32 %v1628, %v1632
    %v1635 = vlaneseq
    %v1636 = vshrl.u32 %v1635, 7
    %v1637 = vsub.s32 0, %v1636
    %v1638 = vrot.slane %v61, %v1637
    %v1639 = vadd.f32 %v1633, %v1638
    %v1640 = vadd.f32 %v1634, %v1638
    %v1641 = vlaneseq
    %v1642 = vshrl.u32 %v1641, 7
    %v1643 = vsub.s32 0, %v1642
    %v1644 = vrot.slane %v62, %v1643
    %v1646 = vsel %vm66, %v1639, 0
    %v1649 = vsel %vm66, %v1640, 0
    %1651 = vmatprep.subr.mxu0 0.0
    %1652 = vmatpush1.msra.mxu0 %v39
    %1653 = vmatprep.subr.mxu0 0.0
    %1654 = vmatpush1.msra.mxu0 %v40
    %1655 = vmatprep.subr.mxu0 0.0
    %1656 = vmatpush1.msra.mxu0 %v41
    %1657 = vmatprep.subr.mxu0 0.0
    %1658 = vmatpush1.msra.mxu0 %v42
    %1659 = vmatprep.subr.mxu0 0.0
    %1660 = vmatpush1.msra.mxu0 0.0
    %1661 = vmatprep.subr.mxu0 0.0
    %1662 = vmatpush1.msra.mxu0 0.0
    %1663 = vmatprep.subr.mxu0 0.0
    %1664 = vmatpush1.msra.mxu0 0.0
    %1665 = vmatprep.subr.mxu0 0.0
    %1666 = vmatpush1.msra.mxu0 0.0
    %1667 = vmatprep.subr.mxu0 0.0
    %1668 = vmatpush1.msra.mxu0 0.0
    %1669 = vmatprep.subr.mxu0 0.0
    %1670 = vmatpush1.msra.mxu0 0.0
    %1671 = vmatprep.subr.mxu0 0.0
    %1672 = vmatpush1.msra.mxu0 0.0
    %1673 = vmatprep.subr.mxu0 0.0
    %1674 = vmatpush1.msra.mxu0 0.0
    %1675 = vmatprep.subr.mxu0 0.0
    %1676 = vmatpush1.msra.mxu0 0.0
    %1677 = vmatprep.subr.mxu0 0.0
    %1678 = vmatpush1.msra.mxu0 0.0
    %1679 = vmatprep.subr.mxu0 0.0
    %1680 = vmatpush1.msra.mxu0 0.0
    %1681 = vmatprep.subr.mxu0 0.0
    %1682 = vmatpush1.msra.mxu0 0.0
    %1683 = vmatprep.subr.mxu0 0.0
    %1684 = vmatpush1.msra.mxu0 0.0
    %1685 = vmatprep.subr.mxu0 0.0
    %1686 = vmatpush1.msra.mxu0 0.0
    %1687 = vmatprep.subr.mxu0 0.0
    %1688 = vmatpush1.msra.mxu0 0.0
    %1689 = vmatprep.subr.mxu0 0.0
    %1690 = vmatpush1.msra.mxu0 0.0
    %1691 = vmatprep.subr.mxu0 0.0
    %1692 = vmatpush1.msra.mxu0 0.0
    %1693 = vmatprep.subr.mxu0 0.0
    %1694 = vmatpush1.msra.mxu0 0.0
    %1695 = vmatprep.subr.mxu0 0.0
    %1696 = vmatpush1.msra.mxu0 0.0
    %1697 = vmatprep.subr.mxu0 0.0
    %1698 = vmatpush1.msra.mxu0 0.0
    %1699 = vmatprep.subr.mxu0 0.0
    %1700 = vmatpush1.msra.mxu0 0.0
    %1701 = vmatprep.subr.mxu0 0.0
    %1702 = vmatpush1.msra.mxu0 0.0
    %1703 = vmatprep.subr.mxu0 0.0
    %1704 = vmatpush1.msra.mxu0 0.0
    %1705 = vmatprep.subr.mxu0 0.0
    %1706 = vmatpush1.msra.mxu0 0.0
    %1707 = vmatprep.subr.mxu0 0.0
    %1708 = vmatpush1.msra.mxu0 0.0
    %1709 = vmatprep.subr.mxu0 0.0
    %1710 = vmatpush1.msra.mxu0 0.0
    %1711 = vmatprep.subr.mxu0 0.0
    %1712 = vmatpush1.msra.mxu0 0.0
    %1713 = vmatprep.subr.mxu0 0.0
    %1714 = vmatpush1.msra.mxu0 0.0
    %1715 = vmatprep.mubr.f32.mxu0 0.0
    %1716 = vmatmul.mubr.f32.gmra.mrb[0].mxu0 %v1646
    %v1717 = vpop.f32.mrb[0].mxu0
    %v1718 = vadd.f32 %v1644, %v1717
    %v1719 = vpop.f32.mrb[0].mxu0
    %1720 = vmatprep.mubr.f32.mxu0 0.0
    %1721 = vmatmul.mubr.f32.gmra.mrb[0].mxu0 %v1649
    %v1722 = vpop.f32.mrb[0].mxu0
    %v1723 = vadd.f32 %v1644, %v1722
    %v1724 = vpop.f32.mrb[0].mxu0
    %1725 = vdwg.mxu0
    %v1726 = vmax.f32 %v1718, 0.0
    %v1727 = vmax.f32 %v1723, 0.0
    %v1728 = vlaneseq
    %v1729 = vshrl.u32 %v1728, 7
    %v1730 = vsub.s32 0, %v1729
    %v1731 = vrot.slane %v63, %v1730
    %1732 = vmatprep.subr.mxu0 0.0
    %1733 = vmatpush1.msra.mxu0 %v43
    %1734 = vmatprep.subr.mxu0 0.0
    %1735 = vmatpush1.msra.mxu0 %v44
    %1736 = vmatprep.subr.mxu0 0.0
    %1737 = vmatpush1.msra.mxu0 %v45
    %1738 = vmatprep.subr.mxu0 0.0
    %1739 = vmatpush1.msra.mxu0 %v46
    %1740 = vmatprep.subr.mxu0 0.0
    %1741 = vmatpush1.msra.mxu0 %v47
    %1742 = vmatprep.subr.mxu0 0.0
    %1743 = vmatpush1.msra.mxu0 %v48
    %1744 = vmatprep.subr.mxu0 0.0
    %1745 = vmatpush1.msra.mxu0 %v49
    %1746 = vmatprep.subr.mxu0 0.0
    %1747 = vmatpush1.msra.mxu0 %v50
    %1748 = vmatprep.subr.mxu0 0.0
    %1749 = vmatpush1.msra.mxu0 %v51
    %1750 = vmatprep.subr.mxu0 0.0
    %1751 = vmatpush1.msra.mxu0 %v52
    %1752 = vmatprep.subr.mxu0 0.0
    %1753 = vmatpush1.msra.mxu0 %v53
    %1754 = vmatprep.subr.mxu0 0.0
    %1755 = vmatpush1.msra.mxu0 %v54
    %1756 = vmatprep.subr.mxu0 0.0
    %1757 = vmatpush1.msra.mxu0 %v55
    %1758 = vmatprep.subr.mxu0 0.0
    %1759 = vmatpush1.msra.mxu0 %v56
    %1760 = vmatprep.subr.mxu0 0.0
    %1761 = vmatpush1.msra.mxu0 %v57
    %1762 = vmatprep.subr.mxu0 0.0
    %1763 = vmatpush1.msra.mxu0 %v58
    %1764 = vmatprep.subr.mxu0 0.0
    %1765 = vmatpush1.msra.mxu0 0.0
    %1766 = vmatprep.subr.mxu0 0.0
    %1767 = vmatpush1.msra.mxu0 0.0
    %1768 = vmatprep.subr.mxu0 0.0
    %1769 = vmatpush1.msra.mxu0 0.0
    %1770 = vmatprep.subr.mxu0 0.0
    %1771 = vmatpush1.msra.mxu0 0.0
    %1772 = vmatprep.subr.mxu0 0.0
    %1773 = vmatpush1.msra.mxu0 0.0
    %1774 = vmatprep.subr.mxu0 0.0
    %1775 = vmatpush1.msra.mxu0 0.0
    %1776 = vmatprep.subr.mxu0 0.0
    %1777 = vmatpush1.msra.mxu0 0.0
    %1778 = vmatprep.subr.mxu0 0.0
    %1779 = vmatpush1.msra.mxu0 0.0
    %1780 = vmatprep.subr.mxu0 0.0
    %1781 = vmatpush1.msra.mxu0 0.0
    %1782 = vmatprep.subr.mxu0 0.0
    %1783 = vmatpush1.msra.mxu0 0.0
    %1784 = vmatprep.subr.mxu0 0.0
    %1785 = vmatpush1.msra.mxu0 0.0
    %1786 = vmatprep.subr.mxu0 0.0
    %1787 = vmatpush1.msra.mxu0 0.0
    %1788 = vmatprep.subr.mxu0 0.0
    %1789 = vmatpush1.msra.mxu0 0.0
    %1790 = vmatprep.subr.mxu0 0.0
    %1791 = vmatpush1.msra.mxu0 0.0
    %1792 = vmatprep.subr.mxu0 0.0
    %1793 = vmatpush1.msra.mxu0 0.0
    %1794 = vmatprep.subr.mxu0 0.0
    %1795 = vmatpush1.msra.mxu0 0.0
    %1796 = vmatprep.mubr.f32.mxu0 0.0
    %1797 = vmatmul.mubr.f32.gmra.mrb[0].mxu0 %v1726
    %v1798 = vpop.f32.mrb[0].mxu0
    %v1799 = vadd.f32 %v1731, %v1798
    %v1800 = vpop.f32.mrb[0].mxu0
    %1801 = vmatprep.mubr.f32.mxu0 0.0
    %1802 = vmatmul.mubr.f32.gmra.mrb[0].mxu0 %v1727
    %v1803 = vpop.f32.mrb[0].mxu0
    %v1804 = vadd.f32 %v1731, %v1803
    %v1805 = vpop.f32.mrb[0].mxu0
    %1806 = vdwg.mxu0
    %v1807 = vadd.f32 %v1799, %v1639
    %v1808 = vadd.f32 %v1804, %v1640
    %v1809 = vsel %vm66, %v1807, 0.0
    %1810 = vadd.xlane.f32.xlu0 %v1809
    %v1811 = vpop.xlane.xlu0 %1810
    %v1812 = vsel %vm66, %v1808, 0.0
    %1813 = vadd.xlane.f32.xlu0 %v1812
    %v1814 = vpop.xlane.xlu0 %1813
    %v1815 = vmul.f32 %v1811, %v1608
    %v1816 = vmul.f32 %v1814, %v1608
    %v1817 = vsub.f32 %v1807, %v1815
    %v1818 = vsub.f32 %v1808, %v1816
    %v1819 = vmul.f32 %v1817, %v1817
    %v1820 = vmul.f32 %v1818, %v1818
    %v1821 = vsel %vm66, %v1819, 0.0
    %1822 = vadd.xlane.f32.xlu0 %v1821
    %v1823 = vpop.xlane.xlu0 %1822
    %v1824 = vsel %vm66, %v1820, 0.0
    %1825 = vadd.xlane.f32.xlu0 %v1824
    %v1826 = vpop.xlane.xlu0 %1825
    %v1827 = vmul.f32 %v1823, %v1608
    %v1828 = vmul.f32 %v1826, %v1608
    %v1829 = vadd.f32 %v1827, 1e-05
    %v1830 = vadd.f32 %v1828, 1e-05
    %v1831 = vrsqrt.pop %v1829
    %v1832 = vrsqrt.pop %v1830
    %v1833 = vmul.f32 %v1817, %v1831
    %v1834 = vmul.f32 %v1818, %v1832
    %v1835 = vlaneseq
    %v1836 = vshrl.u32 %v1835, 7
    %v1837 = vsub.s32 0, %v1836
    %v1838 = vrot.slane %v64, %v1837
    %v1839 = vmul.f32 %v1833, %v1838
    %v1840 = vmul.f32 %v1834, %v1838
    %v1841 = vlaneseq
    %v1842 = vshrl.u32 %v1841, 7
    %v1843 = vsub.s32 0, %v1842
    %v1844 = vrot.slane %v65, %v1843
    %v1845 = vadd.f32 %v1839, %v1844
    %v1846 = vadd.f32 %v1840, %v1844
    %s1847 = scalar_lea.vmem [#allocation2], 200
    %v1848 = vld [vmem:[%s1847] sm:$0xff]
    %v1849 = vld [vmem:[%s1847 + $0x8] sm:$0xff]
    %v1850 = vld [vmem:[%s1847 + $0x10] sm:$0xff]
    %v1851 = vld [vmem:[%s1847 + $0x18] sm:$0xff]
    %v1852 = vld [vmem:[%s1847 + $0x20] sm:$0xff]
    %v1853 = vld [vmem:[%s1847 + $0x28] sm:$0xff]
    %v1854 = vld [vmem:[%s1847 + $0x30] sm:$0xff]
    %v1855 = vld [vmem:[%s1847 + $0x38] sm:$0xff]
    %v1856 = vld [vmem:[%s1847 + $0x40] sm:$0xff]
    %v1857 = vld [vmem:[%s1847 + $0x48] sm:$0xff]
    %v1858 = vld [vmem:[%s1847 + $0x50] sm:$0xff]
    %v1859 = vld [vmem:[%s1847 + $0x58] sm:$0xff]
    %v1860 = vld [vmem:[%s1847 + $0x60] sm:$0xff]
    %v1861 = vld [vmem:[%s1847 + $0x68] sm:$0xff]
    %v1862 = vld [vmem:[%s1847 + $0x70] sm:$0xff]
    %v1863 = vld [vmem:[%s1847 + $0x78] sm:$0xff]
    %v1864 = vld [vmem:[%s1847 + $0x80] sm:$0xff]
    %v1865 = vld [vmem:[%s1847 + $0x88] sm:$0xff]
    %v1866 = vld [vmem:[%s1847 + $0x90] sm:$0xff]
    %v1867 = vld [vmem:[%s1847 + $0x98] sm:$0xff]
    %v1868 = vld [vmem:[%s1847 + $0xa0] sm:$0xff]
    %v1869 = vld [vmem:[%s1847 + $0xa8] sm:$0xff]
    %v1870 = vld [vmem:[%s1847 + $0xb0] sm:$0xff]
    %v1871 = vld [vmem:[%s1847 + $0xb8] sm:$0xff]
    %v1872 = vld [vmem:[%s1847 + $0xc0] sm:$0x1]
    %v1873 = vld [vmem:[%s1847 + $0xc1] sm:$0x1]
    %v1874 = vld [vmem:[%s1847 + $0xc2] sm:$0x1]
    %v1875 = vld [vmem:[%s1847 + $0xc3] sm:$0x1]
    %v1876 = vld [vmem:[%s1847 + $0xc4] sm:$0x1]
    %v1877 = vld [vmem:[%s1847 + $0xc5] sm:$0x1]
    %v1878 = vld [vmem:[%s1847 + $0xc6] sm:$0x1]
    %v1880 = vsel %vm66, %v1845, 0
    %v1883 = vsel %vm66, %v1846, 0
    %1885 = vmatprep.subr.mxu0 0.0
    %1886 = vmatpush1.msra.mxu0 %v1848
    %1887 = vmatprep.subr.mxu0 0.0
    %1888 = vmatpush1.msra.mxu0 %v1849
    %1889 = vmatprep.subr.mxu0 0.0
    %1890 = vmatpush1.msra.mxu0 %v1850
    %1891 = vmatprep.subr.mxu0 0.0
    %1892 = vmatpush1.msra.mxu0 %v1851
    %1893 = vmatprep.subr.mxu0 0.0
    %1894 = vmatpush1.msra.mxu0 0.0
    %1895 = vmatprep.subr.mxu0 0.0
    %1896 = vmatpush1.msra.mxu0 0.0
    %1897 = vmatprep.subr.mxu0 0.0
    %1898 = vmatpush1.msra.mxu0 0.0
    %1899 = vmatprep.subr.mxu0 0.0
    %1900 = vmatpush1.msra.mxu0 0.0
    %1901 = vmatprep.subr.mxu0 0.0
    %1902 = vmatpush1.msra.mxu0 0.0
    %1903 = vmatprep.subr.mxu0 0.0
    %1904 = vmatpush1.msra.mxu0 0.0
    %1905 = vmatprep.subr.mxu0 0.0
    %1906 = vmatpush1.msra.mxu0 0.0
    %1907 = vmatprep.subr.mxu0 0.0
    %1908 = vmatpush1.msra.mxu0 0.0
    %1909 = vmatprep.subr.mxu0 0.0
    %1910 = vmatpush1.msra.mxu0 0.0
    %1911 = vmatprep.subr.mxu0 0.0
    %1912 = vmatpush1.msra.mxu0 0.0
    %1913 = vmatprep.subr.mxu0 0.0
    %1914 = vmatpush1.msra.mxu0 0.0
    %1915 = vmatprep.subr.mxu0 0.0
    %1916 = vmatpush1.msra.mxu0 0.0
    %1917 = vmatprep.subr.mxu0 0.0
    %1918 = vmatpush1.msra.mxu0 0.0
    %1919 = vmatprep.subr.mxu0 0.0
    %1920 = vmatpush1.msra.mxu0 0.0
    %1921 = vmatprep.subr.mxu0 0.0
    %1922 = vmatpush1.msra.mxu0 0.0
    %1923 = vmatprep.subr.mxu0 0.0
    %1924 = vmatpush1.msra.mxu0 0.0
    %1925 = vmatprep.subr.mxu0 0.0
    %1926 = vmatpush1.msra.mxu0 0.0
    %1927 = vmatprep.subr.mxu0 0.0
    %1928 = vmatpush1.msra.mxu0 0.0
    %1929 = vmatprep.subr.mxu0 0.0
    %1930 = vmatpush1.msra.mxu0 0.0
    %1931 = vmatprep.subr.mxu0 0.0
    %1932 = vmatpush1.msra.mxu0 0.0
    %1933 = vmatprep.subr.mxu0 0.0
    %1934 = vmatpush1.msra.mxu0 0.0
    %1935 = vmatprep.subr.mxu0 0.0
    %1936 = vmatpush1.msra.mxu0 0.0
    %1937 = vmatprep.subr.mxu0 0.0
    %1938 = vmatpush1.msra.mxu0 0.0
    %1939 = vmatprep.subr.mxu0 0.0
    %1940 = vmatpush1.msra.mxu0 0.0
    %1941 = vmatprep.subr.mxu0 0.0
    %1942 = vmatpush1.msra.mxu0 0.0
    %1943 = vmatprep.subr.mxu0 0.0
    %1944 = vmatpush1.msra.mxu0 0.0
    %1945 = vmatprep.subr.mxu0 0.0
    %1946 = vmatpush1.msra.mxu0 0.0
    %1947 = vmatprep.subr.mxu0 0.0
    %1948 = vmatpush1.msra.mxu0 0.0
    %1949 = vmatprep.mubr.f32.mxu0 0.0
    %1950 = vmatmul.mubr.f32.gmra.mrb[0].mxu0 %v1880
    %v1951 = vpop.f32.mrb[0].mxu0
    %v1952 = vadd.f32 0.0, %v1951
    %v1953 = vpop.f32.mrb[0].mxu0
    %1954 = vmatprep.mubr.f32.mxu0 0.0
    %1955 = vmatmul.mubr.f32.gmra.mrb[0].mxu0 %v1883
    %v1956 = vpop.f32.mrb[0].mxu0
    %v1957 = vadd.f32 0.0, %v1956
    %v1958 = vpop.f32.mrb[0].mxu0
    %1959 = vdwg.mxu0
    %1961 = vrot.lane.b32.xlu0 %v1952, 96
    %v1962 = vpop.permute.xlu0 %1961
    %v1963 = vsel %vm151, %v1952, 0
    %v1965 = vsel %vm151, %v1962, 0
    %1967 = vmatprep.subr.mxu0 0.0
    %1968 = vmatpush1.xpose.msra.mxu0 %v1965
    %1969 = vmatprep.subr.mxu0 0.0
    %1970 = vmatpush1.xpose.msra.mxu0 0.0
    %1971 = vmatprep.subr.mxu0 0.0
    %1972 = vmatpush1.xpose.msra.mxu0 0.0
    %1973 = vmatprep.subr.mxu0 0.0
    %1974 = vmatpush1.xpose.msra.mxu0 0.0
    %1975 = vmatprep.subr.mxu0 0.0
    %1976 = vmatpush1.xpose.msra.mxu0 0.0
    %1977 = vmatprep.subr.mxu0 0.0
    %1978 = vmatpush1.xpose.msra.mxu0 0.0
    %1979 = vmatprep.subr.mxu0 0.0
    %1980 = vmatpush1.xpose.msra.mxu0 0.0
    %1981 = vmatprep.subr.mxu0 0.0
    %1982 = vmatpush1.xpose.msra.mxu0 0.0
    %1983 = vmatprep.subr.mxu0 0.0
    %1984 = vmatpush1.xpose.msra.mxu0 0.0
    %1985 = vmatprep.subr.mxu0 0.0
    %1986 = vmatpush1.xpose.msra.mxu0 0.0
    %1987 = vmatprep.subr.mxu0 0.0
    %1988 = vmatpush1.xpose.msra.mxu0 0.0
    %1989 = vmatprep.subr.mxu0 0.0
    %1990 = vmatpush1.xpose.msra.mxu0 0.0
    %1991 = vmatprep.subr.mxu0 0.0
    %1992 = vmatpush1.xpose.msra.mxu0 0.0
    %1993 = vmatprep.subr.mxu0 0.0
    %1994 = vmatpush1.xpose.msra.mxu0 0.0
    %1995 = vmatprep.subr.mxu0 0.0
    %1996 = vmatpush1.xpose.msra.mxu0 0.0
    %1997 = vmatprep.subr.mxu0 0.0
    %1998 = vmatpush1.xpose.msra.mxu0 0.0
    %1999 = vmatprep.subr.mxu0 0.0
    %2000 = vmatpush1.xpose.msra.mxu0 0.0
    %2001 = vmatprep.subr.mxu0 0.0
    %2002 = vmatpush1.xpose.msra.mxu0 0.0
    %2003 = vmatprep.subr.mxu0 0.0
    %2004 = vmatpush1.xpose.msra.mxu0 0.0
    %2005 = vmatprep.subr.mxu0 0.0
    %2006 = vmatpush1.xpose.msra.mxu0 0.0
    %2007 = vmatprep.subr.mxu0 0.0
    %2008 = vmatpush1.xpose.msra.mxu0 0.0
    %2009 = vmatprep.subr.mxu0 0.0
    %2010 = vmatpush1.xpose.msra.mxu0 0.0
    %2011 = vmatprep.subr.mxu0 0.0
    %2012 = vmatpush1.xpose.msra.mxu0 0.0
    %2013 = vmatprep.subr.mxu0 0.0
    %2014 = vmatpush1.xpose.msra.mxu0 0.0
    %2015 = vmatprep.subr.mxu0 0.0
    %2016 = vmatpush1.xpose.msra.mxu0 0.0
    %2017 = vmatprep.subr.mxu0 0.0
    %2018 = vmatpush1.xpose.msra.mxu0 0.0
    %2019 = vmatprep.subr.mxu0 0.0
    %2020 = vmatpush1.xpose.msra.mxu0 0.0
    %2021 = vmatprep.subr.mxu0 0.0
    %2022 = vmatpush1.xpose.msra.mxu0 0.0
    %2023 = vmatprep.subr.mxu0 0.0
    %2024 = vmatpush1.xpose.msra.mxu0 0.0
    %2025 = vmatprep.subr.mxu0 0.0
    %2026 = vmatpush1.xpose.msra.mxu0 0.0
    %2027 = vmatprep.subr.mxu0 0.0
    %2028 = vmatpush1.xpose.msra.mxu0 0.0
    %2029 = vmatprep.subr.mxu0 0.0
    %2030 = vmatpush1.xpose.msra.mxu0 0.0
    %2031 = vmatprep.mubr.f32.mxu0 0.0
    %2032 = vmatmul.mubr.f32.gmra.mrb[0].mxu0 %v1963
    %v2033 = vpop.f32.mrb[0].mxu0
    %v2034 = vadd.f32 0.0, %v2033
    %v2035 = vpop.f32.mrb[0].mxu0
    %2036 = vdwg.mxu0
    %v2037 = vsel %vm151, %v2034, -inf
    %2038 = vmax.xlane.f32.xlu0 %v2037
    %v2039 = vpop.xlane.xlu0 %2038
    %v2040 = vsub.f32 %v2034, %v2039
    %v2041 = vmul.f32 %v2040, 1.442695
    %v2042 = vpow.pop %v2041
    %v2043 = vsel %vm151, %v2042, 0.0
    %2044 = vadd.xlane.f32.xlu0 %v2043
    %v2045 = vpop.xlane.xlu0 %2044
    %v2046 = vrcp.pop %v2045
    %v2047 = vmul.f32 %v2042, %v2046
    %2048 = vrot.lane.b32.xlu0 %v1952, 64
    %v2049 = vpop.permute.xlu0 %2048
    %v2052 = vsel %vm151, %v2047, 0
    %2054 = vmatprep.subr.mxu0 0.0
    %2055 = vmatpush1.msra.mxu0 %v2049
    %2056 = vmatprep.subr.mxu0 0.0
    %2057 = vmatpush1.msra.mxu0 0.0
    %2058 = vmatprep.subr.mxu0 0.0
    %2059 = vmatpush1.msra.mxu0 0.0
    %2060 = vmatprep.subr.mxu0 0.0
    %2061 = vmatpush1.msra.mxu0 0.0
    %2062 = vmatprep.subr.mxu0 0.0
    %2063 = vmatpush1.msra.mxu0 0.0
    %2064 = vmatprep.subr.mxu0 0.0
    %2065 = vmatpush1.msra.mxu0 0.0
    %2066 = vmatprep.subr.mxu0 0.0
    %2067 = vmatpush1.msra.mxu0 0.0
    %2068 = vmatprep.subr.mxu0 0.0
    %2069 = vmatpush1.msra.mxu0 0.0
    %2070 = vmatprep.subr.mxu0 0.0
    %2071 = vmatpush1.msra.mxu0 0.0
    %2072 = vmatprep.subr.mxu0 0.0
    %2073 = vmatpush1.msra.mxu0 0.0
    %2074 = vmatprep.subr.mxu0 0.0
    %2075 = vmatpush1.msra.mxu0 0.0
    %2076 = vmatprep.subr.mxu0 0.0
    %2077 = vmatpush1.msra.mxu0 0.0
    %2078 = vmatprep.subr.mxu0 0.0
    %2079 = vmatpush1.msra.mxu0 0.0
    %2080 = vmatprep.subr.mxu0 0.0
    %2081 = vmatpush1.msra.mxu0 0.0
    %2082 = vmatprep.subr.mxu0 0.0
    %2083 = vmatpush1.msra.mxu0 0.0
    %2084 = vmatprep.subr.mxu0 0.0
    %2085 = vmatpush1.msra.mxu0 0.0
    %2086 = vmatprep.subr.mxu0 0.0
    %2087 = vmatpush1.msra.mxu0 0.0
    %2088 = vmatprep.subr.mxu0 0.0
    %2089 = vmatpush1.msra.mxu0 0.0
    %2090 = vmatprep.subr.mxu0 0.0
    %2091 = vmatpush1.msra.mxu0 0.0
    %2092 = vmatprep.subr.mxu0 0.0
    %2093 = vmatpush1.msra.mxu0 0.0
    %2094 = vmatprep.subr.mxu0 0.0
    %2095 = vmatpush1.msra.mxu0 0.0
    %2096 = vmatprep.subr.mxu0 0.0
    %2097 = vmatpush1.msra.mxu0 0.0
    %2098 = vmatprep.subr.mxu0 0.0
    %2099 = vmatpush1.msra.mxu0 0.0
    %2100 = vmatprep.subr.mxu0 0.0
    %2101 = vmatpush1.msra.mxu0 0.0
    %2102 = vmatprep.subr.mxu0 0.0
    %2103 = vmatpush1.msra.mxu0 0.0
    %2104 = vmatprep.subr.mxu0 0.0
    %2105 = vmatpush1.msra.mxu0 0.0
    %2106 = vmatprep.subr.mxu0 0.0
    %2107 = vmatpush1.msra.mxu0 0.0
    %2108 = vmatprep.subr.mxu0 0.0
    %2109 = vmatpush1.msra.mxu0 0.0
    %2110 = vmatprep.subr.mxu0 0.0
    %2111 = vmatpush1.msra.mxu0 0.0
    %2112 = vmatprep.subr.mxu0 0.0
    %2113 = vmatpush1.msra.mxu0 0.0
    %2114 = vmatprep.subr.mxu0 0.0
    %2115 = vmatpush1.msra.mxu0 0.0
    %2116 = vmatprep.subr.mxu0 0.0
    %2117 = vmatpush1.msra.mxu0 0.0
    %2118 = vmatprep.mubr.f32.mxu0 0.0
    %2119 = vmatmul.mubr.f32.gmra.mrb[0].mxu0 %v2052
    %v2120 = vpop.f32.mrb[0].mxu0
    %v2121 = vadd.f32 0.0, %v2120
    %v2122 = vpop.f32.mrb[0].mxu0
    %2123 = vdwg.mxu0
    %2124 = vrot.lane.b32.xlu0 %v1952, 120
    %v2125 = vpop.permute.xlu0 %2124
    %2126 = vrot.lane.b32.xlu0 %v1952, 88
    %v2127 = vpop.permute.xlu0 %2126
    %v2128 = vsel %vm151, %v2125, 0
    %v2130 = vsel %vm151, %v2127, 0
    %2132 = vmatprep.subr.mxu0 0.0
    %2133 = vmatpush1.xpose.msra.mxu0 %v2130
    %2134 = vmatprep.subr.mxu0 0.0
    %2135 = vmatpush1.xpose.msra.mxu0 0.0
    %2136 = vmatprep.subr.mxu0 0.0
    %2137 = vmatpush1.xpose.msra.mxu0 0.0
    %2138 = vmatprep.subr.mxu0 0.0
    %2139 = vmatpush1.xpose.msra.mxu0 0.0
    %2140 = vmatprep.subr.mxu0 0.0
    %2141 = vmatpush1.xpose.msra.mxu0 0.0
    %2142 = vmatprep.subr.mxu0 0.0
    %2143 = vmatpush1.xpose.msra.mxu0 0.0
    %2144 = vmatprep.subr.mxu0 0.0
    %2145 = vmatpush1.xpose.msra.mxu0 0.0
    %2146 = vmatprep.subr.mxu0 0.0
    %2147 = vmatpush1.xpose.msra.mxu0 0.0
    %2148 = vmatprep.subr.mxu0 0.0
    %2149 = vmatpush1.xpose.msra.mxu0 0.0
    %2150 = vmatprep.subr.mxu0 0.0
    %2151 = vmatpush1.xpose.msra.mxu0 0.0
    %2152 = vmatprep.subr.mxu0 0.0
    %2153 = vmatpush1.xpose.msra.mxu0 0.0
    %2154 = vmatprep.subr.mxu0 0.0
    %2155 = vmatpush1.xpose.msra.mxu0 0.0
    %2156 = vmatprep.subr.mxu0 0.0
    %2157 = vmatpush1.xpose.msra.mxu0 0.0
    %2158 = vmatprep.subr.mxu0 0.0
    %2159 = vmatpush1.xpose.msra.mxu0 0.0
    %2160 = vmatprep.subr.mxu0 0.0
    %2161 = vmatpush1.xpose.msra.mxu0 0.0
    %2162 = vmatprep.subr.mxu0 0.0
    %2163 = vmatpush1.xpose.msra.mxu0 0.0
    %2164 = vmatprep.subr.mxu0 0.0
    %2165 = vmatpush1.xpose.msra.mxu0 0.0
    %2166 = vmatprep.subr.mxu0 0.0
    %2167 = vmatpush1.xpose.msra.mxu0 0.0
    %2168 = vmatprep.subr.mxu0 0.0
    %2169 = vmatpush1.xpose.msra.mxu0 0.0
    %2170 = vmatprep.subr.mxu0 0.0
    %2171 = vmatpush1.xpose.msra.mxu0 0.0
    %2172 = vmatprep.subr.mxu0 0.0
    %2173 = vmatpush1.xpose.msra.mxu0 0.0
    %2174 = vmatprep.subr.mxu0 0.0
    %2175 = vmatpush1.xpose.msra.mxu0 0.0
    %2176 = vmatprep.subr.mxu0 0.0
    %2177 = vmatpush1.xpose.msra.mxu0 0.0
    %2178 = vmatprep.subr.mxu0 0.0
    %2179 = vmatpush1.xpose.msra.mxu0 0.0
    %2180 = vmatprep.subr.mxu0 0.0
    %2181 = vmatpush1.xpose.msra.mxu0 0.0
    %2182 = vmatprep.subr.mxu0 0.0
    %2183 = vmatpush1.xpose.msra.mxu0 0.0
    %2184 = vmatprep.subr.mxu0 0.0
    %2185 = vmatpush1.xpose.msra.mxu0 0.0
    %2186 = vmatprep.subr.mxu0 0.0
    %2187 = vmatpush1.xpose.msra.mxu0 0.0
    %2188 = vmatprep.subr.mxu0 0.0
    %2189 = vmatpush1.xpose.msra.mxu0 0.0
    %2190 = vmatprep.subr.mxu0 0.0
    %2191 = vmatpush1.xpose.msra.mxu0 0.0
    %2192 = vmatprep.subr.mxu0 0.0
    %2193 = vmatpush1.xpose.msra.mxu0 0.0
    %2194 = vmatprep.subr.mxu0 0.0
    %2195 = vmatpush1.xpose.msra.mxu0 0.0
    %2196 = vmatprep.mubr.f32.mxu0 0.0
    %2197 = vmatmul.mubr.f32.gmra.mrb[0].mxu0 %v2128
    %v2198 = vpop.f32.mrb[0].mxu0
    %v2199 = vadd.f32 0.0, %v2198
    %v2200 = vpop.f32.mrb[0].mxu0
    %2201 = vdwg.mxu0
    %v2202 = vsel %vm151, %v2199, -inf
    %2203 = vmax.xlane.f32.xlu0 %v2202
    %v2204 = vpop.xlane.xlu0 %2203
    %v2205 = vsub.f32 %v2199, %v2204
    %v2206 = vmul.f32 %v2205, 1.442695
    %v2207 = vpow.pop %v2206
    %v2208 = vsel %vm151, %v2207, 0.0
    %2209 = vadd.xlane.f32.xlu0 %v2208
    %v2210 = vpop.xlane.xlu0 %2209
    %v2211 = vrcp.pop %v2210
    %v2212 = vmul.f32 %v2207, %v2211
    %2213 = vrot.lane.b32.xlu0 %v1952, 56
    %v2214 = vpop.permute.xlu0 %2213
    %v2217 = vsel %vm151, %v2212, 0
    %2219 = vmatprep.subr.mxu0 0.0
    %2220 = vmatpush1.msra.mxu0 %v2214
    %2221 = vmatprep.subr.mxu0 0.0
    %2222 = vmatpush1.msra.mxu0 0.0
    %2223 = vmatprep.subr.mxu0 0.0
    %2224 = vmatpush1.msra.mxu0 0.0
    %2225 = vmatprep.subr.mxu0 0.0
    %2226 = vmatpush1.msra.mxu0 0.0
    %2227 = vmatprep.subr.mxu0 0.0
    %2228 = vmatpush1.msra.mxu0 0.0
    %2229 = vmatprep.subr.mxu0 0.0
    %2230 = vmatpush1.msra.mxu0 0.0
    %2231 = vmatprep.subr.mxu0 0.0
    %2232 = vmatpush1.msra.mxu0 0.0
    %2233 = vmatprep.subr.mxu0 0.0
    %2234 = vmatpush1.msra.mxu0 0.0
    %2235 = vmatprep.subr.mxu0 0.0
    %2236 = vmatpush1.msra.mxu0 0.0
    %2237 = vmatprep.subr.mxu0 0.0
    %2238 = vmatpush1.msra.mxu0 0.0
    %2239 = vmatprep.subr.mxu0 0.0
    %2240 = vmatpush1.msra.mxu0 0.0
    %2241 = vmatprep.subr.mxu0 0.0
    %2242 = vmatpush1.msra.mxu0 0.0
    %2243 = vmatprep.subr.mxu0 0.0
    %2244 = vmatpush1.msra.mxu0 0.0
    %2245 = vmatprep.subr.mxu0 0.0
    %2246 = vmatpush1.msra.mxu0 0.0
    %2247 = vmatprep.subr.mxu0 0.0
    %2248 = vmatpush1.msra.mxu0 0.0
    %2249 = vmatprep.subr.mxu0 0.0
    %2250 = vmatpush1.msra.mxu0 0.0
    %2251 = vmatprep.subr.mxu0 0.0
    %2252 = vmatpush1.msra.mxu0 0.0
    %2253 = vmatprep.subr.mxu0 0.0
    %2254 = vmatpush1.msra.mxu0 0.0
    %2255 = vmatprep.subr.mxu0 0.0
    %2256 = vmatpush1.msra.mxu0 0.0
    %2257 = vmatprep.subr.mxu0 0.0
    %2258 = vmatpush1.msra.mxu0 0.0
    %2259 = vmatprep.subr.mxu0 0.0
    %2260 = vmatpush1.msra.mxu0 0.0
    %2261 = vmatprep.subr.mxu0 0.0
    %2262 = vmatpush1.msra.mxu0 0.0
    %2263 = vmatprep.subr.mxu0 0.0
    %2264 = vmatpush1.msra.mxu0 0.0
    %2265 = vmatprep.subr.mxu0 0.0
    %2266 = vmatpush1.msra.mxu0 0.0
    %2267 = vmatprep.subr.mxu0 0.0
    %2268 = vmatpush1.msra.mxu0 0.0
    %2269 = vmatprep.subr.mxu0 0.0
    %2270 = vmatpush1.msra.mxu0 0.0
    %2271 = vmatprep.subr.mxu0 0.0
    %2272 = vmatpush1.msra.mxu0 0.0
    %2273 = vmatprep.subr.mxu0 0.0
    %2274 = vmatpush1.msra.mxu0 0.0
    %2275 = vmatprep.subr.mxu0 0.0
    %2276 = vmatpush1.msra.mxu0 0.0
    %2277 = vmatprep.subr.mxu0 0.0
    %2278 = vmatpush1.msra.mxu0 0.0
    %2279 = vmatprep.subr.mxu0 0.0
    %2280 = vmatpush1.msra.mxu0 0.0
    %2281 = vmatprep.subr.mxu0 0.0
    %2282 = vmatpush1.msra.mxu0 0.0
    %2283 = vmatprep.mubr.f32.mxu0 0.0
    %2284 = vmatmul.mubr.f32.gmra.mrb[0].mxu0 %v2217
    %v2285 = vpop.f32.mrb[0].mxu0
    %v2286 = vadd.f32 0.0, %v2285
    %v2287 = vpop.f32.mrb[0].mxu0
    %2288 = vdwg.mxu0
    %2289 = vrot.lane.b32.xlu0 %v1952, 112
    %v2290 = vpop.permute.xlu0 %2289
    %2291 = vrot.lane.b32.xlu0 %v1952, 80
    %v2292 = vpop.permute.xlu0 %2291
    %v2293 = vsel %vm151, %v2290, 0
    %v2295 = vsel %vm151, %v2292, 0
    %2297 = vmatprep.subr.mxu0 0.0
    %2298 = vmatpush1.xpose.msra.mxu0 %v2295
    %2299 = vmatprep.subr.mxu0 0.0
    %2300 = vmatpush1.xpose.msra.mxu0 0.0
    %2301 = vmatprep.subr.mxu0 0.0
    %2302 = vmatpush1.xpose.msra.mxu0 0.0
    %2303 = vmatprep.subr.mxu0 0.0
    %2304 = vmatpush1.xpose.msra.mxu0 0.0
    %2305 = vmatprep.subr.mxu0 0.0
    %2306 = vmatpush1.xpose.msra.mxu0 0.0
    %2307 = vmatprep.subr.mxu0 0.0
    %2308 = vmatpush1.xpose.msra.mxu0 0.0
    %2309 = vmatprep.subr.mxu0 0.0
    %2310 = vmatpush1.xpose.msra.mxu0 0.0
    %2311 = vmatprep.subr.mxu0 0.0
    %2312 = vmatpush1.xpose.msra.mxu0 0.0
    %2313 = vmatprep.subr.mxu0 0.0
    %2314 = vmatpush1.xpose.msra.mxu0 0.0
    %2315 = vmatprep.subr.mxu0 0.0
    %2316 = vmatpush1.xpose.msra.mxu0 0.0
    %2317 = vmatprep.subr.mxu0 0.0
    %2318 = vmatpush1.xpose.msra.mxu0 0.0
    %2319 = vmatprep.subr.mxu0 0.0
    %2320 = vmatpush1.xpose.msra.mxu0 0.0
    %2321 = vmatprep.subr.mxu0 0.0
    %2322 = vmatpush1.xpose.msra.mxu0 0.0
    %2323 = vmatprep.subr.mxu0 0.0
    %2324 = vmatpush1.xpose.msra.mxu0 0.0
    %2325 = vmatprep.subr.mxu0 0.0
    %2326 = vmatpush1.xpose.msra.mxu0 0.0
    %2327 = vmatprep.subr.mxu0 0.0
    %2328 = vmatpush1.xpose.msra.mxu0 0.0
    %2329 = vmatprep.subr.mxu0 0.0
    %2330 = vmatpush1.xpose.msra.mxu0 0.0
    %2331 = vmatprep.subr.mxu0 0.0
    %2332 = vmatpush1.xpose.msra.mxu0 0.0
    %2333 = vmatprep.subr.mxu0 0.0
    %2334 = vmatpush1.xpose.msra.mxu0 0.0
    %2335 = vmatprep.subr.mxu0 0.0
    %2336 = vmatpush1.xpose.msra.mxu0 0.0
    %2337 = vmatprep.subr.mxu0 0.0
    %2338 = vmatpush1.xpose.msra.mxu0 0.0
    %2339 = vmatprep.subr.mxu0 0.0
    %2340 = vmatpush1.xpose.msra.mxu0 0.0
    %2341 = vmatprep.subr.mxu0 0.0
    %2342 = vmatpush1.xpose.msra.mxu0 0.0
    %2343 = vmatprep.subr.mxu0 0.0
    %2344 = vmatpush1.xpose.msra.mxu0 0.0
    %2345 = vmatprep.subr.mxu0 0.0
    %2346 = vmatpush1.xpose.msra.mxu0 0.0
    %2347 = vmatprep.subr.mxu0 0.0
    %2348 = vmatpush1.xpose.msra.mxu0 0.0
    %2349 = vmatprep.subr.mxu0 0.0
    %2350 = vmatpush1.xpose.msra.mxu0 0.0
    %2351 = vmatprep.subr.mxu0 0.0
    %2352 = vmatpush1.xpose.msra.mxu0 0.0
    %2353 = vmatprep.subr.mxu0 0.0
    %2354 = vmatpush1.xpose.msra.mxu0 0.0
    %2355 = vmatprep.subr.mxu0 0.0
    %2356 = vmatpush1.xpose.msra.mxu0 0.0
    %2357 = vmatprep.subr.mxu0 0.0
    %2358 = vmatpush1.xpose.msra.mxu0 0.0
    %2359 = vmatprep.subr.mxu0 0.0
    %2360 = vmatpush1.xpose.msra.mxu0 0.0
    %2361 = vmatprep.mubr.f32.mxu0 0.0
    %2362 = vmatmul.mubr.f32.gmra.mrb[0].mxu0 %v2293
    %v2363 = vpop.f32.mrb[0].mxu0
    %v2364 = vadd.f32 0.0, %v2363
    %v2365 = vpop.f32.mrb[0].mxu0
    %2366 = vdwg.mxu0
    %v2367 = vsel %vm151, %v2364, -inf
    %2368 = vmax.xlane.f32.xlu0 %v2367
    %v2369 = vpop.xlane.xlu0 %2368
    %v2370 = vsub.f32 %v2364, %v2369
    %v2371 = vmul.f32 %v2370, 1.442695
    %v2372 = vpow.pop %v2371
    %v2373 = vsel %vm151, %v2372, 0.0
    %2374 = vadd.xlane.f32.xlu0 %v2373
    %v2375 = vpop.xlane.xlu0 %2374
    %v2376 = vrcp.pop %v2375
    %v2377 = vmul.f32 %v2372, %v2376
    %2378 = vrot.lane.b32.xlu0 %v1952, 48
    %v2379 = vpop.permute.xlu0 %2378
    %v2382 = vsel %vm151, %v2377, 0
    %2384 = vmatprep.subr.mxu0 0.0
    %2385 = vmatpush1.msra.mxu0 %v2379
    %2386 = vmatprep.subr.mxu0 0.0
    %2387 = vmatpush1.msra.mxu0 0.0
    %2388 = vmatprep.subr.mxu0 0.0
    %2389 = vmatpush1.msra.mxu0 0.0
    %2390 = vmatprep.subr.mxu0 0.0
    %2391 = vmatpush1.msra.mxu0 0.0
    %2392 = vmatprep.subr.mxu0 0.0
    %2393 = vmatpush1.msra.mxu0 0.0
    %2394 = vmatprep.subr.mxu0 0.0
    %2395 = vmatpush1.msra.mxu0 0.0
    %2396 = vmatprep.subr.mxu0 0.0
    %2397 = vmatpush1.msra.mxu0 0.0
    %2398 = vmatprep.subr.mxu0 0.0
    %2399 = vmatpush1.msra.mxu0 0.0
    %2400 = vmatprep.subr.mxu0 0.0
    %2401 = vmatpush1.msra.mxu0 0.0
    %2402 = vmatprep.subr.mxu0 0.0
    %2403 = vmatpush1.msra.mxu0 0.0
    %2404 = vmatprep.subr.mxu0 0.0
    %2405 = vmatpush1.msra.mxu0 0.0
    %2406 = vmatprep.subr.mxu0 0.0
    %2407 = vmatpush1.msra.mxu0 0.0
    %2408 = vmatprep.subr.mxu0 0.0
    %2409 = vmatpush1.msra.mxu0 0.0
    %2410 = vmatprep.subr.mxu0 0.0
    %2411 = vmatpush1.msra.mxu0 0.0
    %2412 = vmatprep.subr.mxu0 0.0
    %2413 = vmatpush1.msra.mxu0 0.0
    %2414 = vmatprep.subr.mxu0 0.0
    %2415 = vmatpush1.msra.mxu0 0.0
    %2416 = vmatprep.subr.mxu0 0.0
    %2417 = vmatpush1.msra.mxu0 0.0
    %2418 = vmatprep.subr.mxu0 0.0
    %2419 = vmatpush1.msra.mxu0 0.0
    %2420 = vmatprep.subr.mxu0 0.0
    %2421 = vmatpush1.msra.mxu0 0.0
    %2422 = vmatprep.subr.mxu0 0.0
    %2423 = vmatpush1.msra.mxu0 0.0
    %2424 = vmatprep.subr.mxu0 0.0
    %2425 = vmatpush1.msra.mxu0 0.0
    %2426 = vmatprep.subr.mxu0 0.0
    %2427 = vmatpush1.msra.mxu0 0.0
    %2428 = vmatprep.subr.mxu0 0.0
    %2429 = vmatpush1.msra.mxu0 0.0
    %2430 = vmatprep.subr.mxu0 0.0
    %2431 = vmatpush1.msra.mxu0 0.0
    %2432 = vmatprep.subr.mxu0 0.0
    %2433 = vmatpush1.msra.mxu0 0.0
    %2434 = vmatprep.subr.mxu0 0.0
    %2435 = vmatpush1.msra.mxu0 0.0
    %2436 = vmatprep.subr.mxu0 0.0
    %2437 = vmatpush1.msra.mxu0 0.0
    %2438 = vmatprep.subr.mxu0 0.0
    %2439 = vmatpush1.msra.mxu0 0.0
    %2440 = vmatprep.subr.mxu0 0.0
    %2441 = vmatpush1.msra.mxu0 0.0
    %2442 = vmatprep.subr.mxu0 0.0
    %2443 = vmatpush1.msra.mxu0 0.0
    %2444 = vmatprep.subr.mxu0 0.0
    %2445 = vmatpush1.msra.mxu0 0.0
    %2446 = vmatprep.subr.mxu0 0.0
    %2447 = vmatpush1.msra.mxu0 0.0
    %2448 = vmatprep.mubr.f32.mxu0 0.0
    %2449 = vmatmul.mubr.f32.gmra.mrb[0].mxu0 %v2382
    %v2450 = vpop.f32.mrb[0].mxu0
    %v2451 = vadd.f32 0.0, %v2450
    %v2452 = vpop.f32.mrb[0].mxu0
    %2453 = vdwg.mxu0
    %2454 = vrot.lane.b32.xlu0 %v1952, 104
    %v2455 = vpop.permute.xlu0 %2454
    %2456 = vrot.lane.b32.xlu0 %v1952, 72
    %v2457 = vpop.permute.xlu0 %2456
    %v2458 = vsel %vm151, %v2455, 0
    %v2460 = vsel %vm151, %v2457, 0
    %2462 = vmatprep.subr.mxu0 0.0
    %2463 = vmatpush1.xpose.msra.mxu0 %v2460
    %2464 = vmatprep.subr.mxu0 0.0
    %2465 = vmatpush1.xpose.msra.mxu0 0.0
    %2466 = vmatprep.subr.mxu0 0.0
    %2467 = vmatpush1.xpose.msra.mxu0 0.0
    %2468 = vmatprep.subr.mxu0 0.0
    %2469 = vmatpush1.xpose.msra.mxu0 0.0
    %2470 = vmatprep.subr.mxu0 0.0
    %2471 = vmatpush1.xpose.msra.mxu0 0.0
    %2472 = vmatprep.subr.mxu0 0.0
    %2473 = vmatpush1.xpose.msra.mxu0 0.0
    %2474 = vmatprep.subr.mxu0 0.0
    %2475 = vmatpush1.xpose.msra.mxu0 0.0
    %2476 = vmatprep.subr.mxu0 0.0
    %2477 = vmatpush1.xpose.msra.mxu0 0.0
    %2478 = vmatprep.subr.mxu0 0.0
    %2479 = vmatpush1.xpose.msra.mxu0 0.0
    %2480 = vmatprep.subr.mxu0 0.0
    %2481 = vmatpush1.xpose.msra.mxu0 0.0
    %2482 = vmatprep.subr.mxu0 0.0
    %2483 = vmatpush1.xpose.msra.mxu0 0.0
    %2484 = vmatprep.subr.mxu0 0.0
    %2485 = vmatpush1.xpose.msra.mxu0 0.0
    %2486 = vmatprep.subr.mxu0 0.0
    %2487 = vmatpush1.xpose.msra.mxu0 0.0
    %2488 = vmatprep.subr.mxu0 0.0
    %2489 = vmatpush1.xpose.msra.mxu0 0.0
    %2490 = vmatprep.subr.mxu0 0.0
    %2491 = vmatpush1.xpose.msra.mxu0 0.0
    %2492 = vmatprep.subr.mxu0 0.0
    %2493 = vmatpush1.xpose.msra.mxu0 0.0
    %2494 = vmatprep.subr.mxu0 0.0
    %2495 = vmatpush1.xpose.msra.mxu0 0.0
    %2496 = vmatprep.subr.mxu0 0.0
    %2497 = vmatpush1.xpose.msra.mxu0 0.0
    %2498 = vmatprep.subr.mxu0 0.0
    %2499 = vmatpush1.xpose.msra.mxu0 0.0
    %2500 = vmatprep.subr.mxu0 0.0
    %2501 = vmatpush1.xpose.msra.mxu0 0.0
    %2502 = vmatprep.subr.mxu0 0.0
    %2503 = vmatpush1.xpose.msra.mxu0 0.0
    %2504 = vmatprep.subr.mxu0 0.0
    %2505 = vmatpush1.xpose.msra.mxu0 0.0
    %2506 = vmatprep.subr.mxu0 0.0
    %2507 = vmatpush1.xpose.msra.mxu0 0.0
    %2508 = vmatprep.subr.mxu0 0.0
    %2509 = vmatpush1.xpose.msra.mxu0 0.0
    %2510 = vmatprep.subr.mxu0 0.0
    %2511 = vmatpush1.xpose.msra.mxu0 0.0
    %2512 = vmatprep.subr.mxu0 0.0
    %2513 = vmatpush1.xpose.msra.mxu0 0.0
    %2514 = vmatprep.subr.mxu0 0.0
    %2515 = vmatpush1.xpose.msra.mxu0 0.0
    %2516 = vmatprep.subr.mxu0 0.0
    %2517 = vmatpush1.xpose.msra.mxu0 0.0
    %2518 = vmatprep.subr.mxu0 0.0
    %2519 = vmatpush1.xpose.msra.mxu0 0.0
    %2520 = vmatprep.subr.mxu0 0.0
    %2521 = vmatpush1.xpose.msra.mxu0 0.0
    %2522 = vmatprep.subr.mxu0 0.0
    %2523 = vmatpush1.xpose.msra.mxu0 0.0
    %2524 = vmatprep.subr.mxu0 0.0
    %2525 = vmatpush1.xpose.msra.mxu0 0.0
    %2526 = vmatprep.mubr.f32.mxu0 0.0
    %2527 = vmatmul.mubr.f32.gmra.mrb[0].mxu0 %v2458
    %v2528 = vpop.f32.mrb[0].mxu0
    %v2529 = vadd.f32 0.0, %v2528
    %v2530 = vpop.f32.mrb[0].mxu0
    %2531 = vdwg.mxu0
    %v2532 = vsel %vm151, %v2529, -inf
    %2533 = vmax.xlane.f32.xlu0 %v2532
    %v2534 = vpop.xlane.xlu0 %2533
    %v2535 = vsub.f32 %v2529, %v2534
    %v2536 = vmul.f32 %v2535, 1.442695
    %v2537 = vpow.pop %v2536
    %v2538 = vsel %vm151, %v2537, 0.0
    %2539 = vadd.xlane.f32.xlu0 %v2538
    %v2540 = vpop.xlane.xlu0 %2539
    %v2541 = vrcp.pop %v2540
    %v2542 = vmul.f32 %v2537, %v2541
    %2543 = vrot.lane.b32.xlu0 %v1952, 40
    %v2544 = vpop.permute.xlu0 %2543
    %v2547 = vsel %vm151, %v2542, 0
    %2549 = vmatprep.subr.mxu0 0.0
    %2550 = vmatpush1.msra.mxu0 %v2544
    %2551 = vmatprep.subr.mxu0 0.0
    %2552 = vmatpush1.msra.mxu0 0.0
    %2553 = vmatprep.subr.mxu0 0.0
    %2554 = vmatpush1.msra.mxu0 0.0
    %2555 = vmatprep.subr.mxu0 0.0
    %2556 = vmatpush1.msra.mxu0 0.0
    %2557 = vmatprep.subr.mxu0 0.0
    %2558 = vmatpush1.msra.mxu0 0.0
    %2559 = vmatprep.subr.mxu0 0.0
    %2560 = vmatpush1.msra.mxu0 0.0
    %2561 = vmatprep.subr.mxu0 0.0
    %2562 = vmatpush1.msra.mxu0 0.0
    %2563 = vmatprep.subr.mxu0 0.0
    %2564 = vmatpush1.msra.mxu0 0.0
    %2565 = vmatprep.subr.mxu0 0.0
    %2566 = vmatpush1.msra.mxu0 0.0
    %2567 = vmatprep.subr.mxu0 0.0
    %2568 = vmatpush1.msra.mxu0 0.0
    %2569 = vmatprep.subr.mxu0 0.0
    %2570 = vmatpush1.msra.mxu0 0.0
    %2571 = vmatprep.subr.mxu0 0.0
    %2572 = vmatpush1.msra.mxu0 0.0
    %2573 = vmatprep.subr.mxu0 0.0
    %2574 = vmatpush1.msra.mxu0 0.0
    %2575 = vmatprep.subr.mxu0 0.0
    %2576 = vmatpush1.msra.mxu0 0.0
    %2577 = vmatprep.subr.mxu0 0.0
    %2578 = vmatpush1.msra.mxu0 0.0
    %2579 = vmatprep.subr.mxu0 0.0
    %2580 = vmatpush1.msra.mxu0 0.0
    %2581 = vmatprep.subr.mxu0 0.0
    %2582 = vmatpush1.msra.mxu0 0.0
    %2583 = vmatprep.subr.mxu0 0.0
    %2584 = vmatpush1.msra.mxu0 0.0
    %2585 = vmatprep.subr.mxu0 0.0
    %2586 = vmatpush1.msra.mxu0 0.0
    %2587 = vmatprep.subr.mxu0 0.0
    %2588 = vmatpush1.msra.mxu0 0.0
    %2589 = vmatprep.subr.mxu0 0.0
    %2590 = vmatpush1.msra.mxu0 0.0
    %2591 = vmatprep.subr.mxu0 0.0
    %2592 = vmatpush1.msra.mxu0 0.0
    %2593 = vmatprep.subr.mxu0 0.0
    %2594 = vmatpush1.msra.mxu0 0.0
    %2595 = vmatprep.subr.mxu0 0.0
    %2596 = vmatpush1.msra.mxu0 0.0
    %2597 = vmatprep.subr.mxu0 0.0
    %2598 = vmatpush1.msra.mxu0 0.0
    %2599 = vmatprep.subr.mxu0 0.0
    %2600 = vmatpush1.msra.mxu0 0.0
    %2601 = vmatprep.subr.mxu0 0.0
    %2602 = vmatpush1.msra.mxu0 0.0
    %2603 = vmatprep.subr.mxu0 0.0
    %2604 = vmatpush1.msra.mxu0 0.0
    %2605 = vmatprep.subr.mxu0 0.0
    %2606 = vmatpush1.msra.mxu0 0.0
    %2607 = vmatprep.subr.mxu0 0.0
    %2608 = vmatpush1.msra.mxu0 0.0
    %2609 = vmatprep.subr.mxu0 0.0
    %2610 = vmatpush1.msra.mxu0 0.0
    %2611 = vmatprep.subr.mxu0 0.0
    %2612 = vmatpush1.msra.mxu0 0.0
    %2613 = vmatprep.mubr.f32.mxu0 0.0
    %2614 = vmatmul.mubr.f32.gmra.mrb[0].mxu0 %v2547
    %v2615 = vpop.f32.mrb[0].mxu0
    %v2616 = vadd.f32 0.0, %v2615
    %v2617 = vpop.f32.mrb[0].mxu0
    %2618 = vdwg.mxu0
    %2620 = vrot.lane.b32.xlu0 %v2286, 8
    %v2621 = vpop.permute.xlu0 %2620
    %2624 = vrot.lane.b32.xlu0 %v2451, 16
    %v2625 = vpop.permute.xlu0 %2624
    %2628 = vrot.lane.b32.xlu0 %v2616, 24
    %v2629 = vpop.permute.xlu0 %2628
    %v2631 = vsel %vm151, %v2121, %v2621
    %v2632 = vsel %vm821, %v2631, %v2625
    %v2633 = vsel %vm823, %v2632, %v2629
    %2635 = vrot.lane.b32.xlu0 %v1957, 96
    %v2636 = vpop.permute.xlu0 %2635
    %v2637 = vsel %vm151, %v1957, 0
    %v2639 = vsel %vm151, %v2636, 0
    %2641 = vmatprep.subr.mxu0 0.0
    %2642 = vmatpush1.xpose.msra.mxu0 %v2639
    %2643 = vmatprep.subr.mxu0 0.0
    %2644 = vmatpush1.xpose.msra.mxu0 0.0
    %2645 = vmatprep.subr.mxu0 0.0
    %2646 = vmatpush1.xpose.msra.mxu0 0.0
    %2647 = vmatprep.subr.mxu0 0.0
    %2648 = vmatpush1.xpose.msra.mxu0 0.0
    %2649 = vmatprep.subr.mxu0 0.0
    %2650 = vmatpush1.xpose.msra.mxu0 0.0
    %2651 = vmatprep.subr.mxu0 0.0
    %2652 = vmatpush1.xpose.msra.mxu0 0.0
    %2653 = vmatprep.subr.mxu0 0.0
    %2654 = vmatpush1.xpose.msra.mxu0 0.0
    %2655 = vmatprep.subr.mxu0 0.0
    %2656 = vmatpush1.xpose.msra.mxu0 0.0
    %2657 = vmatprep.subr.mxu0 0.0
    %2658 = vmatpush1.xpose.msra.mxu0 0.0
    %2659 = vmatprep.subr.mxu0 0.0
    %2660 = vmatpush1.xpose.msra.mxu0 0.0
    %2661 = vmatprep.subr.mxu0 0.0
    %2662 = vmatpush1.xpose.msra.mxu0 0.0
    %2663 = vmatprep.subr.mxu0 0.0
    %2664 = vmatpush1.xpose.msra.mxu0 0.0
    %2665 = vmatprep.subr.mxu0 0.0
    %2666 = vmatpush1.xpose.msra.mxu0 0.0
    %2667 = vmatprep.subr.mxu0 0.0
    %2668 = vmatpush1.xpose.msra.mxu0 0.0
    %2669 = vmatprep.subr.mxu0 0.0
    %2670 = vmatpush1.xpose.msra.mxu0 0.0
    %2671 = vmatprep.subr.mxu0 0.0
    %2672 = vmatpush1.xpose.msra.mxu0 0.0
    %2673 = vmatprep.subr.mxu0 0.0
    %2674 = vmatpush1.xpose.msra.mxu0 0.0
    %2675 = vmatprep.subr.mxu0 0.0
    %2676 = vmatpush1.xpose.msra.mxu0 0.0
    %2677 = vmatprep.subr.mxu0 0.0
    %2678 = vmatpush1.xpose.msra.mxu0 0.0
    %2679 = vmatprep.subr.mxu0 0.0
    %2680 = vmatpush1.xpose.msra.mxu0 0.0
    %2681 = vmatprep.subr.mxu0 0.0
    %2682 = vmatpush1.xpose.msra.mxu0 0.0
    %2683 = vmatprep.subr.mxu0 0.0
    %2684 = vmatpush1.xpose.msra.mxu0 0.0
    %2685 = vmatprep.subr.mxu0 0.0
    %2686 = vmatpush1.xpose.msra.mxu0 0.0
    %2687 = vmatprep.subr.mxu0 0.0
    %2688 = vmatpush1.xpose.msra.mxu0 0.0
    %2689 = vmatprep.subr.mxu0 0.0
    %2690 = vmatpush1.xpose.msra.mxu0 0.0
    %2691 = vmatprep.subr.mxu0 0.0
    %2692 = vmatpush1.xpose.msra.mxu0 0.0
    %2693 = vmatprep.subr.mxu0 0.0
    %2694 = vmatpush1.xpose.msra.mxu0 0.0
    %2695 = vmatprep.subr.mxu0 0.0
    %2696 = vmatpush1.xpose.msra.mxu0 0.0
    %2697 = vmatprep.subr.mxu0 0.0
    %2698 = vmatpush1.xpose.msra.mxu0 0.0
    %2699 = vmatprep.subr.mxu0 0.0
    %2700 = vmatpush1.xpose.msra.mxu0 0.0
    %2701 = vmatprep.subr.mxu0 0.0
    %2702 = vmatpush1.xpose.msra.mxu0 0.0
    %2703 = vmatprep.subr.mxu0 0.0
    %2704 = vmatpush1.xpose.msra.mxu0 0.0
    %2705 = vmatprep.mubr.f32.mxu0 0.0
    %2706 = vmatmul.mubr.f32.gmra.mrb[0].mxu0 %v2637
    %v2707 = vpop.f32.mrb[0].mxu0
    %v2708 = vadd.f32 0.0, %v2707
    %v2709 = vpop.f32.mrb[0].mxu0
    %2710 = vdwg.mxu0
    %v2711 = vsel %vm151, %v2708, -inf
    %2712 = vmax.xlane.f32.xlu0 %v2711
    %v2713 = vpop.xlane.xlu0 %2712
    %v2714 = vsub.f32 %v2708, %v2713
    %v2715 = vmul.f32 %v2714, 1.442695
    %v2716 = vpow.pop %v2715
    %v2717 = vsel %vm151, %v2716, 0.0
    %2718 = vadd.xlane.f32.xlu0 %v2717
    %v2719 = vpop.xlane.xlu0 %2718
    %v2720 = vrcp.pop %v2719
    %v2721 = vmul.f32 %v2716, %v2720
    %2722 = vrot.lane.b32.xlu0 %v1957, 64
    %v2723 = vpop.permute.xlu0 %2722
    %v2726 = vsel %vm151, %v2721, 0
    %2728 = vmatprep.subr.mxu0 0.0
    %2729 = vmatpush1.msra.mxu0 %v2723
    %2730 = vmatprep.subr.mxu0 0.0
    %2731 = vmatpush1.msra.mxu0 0.0
    %2732 = vmatprep.subr.mxu0 0.0
    %2733 = vmatpush1.msra.mxu0 0.0
    %2734 = vmatprep.subr.mxu0 0.0
    %2735 = vmatpush1.msra.mxu0 0.0
    %2736 = vmatprep.subr.mxu0 0.0
    %2737 = vmatpush1.msra.mxu0 0.0
    %2738 = vmatprep.subr.mxu0 0.0
    %2739 = vmatpush1.msra.mxu0 0.0
    %2740 = vmatprep.subr.mxu0 0.0
    %2741 = vmatpush1.msra.mxu0 0.0
    %2742 = vmatprep.subr.mxu0 0.0
    %2743 = vmatpush1.msra.mxu0 0.0
    %2744 = vmatprep.subr.mxu0 0.0
    %2745 = vmatpush1.msra.mxu0 0.0
    %2746 = vmatprep.subr.mxu0 0.0
    %2747 = vmatpush1.msra.mxu0 0.0
    %2748 = vmatprep.subr.mxu0 0.0
    %2749 = vmatpush1.msra.mxu0 0.0
    %2750 = vmatprep.subr.mxu0 0.0
    %2751 = vmatpush1.msra.mxu0 0.0
    %2752 = vmatprep.subr.mxu0 0.0
    %2753 = vmatpush1.msra.mxu0 0.0
    %2754 = vmatprep.subr.mxu0 0.0
    %2755 = vmatpush1.msra.mxu0 0.0
    %2756 = vmatprep.subr.mxu0 0.0
    %2757 = vmatpush1.msra.mxu0 0.0
    %2758 = vmatprep.subr.mxu0 0.0
    %2759 = vmatpush1.msra.mxu0 0.0
    %2760 = vmatprep.subr.mxu0 0.0
    %2761 = vmatpush1.msra.mxu0 0.0
    %2762 = vmatprep.subr.mxu0 0.0
    %2763 = vmatpush1.msra.mxu0 0.0
    %2764 = vmatprep.subr.mxu0 0.0
    %2765 = vmatpush1.msra.mxu0 0.0
    %2766 = vmatprep.subr.mxu0 0.0
    %2767 = vmatpush1.msra.mxu0 0.0
    %2768 = vmatprep.subr.mxu0 0.0
    %2769 = vmatpush1.msra.mxu0 0.0
    %2770 = vmatprep.subr.mxu0 0.0
    %2771 = vmatpush1.msra.mxu0 0.0
    %2772 = vmatprep.subr.mxu0 0.0
    %2773 = vmatpush1.msra.mxu0 0.0
    %2774 = vmatprep.subr.mxu0 0.0
    %2775 = vmatpush1.msra.mxu0 0.0
    %2776 = vmatprep.subr.mxu0 0.0
    %2777 = vmatpush1.msra.mxu0 0.0
    %2778 = vmatprep.subr.mxu0 0.0
    %2779 = vmatpush1.msra.mxu0 0.0
    %2780 = vmatprep.subr.mxu0 0.0
    %2781 = vmatpush1.msra.mxu0 0.0
    %2782 = vmatprep.subr.mxu0 0.0
    %2783 = vmatpush1.msra.mxu0 0.0
    %2784 = vmatprep.subr.mxu0 0.0
    %2785 = vmatpush1.msra.mxu0 0.0
    %2786 = vmatprep.subr.mxu0 0.0
    %2787 = vmatpush1.msra.mxu0 0.0
    %2788 = vmatprep.subr.mxu0 0.0
    %2789 = vmatpush1.msra.mxu0 0.0
    %2790 = vmatprep.subr.mxu0 0.0
    %2791 = vmatpush1.msra.mxu0 0.0
    %2792 = vmatprep.mubr.f32.mxu0 0.0
    %2793 = vmatmul.mubr.f32.gmra.mrb[0].mxu0 %v2726
    %v2794 = vpop.f32.mrb[0].mxu0
    %v2795 = vadd.f32 0.0, %v2794
    %v2796 = vpop.f32.mrb[0].mxu0
    %2797 = vdwg.mxu0
    %2798 = vrot.lane.b32.xlu0 %v1957, 120
    %v2799 = vpop.permute.xlu0 %2798
    %2800 = vrot.lane.b32.xlu0 %v1957, 88
    %v2801 = vpop.permute.xlu0 %2800
    %v2802 = vsel %vm151, %v2799, 0
    %v2804 = vsel %vm151, %v2801, 0
    %2806 = vmatprep.subr.mxu0 0.0
    %2807 = vmatpush1.xpose.msra.mxu0 %v2804
    %2808 = vmatprep.subr.mxu0 0.0
    %2809 = vmatpush1.xpose.msra.mxu0 0.0
    %2810 = vmatprep.subr.mxu0 0.0
    %2811 = vmatpush1.xpose.msra.mxu0 0.0
    %2812 = vmatprep.subr.mxu0 0.0
    %2813 = vmatpush1.xpose.msra.mxu0 0.0
    %2814 = vmatprep.subr.mxu0 0.0
    %2815 = vmatpush1.xpose.msra.mxu0 0.0
    %2816 = vmatprep.subr.mxu0 0.0
    %2817 = vmatpush1.xpose.msra.mxu0 0.0
    %2818 = vmatprep.subr.mxu0 0.0
    %2819 = vmatpush1.xpose.msra.mxu0 0.0
    %2820 = vmatprep.subr.mxu0 0.0
    %2821 = vmatpush1.xpose.msra.mxu0 0.0
    %2822 = vmatprep.subr.mxu0 0.0
    %2823 = vmatpush1.xpose.msra.mxu0 0.0
    %2824 = vmatprep.subr.mxu0 0.0
    %2825 = vmatpush1.xpose.msra.mxu0 0.0
    %2826 = vmatprep.subr.mxu0 0.0
    %2827 = vmatpush1.xpose.msra.mxu0 0.0
    %2828 = vmatprep.subr.mxu0 0.0
    %2829 = vmatpush1.xpose.msra.mxu0 0.0
    %2830 = vmatprep.subr.mxu0 0.0
    %2831 = vmatpush1.xpose.msra.mxu0 0.0
    %2832 = vmatprep.subr.mxu0 0.0
    %2833 = vmatpush1.xpose.msra.mxu0 0.0
    %2834 = vmatprep.subr.mxu0 0.0
    %2835 = vmatpush1.xpose.msra.mxu0 0.0
    %2836 = vmatprep.subr.mxu0 0.0
    %2837 = vmatpush1.xpose.msra.mxu0 0.0
    %2838 = vmatprep.subr.mxu0 0.0
    %2839 = vmatpush1.xpose.msra.mxu0 0.0
    %2840 = vmatprep.subr.mxu0 0.0
    %2841 = vmatpush1.xpose.msra.mxu0 0.0
    %2842 = vmatprep.subr.mxu0 0.0
    %2843 = vmatpush1.xpose.msra.mxu0 0.0
    %2844 = vmatprep.subr.mxu0 0.0
    %2845 = vmatpush1.xpose.msra.mxu0 0.0
    %2846 = vmatprep.subr.mxu0 0.0
    %2847 = vmatpush1.xpose.msra.mxu0 0.0
    %2848 = vmatprep.subr.mxu0 0.0
    %2849 = vmatpush1.xpose.msra.mxu0 0.0
    %2850 = vmatprep.subr.mxu0 0.0
    %2851 = vmatpush1.xpose.msra.mxu0 0.0
    %2852 = vmatprep.subr.mxu0 0.0
    %2853 = vmatpush1.xpose.msra.mxu0 0.0
    %2854 = vmatprep.subr.mxu0 0.0
    %2855 = vmatpush1.xpose.msra.mxu0 0.0
    %2856 = vmatprep.subr.mxu0 0.0
    %2857 = vmatpush1.xpose.msra.mxu0 0.0
    %2858 = vmatprep.subr.mxu0 0.0
    %2859 = vmatpush1.xpose.msra.mxu0 0.0
    %2860 = vmatprep.subr.mxu0 0.0
    %2861 = vmatpush1.xpose.msra.mxu0 0.0
    %2862 = vmatprep.subr.mxu0 0.0
    %2863 = vmatpush1.xpose.msra.mxu0 0.0
    %2864 = vmatprep.subr.mxu0 0.0
    %2865 = vmatpush1.xpose.msra.mxu0 0.0
    %2866 = vmatprep.subr.mxu0 0.0
    %2867 = vmatpush1.xpose.msra.mxu0 0.0
    %2868 = vmatprep.subr.mxu0 0.0
    %2869 = vmatpush1.xpose.msra.mxu0 0.0
    %2870 = vmatprep.mubr.f32.mxu0 0.0
    %2871 = vmatmul.mubr.f32.gmra.mrb[0].mxu0 %v2802
    %v2872 = vpop.f32.mrb[0].mxu0
    %v2873 = vadd.f32 0.0, %v2872
    %v2874 = vpop.f32.mrb[0].mxu0
    %2875 = vdwg.mxu0
    %v2876 = vsel %vm151, %v2873, -inf
    %2877 = vmax.xlane.f32.xlu0 %v2876
    %v2878 = vpop.xlane.xlu0 %2877
    %v2879 = vsub.f32 %v2873, %v2878
    %v2880 = vmul.f32 %v2879, 1.442695
    %v2881 = vpow.pop %v2880
    %v2882 = vsel %vm151, %v2881, 0.0
    %2883 = vadd.xlane.f32.xlu0 %v2882
    %v2884 = vpop.xlane.xlu0 %2883
    %v2885 = vrcp.pop %v2884
    %v2886 = vmul.f32 %v2881, %v2885
    %2887 = vrot.lane.b32.xlu0 %v1957, 56
    %v2888 = vpop.permute.xlu0 %2887
    %v2891 = vsel %vm151, %v2886, 0
    %2893 = vmatprep.subr.mxu0 0.0
    %2894 = vmatpush1.msra.mxu0 %v2888
    %2895 = vmatprep.subr.mxu0 0.0
    %2896 = vmatpush1.msra.mxu0 0.0
    %2897 = vmatprep.subr.mxu0 0.0
    %2898 = vmatpush1.msra.mxu0 0.0
    %2899 = vmatprep.subr.mxu0 0.0
    %2900 = vmatpush1.msra.mxu0 0.0
    %2901 = vmatprep.subr.mxu0 0.0
    %2902 = vmatpush1.msra.mxu0 0.0
    %2903 = vmatprep.subr.mxu0 0.0
    %2904 = vmatpush1.msra.mxu0 0.0
    %2905 = vmatprep.subr.mxu0 0.0
    %2906 = vmatpush1.msra.mxu0 0.0
    %2907 = vmatprep.subr.mxu0 0.0
    %2908 = vmatpush1.msra.mxu0 0.0
    %2909 = vmatprep.subr.mxu0 0.0
    %2910 = vmatpush1.msra.mxu0 0.0
    %2911 = vmatprep.subr.mxu0 0.0
    %2912 = vmatpush1.msra.mxu0 0.0
    %2913 = vmatprep.subr.mxu0 0.0
    %2914 = vmatpush1.msra.mxu0 0.0
    %2915 = vmatprep.subr.mxu0 0.0
    %2916 = vmatpush1.msra.mxu0 0.0
    %2917 = vmatprep.subr.mxu0 0.0
    %2918 = vmatpush1.msra.mxu0 0.0
    %2919 = vmatprep.subr.mxu0 0.0
    %2920 = vmatpush1.msra.mxu0 0.0
    %2921 = vmatprep.subr.mxu0 0.0
    %2922 = vmatpush1.msra.mxu0 0.0
    %2923 = vmatprep.subr.mxu0 0.0
    %2924 = vmatpush1.msra.mxu0 0.0
    %2925 = vmatprep.subr.mxu0 0.0
    %2926 = vmatpush1.msra.mxu0 0.0
    %2927 = vmatprep.subr.mxu0 0.0
    %2928 = vmatpush1.msra.mxu0 0.0
    %2929 = vmatprep.subr.mxu0 0.0
    %2930 = vmatpush1.msra.mxu0 0.0
    %2931 = vmatprep.subr.mxu0 0.0
    %2932 = vmatpush1.msra.mxu0 0.0
    %2933 = vmatprep.subr.mxu0 0.0
    %2934 = vmatpush1.msra.mxu0 0.0
    %2935 = vmatprep.subr.mxu0 0.0
    %2936 = vmatpush1.msra.mxu0 0.0
    %2937 = vmatprep.subr.mxu0 0.0
    %2938 = vmatpush1.msra.mxu0 0.0
    %2939 = vmatprep.subr.mxu0 0.0
    %2940 = vmatpush1.msra.mxu0 0.0
    %2941 = vmatprep.subr.mxu0 0.0
    %2942 = vmatpush1.msra.mxu0 0.0
    %2943 = vmatprep.subr.mxu0 0.0
    %2944 = vmatpush1.msra.mxu0 0.0
    %2945 = vmatprep.subr.mxu0 0.0
    %2946 = vmatpush1.msra.mxu0 0.0
    %2947 = vmatprep.subr.mxu0 0.0
    %2948 = vmatpush1.msra.mxu0 0.0
    %2949 = vmatprep.subr.mxu0 0.0
    %2950 = vmatpush1.msra.mxu0 0.0
    %2951 = vmatprep.subr.mxu0 0.0
    %2952 = vmatpush1.msra.mxu0 0.0
    %2953 = vmatprep.subr.mxu0 0.0
    %2954 = vmatpush1.msra.mxu0 0.0
    %2955 = vmatprep.subr.mxu0 0.0
    %2956 = vmatpush1.msra.mxu0 0.0
    %2957 = vmatprep.mubr.f32.mxu0 0.0
    %2958 = vmatmul.mubr.f32.gmra.mrb[0].mxu0 %v2891
    %v2959 = vpop.f32.mrb[0].mxu0
    %v2960 = vadd.f32 0.0, %v2959
    %v2961 = vpop.f32.mrb[0].mxu0
    %2962 = vdwg.mxu0
    %2963 = vrot.lane.b32.xlu0 %v1957, 112
    %v2964 = vpop.permute.xlu0 %2963
    %2965 = vrot.lane.b32.xlu0 %v1957, 80
    %v2966 = vpop.permute.xlu0 %2965
    %v2967 = vsel %vm151, %v2964, 0
    %v2969 = vsel %vm151, %v2966, 0
    %2971 = vmatprep.subr.mxu0 0.0
    %2972 = vmatpush1.xpose.msra.mxu0 %v2969
    %2973 = vmatprep.subr.mxu0 0.0
    %2974 = vmatpush1.xpose.msra.mxu0 0.0
    %2975 = vmatprep.subr.mxu0 0.0
    %2976 = vmatpush1.xpose.msra.mxu0 0.0
    %2977 = vmatprep.subr.mxu0 0.0
    %2978 = vmatpush1.xpose.msra.mxu0 0.0
    %2979 = vmatprep.subr.mxu0 0.0
    %2980 = vmatpush1.xpose.msra.mxu0 0.0
    %2981 = vmatprep.subr.mxu0 0.0
    %2982 = vmatpush1.xpose.msra.mxu0 0.0
    %2983 = vmatprep.subr.mxu0 0.0
    %2984 = vmatpush1.xpose.msra.mxu0 0.0
    %2985 = vmatprep.subr.mxu0 0.0
    %2986 = vmatpush1.xpose.msra.mxu0 0.0
    %2987 = vmatprep.subr.mxu0 0.0
    %2988 = vmatpush1.xpose.msra.mxu0 0.0
    %2989 = vmatprep.subr.mxu0 0.0
    %2990 = vmatpush1.xpose.msra.mxu0 0.0
    %2991 = vmatprep.subr.mxu0 0.0
    %2992 = vmatpush1.xpose.msra.mxu0 0.0
    %2993 = vmatprep.subr.mxu0 0.0
    %2994 = vmatpush1.xpose.msra.mxu0 0.0
    %2995 = vmatprep.subr.mxu0 0.0
    %2996 = vmatpush1.xpose.msra.mxu0 0.0
    %2997 = vmatprep.subr.mxu0 0.0
    %2998 = vmatpush1.xpose.msra.mxu0 0.0
    %2999 = vmatprep.subr.mxu0 0.0
    %3000 = vmatpush1.xpose.msra.mxu0 0.0
    %3001 = vmatprep.subr.mxu0 0.0
    %3002 = vmatpush1.xpose.msra.mxu0 0.0
    %3003 = vmatprep.subr.mxu0 0.0
    %3004 = vmatpush1.xpose.msra.mxu0 0.0
    %3005 = vmatprep.subr.mxu0 0.0
    %3006 = vmatpush1.xpose.msra.mxu0 0.0
    %3007 = vmatprep.subr.mxu0 0.0
    %3008 = vmatpush1.xpose.msra.mxu0 0.0
    %3009 = vmatprep.subr.mxu0 0.0
    %3010 = vmatpush1.xpose.msra.mxu0 0.0
    %3011 = vmatprep.subr.mxu0 0.0
    %3012 = vmatpush1.xpose.msra.mxu0 0.0
    %3013 = vmatprep.subr.mxu0 0.0
    %3014 = vmatpush1.xpose.msra.mxu0 0.0
    %3015 = vmatprep.subr.mxu0 0.0
    %3016 = vmatpush1.xpose.msra.mxu0 0.0
    %3017 = vmatprep.subr.mxu0 0.0
    %3018 = vmatpush1.xpose.msra.mxu0 0.0
    %3019 = vmatprep.subr.mxu0 0.0
    %3020 = vmatpush1.xpose.msra.mxu0 0.0
    %3021 = vmatprep.subr.mxu0 0.0
    %3022 = vmatpush1.xpose.msra.mxu0 0.0
    %3023 = vmatprep.subr.mxu0 0.0
    %3024 = vmatpush1.xpose.msra.mxu0 0.0
    %3025 = vmatprep.subr.mxu0 0.0
    %3026 = vmatpush1.xpose.msra.mxu0 0.0
    %3027 = vmatprep.subr.mxu0 0.0
    %3028 = vmatpush1.xpose.msra.mxu0 0.0
    %3029 = vmatprep.subr.mxu0 0.0
    %3030 = vmatpush1.xpose.msra.mxu0 0.0
    %3031 = vmatprep.subr.mxu0 0.0
    %3032 = vmatpush1.xpose.msra.mxu0 0.0
    %3033 = vmatprep.subr.mxu0 0.0
    %3034 = vmatpush1.xpose.msra.mxu0 0.0
    %3035 = vmatprep.mubr.f32.mxu0 0.0
    %3036 = vmatmul.mubr.f32.gmra.mrb[0].mxu0 %v2967
    %v3037 = vpop.f32.mrb[0].mxu0
    %v3038 = vadd.f32 0.0, %v3037
    %v3039 = vpop.f32.mrb[0].mxu0
    %3040 = vdwg.mxu0
    %v3041 = vsel %vm151, %v3038, -inf
    %3042 = vmax.xlane.f32.xlu0 %v3041
    %v3043 = vpop.xlane.xlu0 %3042
    %v3044 = vsub.f32 %v3038, %v3043
    %v3045 = vmul.f32 %v3044, 1.442695
    %v3046 = vpow.pop %v3045
    %v3047 = vsel %vm151, %v3046, 0.0
    %3048 = vadd.xlane.f32.xlu0 %v3047
    %v3049 = vpop.xlane.xlu0 %3048
    %v3050 = vrcp.pop %v3049
    %v3051 = vmul.f32 %v3046, %v3050
    %3052 = vrot.lane.b32.xlu0 %v1957, 48
    %v3053 = vpop.permute.xlu0 %3052
    %v3056 = vsel %vm151, %v3051, 0
    %3058 = vmatprep.subr.mxu0 0.0
    %3059 = vmatpush1.msra.mxu0 %v3053
    %3060 = vmatprep.subr.mxu0 0.0
    %3061 = vmatpush1.msra.mxu0 0.0
    %3062 = vmatprep.subr.mxu0 0.0
    %3063 = vmatpush1.msra.mxu0 0.0
    %3064 = vmatprep.subr.mxu0 0.0
    %3065 = vmatpush1.msra.mxu0 0.0
    %3066 = vmatprep.subr.mxu0 0.0
    %3067 = vmatpush1.msra.mxu0 0.0
    %3068 = vmatprep.subr.mxu0 0.0
    %3069 = vmatpush1.msra.mxu0 0.0
    %3070 = vmatprep.subr.mxu0 0.0
    %3071 = vmatpush1.msra.mxu0 0.0
    %3072 = vmatprep.subr.mxu0 0.0
    %3073 = vmatpush1.msra.mxu0 0.0
    %3074 = vmatprep.subr.mxu0 0.0
    %3075 = vmatpush1.msra.mxu0 0.0
    %3076 = vmatprep.subr.mxu0 0.0
    %3077 = vmatpush1.msra.mxu0 0.0
    %3078 = vmatprep.subr.mxu0 0.0
    %3079 = vmatpush1.msra.mxu0 0.0
    %3080 = vmatprep.subr.mxu0 0.0
    %3081 = vmatpush1.msra.mxu0 0.0
    %3082 = vmatprep.subr.mxu0 0.0
    %3083 = vmatpush1.msra.mxu0 0.0
    %3084 = vmatprep.subr.mxu0 0.0
    %3085 = vmatpush1.msra.mxu0 0.0
    %3086 = vmatprep.subr.mxu0 0.0
    %3087 = vmatpush1.msra.mxu0 0.0
    %3088 = vmatprep.subr.mxu0 0.0
    %3089 = vmatpush1.msra.mxu0 0.0
    %3090 = vmatprep.subr.mxu0 0.0
    %3091 = vmatpush1.msra.mxu0 0.0
    %3092 = vmatprep.subr.mxu0 0.0
    %3093 = vmatpush1.msra.mxu0 0.0
    %3094 = vmatprep.subr.mxu0 0.0
    %3095 = vmatpush1.msra.mxu0 0.0
    %3096 = vmatprep.subr.mxu0 0.0
    %3097 = vmatpush1.msra.mxu0 0.0
    %3098 = vmatprep.subr.mxu0 0.0
    %3099 = vmatpush1.msra.mxu0 0.0
    %3100 = vmatprep.subr.mxu0 0.0
    %3101 = vmatpush1.msra.mxu0 0.0
    %3102 = vmatprep.subr.mxu0 0.0
    %3103 = vmatpush1.msra.mxu0 0.0
    %3104 = vmatprep.subr.mxu0 0.0
    %3105 = vmatpush1.msra.mxu0 0.0
    %3106 = vmatprep.subr.mxu0 0.0
    %3107 = vmatpush1.msra.mxu0 0.0
    %3108 = vmatprep.subr.mxu0 0.0
    %3109 = vmatpush1.msra.mxu0 0.0
    %3110 = vmatprep.subr.mxu0 0.0
    %3111 = vmatpush1.msra.mxu0 0.0
    %3112 = vmatprep.subr.mxu0 0.0
    %3113 = vmatpush1.msra.mxu0 0.0
    %3114 = vmatprep.subr.mxu0 0.0
    %3115 = vmatpush1.msra.mxu0 0.0
    %3116 = vmatprep.subr.mxu0 0.0
    %3117 = vmatpush1.msra.mxu0 0.0
    %3118 = vmatprep.subr.mxu0 0.0
    %3119 = vmatpush1.msra.mxu0 0.0
    %3120 = vmatprep.subr.mxu0 0.0
    %3121 = vmatpush1.msra.mxu0 0.0
    %3122 = vmatprep.mubr.f32.mxu0 0.0
    %3123 = vmatmul.mubr.f32.gmra.mrb[0].mxu0 %v3056
    %v3124 = vpop.f32.mrb[0].mxu0
    %v3125 = vadd.f32 0.0, %v3124
    %v3126 = vpop.f32.mrb[0].mxu0
    %3127 = vdwg.mxu0
    %3128 = vrot.lane.b32.xlu0 %v1957, 104
    %v3129 = vpop.permute.xlu0 %3128
    %3130 = vrot.lane.b32.xlu0 %v1957, 72
    %v3131 = vpop.permute.xlu0 %3130
    %v3132 = vsel %vm151, %v3129, 0
    %v3134 = vsel %vm151, %v3131, 0
    %3136 = vmatprep.subr.mxu0 0.0
    %3137 = vmatpush1.xpose.msra.mxu0 %v3134
    %3138 = vmatprep.subr.mxu0 0.0
    %3139 = vmatpush1.xpose.msra.mxu0 0.0
    %3140 = vmatprep.subr.mxu0 0.0
    %3141 = vmatpush1.xpose.msra.mxu0 0.0
    %3142 = vmatprep.subr.mxu0 0.0
    %3143 = vmatpush1.xpose.msra.mxu0 0.0
    %3144 = vmatprep.subr.mxu0 0.0
    %3145 = vmatpush1.xpose.msra.mxu0 0.0
    %3146 = vmatprep.subr.mxu0 0.0
    %3147 = vmatpush1.xpose.msra.mxu0 0.0
    %3148 = vmatprep.subr.mxu0 0.0
    %3149 = vmatpush1.xpose.msra.mxu0 0.0
    %3150 = vmatprep.subr.mxu0 0.0
    %3151 = vmatpush1.xpose.msra.mxu0 0.0
    %3152 = vmatprep.subr.mxu0 0.0
    %3153 = vmatpush1.xpose.msra.mxu0 0.0
    %3154 = vmatprep.subr.mxu0 0.0
    %3155 = vmatpush1.xpose.msra.mxu0 0.0
    %3156 = vmatprep.subr.mxu0 0.0
    %3157 = vmatpush1.xpose.msra.mxu0 0.0
    %3158 = vmatprep.subr.mxu0 0.0
    %3159 = vmatpush1.xpose.msra.mxu0 0.0
    %3160 = vmatprep.subr.mxu0 0.0
    %3161 = vmatpush1.xpose.msra.mxu0 0.0
    %3162 = vmatprep.subr.mxu0 0.0
    %3163 = vmatpush1.xpose.msra.mxu0 0.0
    %3164 = vmatprep.subr.mxu0 0.0
    %3165 = vmatpush1.xpose.msra.mxu0 0.0
    %3166 = vmatprep.subr.mxu0 0.0
    %3167 = vmatpush1.xpose.msra.mxu0 0.0
    %3168 = vmatprep.subr.mxu0 0.0
    %3169 = vmatpush1.xpose.msra.mxu0 0.0
    %3170 = vmatprep.subr.mxu0 0.0
    %3171 = vmatpush1.xpose.msra.mxu0 0.0
    %3172 = vmatprep.subr.mxu0 0.0
    %3173 = vmatpush1.xpose.msra.mxu0 0.0
    %3174 = vmatprep.subr.mxu0 0.0
    %3175 = vmatpush1.xpose.msra.mxu0 0.0
    %3176 = vmatprep.subr.mxu0 0.0
    %3177 = vmatpush1.xpose.msra.mxu0 0.0
    %3178 = vmatprep.subr.mxu0 0.0
    %3179 = vmatpush1.xpose.msra.mxu0 0.0
    %3180 = vmatprep.subr.mxu0 0.0
    %3181 = vmatpush1.xpose.msra.mxu0 0.0
    %3182 = vmatprep.subr.mxu0 0.0
    %3183 = vmatpush1.xpose.msra.mxu0 0.0
    %3184 = vmatprep.subr.mxu0 0.0
    %3185 = vmatpush1.xpose.msra.mxu0 0.0
    %3186 = vmatprep.subr.mxu0 0.0
    %3187 = vmatpush1.xpose.msra.mxu0 0.0
    %3188 = vmatprep.subr.mxu0 0.0
    %3189 = vmatpush1.xpose.msra.mxu0 0.0
    %3190 = vmatprep.subr.mxu0 0.0
    %3191 = vmatpush1.xpose.msra.mxu0 0.0
    %3192 = vmatprep.subr.mxu0 0.0
    %3193 = vmatpush1.xpose.msra.mxu0 0.0
    %3194 = vmatprep.subr.mxu0 0.0
    %3195 = vmatpush1.xpose.msra.mxu0 0.0
    %3196 = vmatprep.subr.mxu0 0.0
    %3197 = vmatpush1.xpose.msra.mxu0 0.0
    %3198 = vmatprep.subr.mxu0 0.0
    %3199 = vmatpush1.xpose.msra.mxu0 0.0
    %3200 = vmatprep.mubr.f32.mxu0 0.0
    %3201 = vmatmul.mubr.f32.gmra.mrb[0].mxu0 %v3132
    %v3202 = vpop.f32.mrb[0].mxu0
    %v3203 = vadd.f32 0.0, %v3202
    %v3204 = vpop.f32.mrb[0].mxu0
    %3205 = vdwg.mxu0
    %v3206 = vsel %vm151, %v3203, -inf
    %3207 = vmax.xlane.f32.xlu0 %v3206
    %v3208 = vpop.xlane.xlu0 %3207
    %v3209 = vsub.f32 %v3203, %v3208
    %v3210 = vmul.f32 %v3209, 1.442695
    %v3211 = vpow.pop %v3210
    %v3212 = vsel %vm151, %v3211, 0.0
    %3213 = vadd.xlane.f32.xlu0 %v3212
    %v3214 = vpop.xlane.xlu0 %3213
    %v3215 = vrcp.pop %v3214
    %v3216 = vmul.f32 %v3211, %v3215
    %3217 = vrot.lane.b32.xlu0 %v1957, 40
    %v3218 = vpop.permute.xlu0 %3217
    %v3221 = vsel %vm151, %v3216, 0
    %3223 = vmatprep.subr.mxu0 0.0
    %3224 = vmatpush1.msra.mxu0 %v3218
    %3225 = vmatprep.subr.mxu0 0.0
    %3226 = vmatpush1.msra.mxu0 0.0
    %3227 = vmatprep.subr.mxu0 0.0
    %3228 = vmatpush1.msra.mxu0 0.0
    %3229 = vmatprep.subr.mxu0 0.0
    %3230 = vmatpush1.msra.mxu0 0.0
    %3231 = vmatprep.subr.mxu0 0.0
    %3232 = vmatpush1.msra.mxu0 0.0
    %3233 = vmatprep.subr.mxu0 0.0
    %3234 = vmatpush1.msra.mxu0 0.0
    %3235 = vmatprep.subr.mxu0 0.0
    %3236 = vmatpush1.msra.mxu0 0.0
    %3237 = vmatprep.subr.mxu0 0.0
    %3238 = vmatpush1.msra.mxu0 0.0
    %3239 = vmatprep.subr.mxu0 0.0
    %3240 = vmatpush1.msra.mxu0 0.0
    %3241 = vmatprep.subr.mxu0 0.0
    %3242 = vmatpush1.msra.mxu0 0.0
    %3243 = vmatprep.subr.mxu0 0.0
    %3244 = vmatpush1.msra.mxu0 0.0
    %3245 = vmatprep.subr.mxu0 0.0
    %3246 = vmatpush1.msra.mxu0 0.0
    %3247 = vmatprep.subr.mxu0 0.0
    %3248 = vmatpush1.msra.mxu0 0.0
    %3249 = vmatprep.subr.mxu0 0.0
    %3250 = vmatpush1.msra.mxu0 0.0
    %3251 = vmatprep.subr.mxu0 0.0
    %3252 = vmatpush1.msra.mxu0 0.0
    %3253 = vmatprep.subr.mxu0 0.0
    %3254 = vmatpush1.msra.mxu0 0.0
    %3255 = vmatprep.subr.mxu0 0.0
    %3256 = vmatpush1.msra.mxu0 0.0
    %3257 = vmatprep.subr.mxu0 0.0
    %3258 = vmatpush1.msra.mxu0 0.0
    %3259 = vmatprep.subr.mxu0 0.0
    %3260 = vmatpush1.msra.mxu0 0.0
    %3261 = vmatprep.subr.mxu0 0.0
    %3262 = vmatpush1.msra.mxu0 0.0
    %3263 = vmatprep.subr.mxu0 0.0
    %3264 = vmatpush1.msra.mxu0 0.0
    %3265 = vmatprep.subr.mxu0 0.0
    %3266 = vmatpush1.msra.mxu0 0.0
    %3267 = vmatprep.subr.mxu0 0.0
    %3268 = vmatpush1.msra.mxu0 0.0
    %3269 = vmatprep.subr.mxu0 0.0
    %3270 = vmatpush1.msra.mxu0 0.0
    %3271 = vmatprep.subr.mxu0 0.0
    %3272 = vmatpush1.msra.mxu0 0.0
    %3273 = vmatprep.subr.mxu0 0.0
    %3274 = vmatpush1.msra.mxu0 0.0
    %3275 = vmatprep.subr.mxu0 0.0
    %3276 = vmatpush1.msra.mxu0 0.0
    %3277 = vmatprep.subr.mxu0 0.0
    %3278 = vmatpush1.msra.mxu0 0.0
    %3279 = vmatprep.subr.mxu0 0.0
    %3280 = vmatpush1.msra.mxu0 0.0
    %3281 = vmatprep.subr.mxu0 0.0
    %3282 = vmatpush1.msra.mxu0 0.0
    %3283 = vmatprep.subr.mxu0 0.0
    %3284 = vmatpush1.msra.mxu0 0.0
    %3285 = vmatprep.subr.mxu0 0.0
    %3286 = vmatpush1.msra.mxu0 0.0
    %3287 = vmatprep.mubr.f32.mxu0 0.0
    %3288 = vmatmul.mubr.f32.gmra.mrb[0].mxu0 %v3221
    %v3289 = vpop.f32.mrb[0].mxu0
    %v3290 = vadd.f32 0.0, %v3289
    %v3291 = vpop.f32.mrb[0].mxu0
    %3292 = vdwg.mxu0
    %3294 = vrot.lane.b32.xlu0 %v2960, 8
    %v3295 = vpop.permute.xlu0 %3294
    %3298 = vrot.lane.b32.xlu0 %v3125, 16
    %v3299 = vpop.permute.xlu0 %3298
    %3302 = vrot.lane.b32.xlu0 %v3290, 24
    %v3303 = vpop.permute.xlu0 %3302
    %v3305 = vsel %vm151, %v2795, %v3295
    %v3306 = vsel %vm821, %v3305, %v3299
    %v3307 = vsel %vm823, %v3306, %v3303
    %v3308 = vlaneseq
    %v3309 = vshrl.u32 %v3308, 7
    %v3310 = vsub.s32 0, %v3309
    %v3311 = vrot.slane %v1872, %v3310
    %3316 = vrot.lane.b32.xlu0 %v1848, 32
    %v3317 = vpop.permute.xlu0 %3316
    %3318 = vrot.lane.b32.xlu0 %v1849, 32
    %v3319 = vpop.permute.xlu0 %3318
    %3320 = vrot.lane.b32.xlu0 %v1850, 32
    %v3321 = vpop.permute.xlu0 %3320
    %3322 = vrot.lane.b32.xlu0 %v1851, 32
    %v3323 = vpop.permute.xlu0 %3322
    %v3329 = vsel %vm66, %v2633, 0
    %v3332 = vsel %vm66, %v3307, 0
    %3334 = vmatprep.subr.mxu0 0.0
    %3335 = vmatpush1.msra.mxu0 %v3317
    %3336 = vmatprep.subr.mxu0 0.0
    %3337 = vmatpush1.msra.mxu0 %v3319
    %3338 = vmatprep.subr.mxu0 0.0
    %3339 = vmatpush1.msra.mxu0 %v3321
    %3340 = vmatprep.subr.mxu0 0.0
    %3341 = vmatpush1.msra.mxu0 %v3323
    %3342 = vmatprep.subr.mxu0 0.0
    %3343 = vmatpush1.msra.mxu0 0.0
    %3344 = vmatprep.subr.mxu0 0.0
    %3345 = vmatpush1.msra.mxu0 0.0
    %3346 = vmatprep.subr.mxu0 0.0
    %3347 = vmatpush1.msra.mxu0 0.0
    %3348 = vmatprep.subr.mxu0 0.0
    %3349 = vmatpush1.msra.mxu0 0.0
    %3350 = vmatprep.subr.mxu0 0.0
    %3351 = vmatpush1.msra.mxu0 0.0
    %3352 = vmatprep.subr.mxu0 0.0
    %3353 = vmatpush1.msra.mxu0 0.0
    %3354 = vmatprep.subr.mxu0 0.0
    %3355 = vmatpush1.msra.mxu0 0.0
    %3356 = vmatprep.subr.mxu0 0.0
    %3357 = vmatpush1.msra.mxu0 0.0
    %3358 = vmatprep.subr.mxu0 0.0
    %3359 = vmatpush1.msra.mxu0 0.0
    %3360 = vmatprep.subr.mxu0 0.0
    %3361 = vmatpush1.msra.mxu0 0.0
    %3362 = vmatprep.subr.mxu0 0.0
    %3363 = vmatpush1.msra.mxu0 0.0
    %3364 = vmatprep.subr.mxu0 0.0
    %3365 = vmatpush1.msra.mxu0 0.0
    %3366 = vmatprep.subr.mxu0 0.0
    %3367 = vmatpush1.msra.mxu0 0.0
    %3368 = vmatprep.subr.mxu0 0.0
    %3369 = vmatpush1.msra.mxu0 0.0
    %3370 = vmatprep.subr.mxu0 0.0
    %3371 = vmatpush1.msra.mxu0 0.0
    %3372 = vmatprep.subr.mxu0 0.0
    %3373 = vmatpush1.msra.mxu0 0.0
    %3374 = vmatprep.subr.mxu0 0.0
    %3375 = vmatpush1.msra.mxu0 0.0
    %3376 = vmatprep.subr.mxu0 0.0
    %3377 = vmatpush1.msra.mxu0 0.0
    %3378 = vmatprep.subr.mxu0 0.0
    %3379 = vmatpush1.msra.mxu0 0.0
    %3380 = vmatprep.subr.mxu0 0.0
    %3381 = vmatpush1.msra.mxu0 0.0
    %3382 = vmatprep.subr.mxu0 0.0
    %3383 = vmatpush1.msra.mxu0 0.0
    %3384 = vmatprep.subr.mxu0 0.0
    %3385 = vmatpush1.msra.mxu0 0.0
    %3386 = vmatprep.subr.mxu0 0.0
    %3387 = vmatpush1.msra.mxu0 0.0
    %3388 = vmatprep.subr.mxu0 0.0
    %3389 = vmatpush1.msra.mxu0 0.0
    %3390 = vmatprep.subr.mxu0 0.0
    %3391 = vmatpush1.msra.mxu0 0.0
    %3392 = vmatprep.subr.mxu0 0.0
    %3393 = vmatpush1.msra.mxu0 0.0
    %3394 = vmatprep.subr.mxu0 0.0
    %3395 = vmatpush1.msra.mxu0 0.0
    %3396 = vmatprep.subr.mxu0 0.0
    %3397 = vmatpush1.msra.mxu0 0.0
    %3398 = vmatprep.mubr.f32.mxu0 0.0
    %3399 = vmatmul.mubr.f32.gmra.mrb[0].mxu0 %v3329
    %v3400 = vpop.f32.mrb[0].mxu0
    %v3401 = vadd.f32 %v3311, %v3400
    %v3402 = vpop.f32.mrb[0].mxu0
    %3403 = vmatprep.mubr.f32.mxu0 0.0
    %3404 = vmatmul.mubr.f32.gmra.mrb[0].mxu0 %v3332
    %v3405 = vpop.f32.mrb[0].mxu0
    %v3406 = vadd.f32 %v3311, %v3405
    %v3407 = vpop.f32.mrb[0].mxu0
    %3408 = vdwg.mxu0
    %v3409 = vmul.f32 %v3401, %v1845
    %v3410 = vmul.f32 %v3406, %v1846
    %v3411 = vsel %vm66, %v3409, 0.0
    %3412 = vadd.xlane.f32.xlu0 %v3411
    %v3413 = vpop.xlane.xlu0 %3412
    %v3414 = vsel %vm66, %v3410, 0.0
    %3415 = vadd.xlane.f32.xlu0 %v3414
    %v3416 = vpop.xlane.xlu0 %3415
    %v3417 = vmul.f32 %v3413, %v1608
    %v3418 = vmul.f32 %v3416, %v1608
    %v3419 = vsub.f32 %v3409, %v3417
    %v3420 = vsub.f32 %v3410, %v3418
    %v3421 = vmul.f32 %v3419, %v3419
    %v3422 = vmul.f32 %v3420, %v3420
    %v3423 = vsel %vm66, %v3421, 0.0
    %3424 = vadd.xlane.f32.xlu0 %v3423
    %v3425 = vpop.xlane.xlu0 %3424
    %v3426 = vsel %vm66, %v3422, 0.0
    %3427 = vadd.xlane.f32.xlu0 %v3426
    %v3428 = vpop.xlane.xlu0 %3427
    %v3429 = vmul.f32 %v3425, %v1608
    %v3430 = vmul.f32 %v3428, %v1608
    %v3431 = vadd.f32 %v3429, 1e-05
    %v3432 = vadd.f32 %v3430, 1e-05
    %v3433 = vrsqrt.pop %v3431
    %v3434 = vrsqrt.pop %v3432
    %v3435 = vmul.f32 %v3419, %v3433
    %v3436 = vmul.f32 %v3420, %v3434
    %v3437 = vlaneseq
    %v3438 = vshrl.u32 %v3437, 7
    %v3439 = vsub.s32 0, %v3438
    %v3440 = vrot.slane %v1873, %v3439
    %v3441 = vmul.f32 %v3435, %v3440
    %v3442 = vmul.f32 %v3436, %v3440
    %v3443 = vlaneseq
    %v3444 = vshrl.u32 %v3443, 7
    %v3445 = vsub.s32 0, %v3444
    %v3446 = vrot.slane %v1874, %v3445
    %v3447 = vadd.f32 %v3441, %v3446
    %v3448 = vadd.f32 %v3442, %v3446
    %v3449 = vlaneseq
    %v3450 = vshrl.u32 %v3449, 7
    %v3451 = vsub.s32 0, %v3450
    %v3452 = vrot.slane %v1875, %v3451
    %v3454 = vsel %vm66, %v3447, 0
    %v3457 = vsel %vm66, %v3448, 0
    %3459 = vmatprep.subr.mxu0 0.0
    %3460 = vmatpush1.msra.mxu0 %v1852
    %3461 = vmatprep.subr.mxu0 0.0
    %3462 = vmatpush1.msra.mxu0 %v1853
    %3463 = vmatprep.subr.mxu0 0.0
    %3464 = vmatpush1.msra.mxu0 %v1854
    %3465 = vmatprep.subr.mxu0 0.0
    %3466 = vmatpush1.msra.mxu0 %v1855
    %3467 = vmatprep.subr.mxu0 0.0
    %3468 = vmatpush1.msra.mxu0 0.0
    %3469 = vmatprep.subr.mxu0 0.0
    %3470 = vmatpush1.msra.mxu0 0.0
    %3471 = vmatprep.subr.mxu0 0.0
    %3472 = vmatpush1.msra.mxu0 0.0
    %3473 = vmatprep.subr.mxu0 0.0
    %3474 = vmatpush1.msra.mxu0 0.0
    %3475 = vmatprep.subr.mxu0 0.0
    %3476 = vmatpush1.msra.mxu0 0.0
    %3477 = vmatprep.subr.mxu0 0.0
    %3478 = vmatpush1.msra.mxu0 0.0
    %3479 = vmatprep.subr.mxu0 0.0
    %3480 = vmatpush1.msra.mxu0 0.0
    %3481 = vmatprep.subr.mxu0 0.0
    %3482 = vmatpush1.msra.mxu0 0.0
    %3483 = vmatprep.subr.mxu0 0.0
    %3484 = vmatpush1.msra.mxu0 0.0
    %3485 = vmatprep.subr.mxu0 0.0
    %3486 = vmatpush1.msra.mxu0 0.0
    %3487 = vmatprep.subr.mxu0 0.0
    %3488 = vmatpush1.msra.mxu0 0.0
    %3489 = vmatprep.subr.mxu0 0.0
    %3490 = vmatpush1.msra.mxu0 0.0
    %3491 = vmatprep.subr.mxu0 0.0
    %3492 = vmatpush1.msra.mxu0 0.0
    %3493 = vmatprep.subr.mxu0 0.0
    %3494 = vmatpush1.msra.mxu0 0.0
    %3495 = vmatprep.subr.mxu0 0.0
    %3496 = vmatpush1.msra.mxu0 0.0
    %3497 = vmatprep.subr.mxu0 0.0
    %3498 = vmatpush1.msra.mxu0 0.0
    %3499 = vmatprep.subr.mxu0 0.0
    %3500 = vmatpush1.msra.mxu0 0.0
    %3501 = vmatprep.subr.mxu0 0.0
    %3502 = vmatpush1.msra.mxu0 0.0
    %3503 = vmatprep.subr.mxu0 0.0
    %3504 = vmatpush1.msra.mxu0 0.0
    %3505 = vmatprep.subr.mxu0 0.0
    %3506 = vmatpush1.msra.mxu0 0.0
    %3507 = vmatprep.subr.mxu0 0.0
    %3508 = vmatpush1.msra.mxu0 0.0
    %3509 = vmatprep.subr.mxu0 0.0
    %3510 = vmatpush1.msra.mxu0 0.0
    %3511 = vmatprep.subr.mxu0 0.0
    %3512 = vmatpush1.msra.mxu0 0.0
    %3513 = vmatprep.subr.mxu0 0.0
    %3514 = vmatpush1.msra.mxu0 0.0
    %3515 = vmatprep.subr.mxu0 0.0
    %3516 = vmatpush1.msra.mxu0 0.0
    %3517 = vmatprep.subr.mxu0 0.0
    %3518 = vmatpush1.msra.mxu0 0.0
    %3519 = vmatprep.subr.mxu0 0.0
    %3520 = vmatpush1.msra.mxu0 0.0
    %3521 = vmatprep.subr.mxu0 0.0
    %3522 = vmatpush1.msra.mxu0 0.0
    %3523 = vmatprep.mubr.f32.mxu0 0.0
    %3524 = vmatmul.mubr.f32.gmra.mrb[0].mxu0 %v3454
    %v3525 = vpop.f32.mrb[0].mxu0
    %v3526 = vadd.f32 %v3452, %v3525
    %v3527 = vpop.f32.mrb[0].mxu0
    %3528 = vmatprep.mubr.f32.mxu0 0.0
    %3529 = vmatmul.mubr.f32.gmra.mrb[0].mxu0 %v3457
    %v3530 = vpop.f32.mrb[0].mxu0
    %v3531 = vadd.f32 %v3452, %v3530
    %v3532 = vpop.f32.mrb[0].mxu0
    %3533 = vdwg.mxu0
    %v3534 = vmax.f32 %v3526, 0.0
    %v3535 = vmax.f32 %v3531, 0.0
    %v3536 = vlaneseq
    %v3537 = vshrl.u32 %v3536, 7
    %v3538 = vsub.s32 0, %v3537
    %v3539 = vrot.slane %v1876, %v3538
    %3540 = vmatprep.subr.mxu0 0.0
    %3541 = vmatpush1.msra.mxu0 %v1856
    %3542 = vmatprep.subr.mxu0 0.0
    %3543 = vmatpush1.msra.mxu0 %v1857
    %3544 = vmatprep.subr.mxu0 0.0
    %3545 = vmatpush1.msra.mxu0 %v1858
    %3546 = vmatprep.subr.mxu0 0.0
    %3547 = vmatpush1.msra.mxu0 %v1859
    %3548 = vmatprep.subr.mxu0 0.0
    %3549 = vmatpush1.msra.mxu0 %v1860
    %3550 = vmatprep.subr.mxu0 0.0
    %3551 = vmatpush1.msra.mxu0 %v1861
    %3552 = vmatprep.subr.mxu0 0.0
    %3553 = vmatpush1.msra.mxu0 %v1862
    %3554 = vmatprep.subr.mxu0 0.0
    %3555 = vmatpush1.msra.mxu0 %v1863
    %3556 = vmatprep.subr.mxu0 0.0
    %3557 = vmatpush1.msra.mxu0 %v1864
    %3558 = vmatprep.subr.mxu0 0.0
    %3559 = vmatpush1.msra.mxu0 %v1865
    %3560 = vmatprep.subr.mxu0 0.0
    %3561 = vmatpush1.msra.mxu0 %v1866
    %3562 = vmatprep.subr.mxu0 0.0
    %3563 = vmatpush1.msra.mxu0 %v1867
    %3564 = vmatprep.subr.mxu0 0.0
    %3565 = vmatpush1.msra.mxu0 %v1868
    %3566 = vmatprep.subr.mxu0 0.0
    %3567 = vmatpush1.msra.mxu0 %v1869
    %3568 = vmatprep.subr.mxu0 0.0
    %3569 = vmatpush1.msra.mxu0 %v1870
    %3570 = vmatprep.subr.mxu0 0.0
    %3571 = vmatpush1.msra.mxu0 %v1871
    %3572 = vmatprep.subr.mxu0 0.0
    %3573 = vmatpush1.msra.mxu0 0.0
    %3574 = vmatprep.subr.mxu0 0.0
    %3575 = vmatpush1.msra.mxu0 0.0
    %3576 = vmatprep.subr.mxu0 0.0
    %3577 = vmatpush1.msra.mxu0 0.0
    %3578 = vmatprep.subr.mxu0 0.0
    %3579 = vmatpush1.msra.mxu0 0.0
    %3580 = vmatprep.subr.mxu0 0.0
    %3581 = vmatpush1.msra.mxu0 0.0
    %3582 = vmatprep.subr.mxu0 0.0
    %3583 = vmatpush1.msra.mxu0 0.0
    %3584 = vmatprep.subr.mxu0 0.0
    %3585 = vmatpush1.msra.mxu0 0.0
    %3586 = vmatprep.subr.mxu0 0.0
    %3587 = vmatpush1.msra.mxu0 0.0
    %3588 = vmatprep.subr.mxu0 0.0
    %3589 = vmatpush1.msra.mxu0 0.0
    %3590 = vmatprep.subr.mxu0 0.0
    %3591 = vmatpush1.msra.mxu0 0.0
    %3592 = vmatprep.subr.mxu0 0.0
    %3593 = vmatpush1.msra.mxu0 0.0
    %3594 = vmatprep.subr.mxu0 0.0
    %3595 = vmatpush1.msra.mxu0 0.0
    %3596 = vmatprep.subr.mxu0 0.0
    %3597 = vmatpush1.msra.mxu0 0.0
    %3598 = vmatprep.subr.mxu0 0.0
    %3599 = vmatpush1.msra.mxu0 0.0
    %3600 = vmatprep.subr.mxu0 0.0
    %3601 = vmatpush1.msra.mxu0 0.0
    %3602 = vmatprep.subr.mxu0 0.0
    %3603 = vmatpush1.msra.mxu0 0.0
    %3604 = vmatprep.mubr.f32.mxu0 0.0
    %3605 = vmatmul.mubr.f32.gmra.mrb[0].mxu0 %v3534
    %v3606 = vpop.f32.mrb[0].mxu0
    %v3607 = vadd.f32 %v3539, %v3606
    %v3608 = vpop.f32.mrb[0].mxu0
    %3609 = vmatprep.mubr.f32.mxu0 0.0
    %3610 = vmatmul.mubr.f32.gmra.mrb[0].mxu0 %v3535
    %v3611 = vpop.f32.mrb[0].mxu0
    %v3612 = vadd.f32 %v3539, %v3611
    %v3613 = vpop.f32.mrb[0].mxu0
    %3614 = vdwg.mxu0
    %v3615 = vadd.f32 %v3607, %v3447
    %v3616 = vadd.f32 %v3612, %v3448
    %v3617 = vsel %vm66, %v3615, 0.0
    %3618 = vadd.xlane.f32.xlu0 %v3617
    %v3619 = vpop.xlane.xlu0 %3618
    %v3620 = vsel %vm66, %v3616, 0.0
    %3621 = vadd.xlane.f32.xlu0 %v3620
    %v3622 = vpop.xlane.xlu0 %3621
    %v3623 = vmul.f32 %v3619, %v1608
    %v3624 = vmul.f32 %v3622, %v1608
    %v3625 = vsub.f32 %v3615, %v3623
    %v3626 = vsub.f32 %v3616, %v3624
    %v3627 = vmul.f32 %v3625, %v3625
    %v3628 = vmul.f32 %v3626, %v3626
    %v3629 = vsel %vm66, %v3627, 0.0
    %3630 = vadd.xlane.f32.xlu0 %v3629
    %v3631 = vpop.xlane.xlu0 %3630
    %v3632 = vsel %vm66, %v3628, 0.0
    %3633 = vadd.xlane.f32.xlu0 %v3632
    %v3634 = vpop.xlane.xlu0 %3633
    %v3635 = vmul.f32 %v3631, %v1608
    %v3636 = vmul.f32 %v3634, %v1608
    %v3637 = vadd.f32 %v3635, 1e-05
    %v3638 = vadd.f32 %v3636, 1e-05
    %v3639 = vrsqrt.pop %v3637
    %v3640 = vrsqrt.pop %v3638
    %v3641 = vmul.f32 %v3625, %v3639
    %v3642 = vmul.f32 %v3626, %v3640
    %v3643 = vlaneseq
    %v3644 = vshrl.u32 %v3643, 7
    %v3645 = vsub.s32 0, %v3644
    %v3646 = vrot.slane %v1877, %v3645
    %v3647 = vmul.f32 %v3641, %v3646
    %v3648 = vmul.f32 %v3642, %v3646
    %v3649 = vlaneseq
    %v3650 = vshrl.u32 %v3649, 7
    %v3651 = vsub.s32 0, %v3650
    %v3652 = vrot.slane %v1878, %v3651
    %v3653 = vadd.f32 %v3647, %v3652
    %v3654 = vadd.f32 %v3648, %v3652
    %3655 = vst.msk [vmem:[#allocation5] sm:$0xff] %vm66, %v3653
    %3656 = vst.msk [vmem:[#allocation5 + $0x8] sm:$0xff] %vm66, %v3654
    // Predicated region
    $region18: #{encoder_forward.1} parent=1 // pred_check
      _
    $region19: #{encoder_forward.1} parent=1 // pred_check_branch
      %3658 = sbr.rel (0) target = $region21
    $region20: #{encoder_forward.1} parent=1 // pred_region
      %s3660 = ssub.s32 256, 256
      %3661 = vsyncadd [#allocation4], %s3660
      %s3662 = sshll.u32 [#allocation5], 4
      %s3663 = int_to_ptr.vmem [resolvable:$true] %s3662
      %3668 = dma.vmem_to_hbm [thread:$0]  %s3663, 256, %s3, [#allocation4], 128, 128, 8
    $region21: #{encoder_forward.1} parent=1 // pred_fallthru
      _
    // Predicated region
    $region22: #{encoder_forward.1} parent=1 // pred_check
      _
    $region23: #{encoder_forward.1} parent=1 // pred_check_branch
      %3670 = sbr.rel (0) target = $region25
    $region24: #{encoder_forward.1} parent=1 // pred_region
      %3671 = dma.done [#allocation4], 256
    $region25: #{encoder_forward.1} parent=1 // pred_fallthru
      _
    %3672 = vsyncpa [#allocation3], 1
    %3673 = vsyncpa [#allocation4], 1

</llo_original>
